<compile_context>
chip_gen: v7x
topology: tpu7x:2x2x1
jax: 0.10.0
libtpu: 0.0.40
codegen_flags: <defaults>
</compile_context>

<pallas_src>
import math

import jax
import jax.numpy as jnp
from jax import lax
from jax.experimental import pallas as pl
from jax.experimental.pallas import tpu as pltpu

LN_EPS = 1e-5
D_CONV = 4
D_STATE = 16
EXPAND = 2
SCAN_CHUNK = 16          # timesteps per scan chunk (inner loop fully unrolled)
L_TILE_MAX = 512         # sequence rows per grid step (multiple of SCAN_CHUNK)
E_SLAB = 512             # lane slab of the recurrence (bounds vreg pressure)
_HPAD = 8                # sublane-aligned header in conv scratch (holds K-1 history rows)


def _round_up(x, m):
    return ((x + m - 1) // m) * m


def _softplus(x):
    # matches torch.nn.functional.softplus(beta=1, threshold=20)
    return jnp.where(x > 20.0, x, jnp.log1p(jnp.exp(jnp.minimum(x, 20.0))))


def _silu(x):
    return x * jax.nn.sigmoid(x)


_VMEM_LIMIT = None


def _vmem_limit_bytes():
    # ~75% of physical VMEM (v7x ~48 MiB, v5e/v6e ~96 MiB), capped at 100 MiB.
    global _VMEM_LIMIT
    if _VMEM_LIMIT is None:
        try:
            cap = int(pltpu.get_tpu_info().vmem_capacity_bytes)
        except Exception:
            cap = 64 * 1024 * 1024
        _VMEM_LIMIT = min(cap * 3 // 4, 100 * 1024 * 1024)
    return _VMEM_LIMIT


# ---------------------------------------------------------------------------
# Fused block kernel: add + LayerNorm + Mamba mixer, per (batch, L-tile)
# ---------------------------------------------------------------------------
def _make_block_kernel(L, L_pad, LT, D, E, N, Rpad, K, TC, ES, has_residual):
    n_chunks = LT // TC
    need_mask = (L_pad != L)

    def kernel(*refs):
        it = iter(refs)
        hs_ref = next(it)
        r_ref = next(it) if has_residual else None
        h0_ref = next(it)
        lnw_ref = next(it)
        lnb_ref = next(it)
        w_in_ref = next(it)
        w_conv_ref = next(it)
        b_conv_ref = next(it)
        w_x_ref = next(it)
        w_dt_ref = next(it)
        b_dt_ref = next(it)
        a_log_ref = next(it)
        d_ref = next(it)
        w_out_ref = next(it)
        out_ref = next(it)
        res_ref = next(it) if has_residual else None
        state_ref = next(it)
        xa_scr = next(it)     # (LT, E)  silu(conv(x))
        dt_scr = next(it)     # (LT, E)  softplus(dt), padded rows zeroed
        z_scr = next(it)      # (LT, E)  silu(z)
        y_scr = next(it)      # (LT, E)  scan output (gated)
        bc_scr = next(it)     # (LT, 2N) [B | C]
        conv_scr = next(it)   # (_HPAD+LT, E) x_lin with cross-tile history header
        hcar_scr = next(it)   # (N, E)   SSM carry across L tiles

        li = pl.program_id(1)
        n_li = pl.num_programs(1)

        # ---- Block prologue: (residual add +) LayerNorm, fused (no HBM round-trip)
        hs = hs_ref[0]                                              # (LT, D) f32
        if has_residual:
            res = hs + r_ref[0]
            res_ref[0] = res
        else:
            res = hs
        mean = jnp.mean(res, axis=-1, keepdims=True)
        ctr = res - mean
        var = jnp.mean(ctr * ctr, axis=-1, keepdims=True)
        normed = ctr * lax.rsqrt(var + LN_EPS) * lnw_ref[...] + lnb_ref[...]

        # ---- fused in_proj: one (LT,D)x(D,2E) GEMM, bf16 operands / f32 acc
        xz = jnp.dot(normed.astype(jnp.bfloat16), w_in_ref[...],
                     preferred_element_type=jnp.float32)            # (LT, 2E)
        x_lin = xz[:, :E]
        z_scr[...] = _silu(xz[:, E:])

        # ---- causal depthwise conv1d (K taps) with cross-tile history.
        # conv_scr rows [_HPAD-(K-1), _HPAD) hold the previous tile's last K-1
        # x_lin rows (zeros at the start of each sequence).
        @pl.when(li == 0)
        def _():
            conv_scr[_HPAD - (K - 1):_HPAD, :] = jnp.zeros((K - 1, E), jnp.float32)

        @pl.when(li > 0)
        def _():
            conv_scr[_HPAD - (K - 1):_HPAD, :] = \
                conv_scr[_HPAD + LT - (K - 1):_HPAD + LT, :]

        conv_scr[_HPAD:_HPAD + LT, :] = x_lin
        x_conv = jnp.broadcast_to(b_conv_ref[...], (LT, E))
        for j in range(K):
            tap = x_lin if j == 0 else conv_scr[_HPAD - j:_HPAD - j + LT, :]
            x_conv = x_conv + tap * w_conv_ref[K - 1 - j:K - j, :]
        x_act = _silu(x_conv)
        xa_scr[...] = x_act

        # ---- fused x_proj: one (LT,E)x(E,Rpad+2N) GEMM; dt head kept in f32
        x_db = jnp.dot(x_act.astype(jnp.bfloat16), w_x_ref[...],
                       preferred_element_type=jnp.float32)          # (LT, Rpad+2N)
        bc_scr[...] = x_db[:, Rpad:]                                 # (LT, 2N)
        dt_val = _softplus(
            jnp.dot(x_db[:, :Rpad], w_dt_ref[...],
                    preferred_element_type=jnp.float32) + b_dt_ref[...])
        if need_mask:
            # padded rows: dt=0 -> dA=exp(0)=1, dBx=0 -> carry unchanged; no
            # per-step masks needed inside the scan.
            grow = li * LT + lax.broadcasted_iota(jnp.int32, (LT, 1), 0)
            dt_val = jnp.where(grow < L, dt_val, 0.0)
        dt_scr[...] = dt_val

        a_full = -jnp.exp(a_log_ref[...])                            # (N, E)
        d_full = d_ref[...]                                          # (1, E)

        @pl.when(li == 0)
        def _():
            hcar_scr[...] = h0_ref[0]

        eye_tc = (lax.broadcasted_iota(jnp.int32, (TC, TC), 0) ==
                  lax.broadcasted_iota(jnp.int32, (TC, TC), 1)).astype(jnp.float32)

        # ---- selective scan: TC-timestep chunks, tiled over E slabs of ES lanes.
        # Carry chain is pure VPU FMAs; y rows go straight to the store slot.
        for e0 in range(0, E, ES):
            es = min(ES, E - e0)
            a_sl = a_full[:, e0:e0 + es]
            d_sl = d_full[:, e0:e0 + es]

            def chunk_body(ci, h):
                t0 = pl.multiple_of(ci * TC, TC)
                dt_c = dt_scr[pl.ds(t0, TC), pl.ds(e0, es)]          # (TC, es)
                x_c = xa_scr[pl.ds(t0, TC), pl.ds(e0, es)]           # (TC, es)
                bc_c = bc_scr[pl.ds(t0, TC), :]                      # (TC, 2N)
                # (TC,2N)->(2N,TC) via identity matmul (off the carry path)
                bcT = lax.dot_general(bc_c, eye_tc, (((0,), (0,)), ((), ())),
                                      preferred_element_type=jnp.float32)
                dtx_c = dt_c * x_c
                for t in range(TC):
                    dA_t = jnp.exp(dt_c[t:t + 1, :] * a_sl)          # (N, es)
                    dBx_t = bcT[:N, t:t + 1] * dtx_c[t:t + 1, :]     # (N, es)
                    h = dA_t * h + dBx_t
                    y_t = jnp.sum(bcT[N:, t:t + 1] * h,
                                  axis=0, keepdims=True)             # (1, es)
                    y_scr[pl.ds(t0 + t, 1), pl.ds(e0, es)] = y_t     # direct row store
                # gate with silu(z) and add D*x skip once per chunk (dense)
                gz_c = z_scr[pl.ds(t0, TC), pl.ds(e0, es)]
                y_raw = y_scr[pl.ds(t0, TC), pl.ds(e0, es)]
                y_scr[pl.ds(t0, TC), pl.ds(e0, es)] = (y_raw + d_sl * x_c) * gz_c
                return h

            h_sl = lax.fori_loop(0, n_chunks, chunk_body,
                                 hcar_scr[:, pl.ds(e0, es)])
            hcar_scr[:, pl.ds(e0, es)] = h_sl

        @pl.when(li == n_li - 1)
        def _():
            state_ref[0] = hcar_scr[...]

        # ---- out_proj: one (LT,E)x(E,D) GEMM
        out_ref[0] = jnp.dot(y_scr[...].astype(jnp.bfloat16), w_out_ref[...],
                             preferred_element_type=jnp.float32)

    return kernel


def vim_block(hs, residual, prev_state_t, p):
    """Fused Add+LN+Mamba block.  Returns (mixer_out, residual_out|None, state)."""
    B, L, D = hs.shape
    E = p['w_in'].shape[1] // 2
    N = D_STATE
    K = D_CONV
    Rpad = p['w_dt'].shape[0]
    TC = SCAN_CHUNK
    LT = min(L_TILE_MAX, _round_up(L, TC))
    L_pad = _round_up(L, LT)
    n_lt = L_pad // LT
    ES = min(E, E_SLAB)
    has_residual = residual is not None

    if L_pad != L:
        hs = jnp.pad(hs, ((0, 0), (0, L_pad - L), (0, 0)))
        if has_residual:
            residual = jnp.pad(residual, ((0, 0), (0, L_pad - L), (0, 0)))

    kernel = _make_block_kernel(L, L_pad, LT, D, E, N, Rpad, K, TC, ES, has_residual)

    seq_spec = pl.BlockSpec((1, LT, D), lambda b, l: (b, l, 0))
    const2d = lambda b, l: (0, 0)
    # constant weights: single VMEM buffer (block index never changes)
    wspec = lambda shape: pl.BlockSpec(shape, const2d, pipeline_mode=pl.Buffered(1))

    in_specs = [seq_spec]
    inputs = [hs]
    if has_residual:
        in_specs.append(pl.BlockSpec((1, LT, D), lambda b, l: (b, l, 0)))
        inputs.append(residual)
    in_specs += [
        pl.BlockSpec((1, N, E), lambda b, l: (b, 0, 0)),     # h0
        wspec((1, D)), wspec((1, D)),                        # ln w, b
        wspec((D, 2 * E)),                                   # in_proj
        wspec((K, E)), wspec((1, E)),                        # conv w, b
        wspec((E, Rpad + 2 * N)),                            # x_proj (dt|B|C)
        wspec((Rpad, E)), wspec((1, E)),                     # dt_proj w, b
        wspec((N, E)), wspec((1, E)),                        # A_log^T, D
        wspec((E, D)),                                       # out_proj
    ]
    inputs += [prev_state_t, p['ln_w'], p['ln_b'],
               p['w_in'], p['w_conv'], p['b_conv'],
               p['w_x'], p['w_dt'], p['b_dt'],
               p['a_log_t'], p['d_param'], p['w_out']]

    out_shapes = [jax.ShapeDtypeStruct((B, L_pad, D), jnp.float32)]
    out_specs = [pl.BlockSpec((1, LT, D), lambda b, l: (b, l, 0))]
    if has_residual:
        out_shapes.append(jax.ShapeDtypeStruct((B, L_pad, D), jnp.float32))
        out_specs.append(pl.BlockSpec((1, LT, D), lambda b, l: (b, l, 0)))
    out_shapes.append(jax.ShapeDtypeStruct((B, N, E), jnp.float32))
    out_specs.append(pl.BlockSpec((1, N, E), lambda b, l: (b, 0, 0)))

    scratch = [pltpu.VMEM((LT, E), jnp.float32),          # silu(conv(x))
               pltpu.VMEM((LT, E), jnp.float32),          # dt
               pltpu.VMEM((LT, E), jnp.float32),          # silu(z)
               pltpu.VMEM((LT, E), jnp.float32),          # y
               pltpu.VMEM((LT, 2 * N), jnp.float32),      # [B | C]
               pltpu.VMEM((_HPAD + LT, E), jnp.float32),  # conv history + x_lin
               pltpu.VMEM((N, E), jnp.float32)]           # SSM carry

    outs = pl.pallas_call(
        kernel,
        out_shape=tuple(out_shapes),
        grid_spec=pltpu.PrefetchScalarGridSpec(
            num_scalar_prefetch=0,
            grid=(B, n_lt),                               # B parallel, L arbitrary
            in_specs=in_specs,
            out_specs=out_specs,
            scratch_shapes=scratch),
        compiler_params=pltpu.CompilerParams(
            dimension_semantics=("parallel", "arbitrary"),
            vmem_limit_bytes=_vmem_limit_bytes()),
    )(*inputs)

    if has_residual:
        out, res_out, state = outs
    else:
        out, state = outs
        res_out = None
    if L_pad != L:
        out = out[:, :L, :]
        if res_out is not None:
            res_out = res_out[:, :L, :]
    return out, res_out, state


# ---------------------------------------------------------------------------
# Parameter init (deterministic, synthetic)
# ---------------------------------------------------------------------------
def init_layer_params(key, D, n_layers):
    E = EXPAND * D
    N = D_STATE
    K = D_CONV
    R = math.ceil(D / 16)
    Rpad = _round_up(R, 128)        # pad dt low-rank dim to a full lane tile
    ks = jax.random.split(key, 8)

    def nrm(k, shape, scale=0.02):
        return scale * jax.random.normal(k, shape, dtype=jnp.float32)

    in_proj_w = nrm(ks[0], (2 * E, D))                 # Linear(D, 2E, bias=False)
    conv_w = nrm(ks[1], (E, K), 0.2)                   # Conv1d weight (E,1,K) squeezed
    conv_b = nrm(ks[2], (E,), 0.02)
    x_proj_w = nrm(ks[3], (R + 2 * N, E))              # Linear(E, R+2N, bias=False)
    dt_proj_w = nrm(ks[4], (E, R), R ** -0.5)
    dt = jnp.exp(jax.random.uniform(ks[5], (E,), dtype=jnp.float32)
                 * (math.log(0.1) - math.log(0.001)) + math.log(0.001))
    dt_proj_b = dt + jnp.log(-jnp.expm1(-dt))          # inverse softplus
    a_log = jnp.log(jnp.broadcast_to(
        jnp.arange(1, N + 1, dtype=jnp.float32), (E, N)))
    d_param = jnp.ones((E,), jnp.float32)
    out_proj_w = nrm(ks[6], (D, E)) / math.sqrt(n_layers)  # prenorm rescale

    # x_proj fused & R padded with zeros: cols [0,R)=dt, [Rpad,Rpad+2N)=[B|C]
    w_x = jnp.zeros((E, Rpad + 2 * N), jnp.float32)
    w_x = w_x.at[:, :R].set(x_proj_w[:R].T)
    w_x = w_x.at[:, Rpad:].set(x_proj_w[R:].T)
    # dt head kept f32 (feeds softplus/exp), rows [R,Rpad) zero
    w_dt = jnp.zeros((Rpad, E), jnp.float32).at[:R].set(dt_proj_w.T)

    return {
        'ln_w': jnp.ones((1, D), jnp.float32),
        'ln_b': jnp.zeros((1, D), jnp.float32),
        # big GEMM weights stored bf16 (f32 accumulation inside the kernel)
        'w_in': in_proj_w.T.astype(jnp.bfloat16),      # (D, 2E): [:, :E]=x, [:, E:]=z
        'w_x': w_x.astype(jnp.bfloat16),               # (E, Rpad+2N)
        'w_out': out_proj_w.T.astype(jnp.bfloat16),    # (E, D)
        # precision-sensitive / per-channel params stay f32
        'w_dt': w_dt,                                  # (Rpad, E)
        'w_conv': conv_w.T,                            # (K, E)
        'b_conv': conv_b.reshape(1, E),
        'b_dt': dt_proj_b.reshape(1, E),
        'a_log_t': a_log.T,                            # (N, E)
        'd_param': d_param.reshape(1, E),
    }


# ---------------------------------------------------------------------------
# VIMModule.forward equivalent
# ---------------------------------------------------------------------------
def vim_forward(params, hidden_states, residual, layer, prev_state=None):
    B, L, D = hidden_states.shape
    E = EXPAND * D
    p = params[layer]
    if prev_state is None:
        prev_state = jnp.zeros((B, E, D_STATE), jnp.float32)
    # state kept internally as (B, N, E); exposed as (B, E, N) like mamba_ssm
    prev_t = jnp.transpose(prev_state, (0, 2, 1))
    y, res_out, state_t = vim_block(hidden_states, residual, prev_t, p)
    new_state = jnp.transpose(state_t, (0, 2, 1))
    residual_new = hidden_states if residual is None else res_out
    # TODO(synk): the Vim `Mamba` mixer class is not in the reference; it is
    # approximated by a standard forward Mamba-1 selective scan returning
    # (output, final_ssm_state); the streaming conv state is not carried.
    return y, new_state, residual_new


if __name__ == "__main__":
    key = jax.random.PRNGKey(0)
    B, L, D = 2, 8, 32
    n_layers = 2
    keys = jax.random.split(key, n_layers + 1)
    params = [init_layer_params(keys[i], D, n_layers) for i in range(n_layers)]
    x = jax.random.normal(keys[-1], (B, L, D), dtype=jnp.float32)

    # layer 0 (residual=None, prev_state=None), then layer 1 chained
    y0, state0, res0 = vim_forward(params, x, None, layer=0)
    y1, state1, res1 = vim_forward(params, y0, res0, layer=1, prev_state=state0)
    jax.block_until_ready((y1, state1, res1))
    print("KERNEL_OK")
</pallas_src>

<mosaic_0001>
module attributes {stable_mosaic.version = 11 : i64} {
  func.func @kernel(%arg0: i32, %arg1: i32, %arg2: memref<1x16x32xf32, #tpu.memory_space<vmem>>, %arg3: memref<1x16x64xf32, #tpu.memory_space<vmem>>, %arg4: memref<1x32xf32, #tpu.memory_space<vmem>>, %arg5: memref<1x32xf32, #tpu.memory_space<vmem>>, %arg6: memref<32x128xbf16, #tpu.memory_space<vmem>>, %arg7: memref<4x64xf32, #tpu.memory_space<vmem>>, %arg8: memref<1x64xf32, #tpu.memory_space<vmem>>, %arg9: memref<64x160xbf16, #tpu.memory_space<vmem>>, %arg10: memref<128x64xf32, #tpu.memory_space<vmem>>, %arg11: memref<1x64xf32, #tpu.memory_space<vmem>>, %arg12: memref<16x64xf32, #tpu.memory_space<vmem>>, %arg13: memref<1x64xf32, #tpu.memory_space<vmem>>, %arg14: memref<64x32xbf16, #tpu.memory_space<vmem>>, %arg15: memref<1x16x32xf32, #tpu.memory_space<vmem>>, %arg16: memref<1x16x64xf32, #tpu.memory_space<vmem>>, %arg17: memref<16x64xf32, #tpu.memory_space<vmem>>, %arg18: memref<16x64xf32, #tpu.memory_space<vmem>>, %arg19: memref<16x64xf32, #tpu.memory_space<vmem>>, %arg20: memref<16x64xf32, #tpu.memory_space<vmem>>, %arg21: memref<16x32xf32, #tpu.memory_space<vmem>>, %arg22: memref<24x64xf32, #tpu.memory_space<vmem>>, %arg23: memref<16x64xf32, #tpu.memory_space<vmem>>) attributes {dimension_semantics = [#tpu.dimension_semantics<parallel>, #tpu.dimension_semantics<arbitrary>], iteration_bounds = array<i64: 2, 1>, scalar_prefetch = 0 : i64, scratch_operands = 7 : i64, tpu.core_type = #tpu.core_type<tc>, window_params = [{transform_indices = @transform_0, window_bounds = array<i64: 1, 16, 32>}, {transform_indices = @transform_1, window_bounds = array<i64: 1, 16, 64>}, {pipeline_mode = #tpu.pipeline_mode<synchronous>, transform_indices = @transform_2, window_bounds = array<i64: 1, 32>}, {pipeline_mode = #tpu.pipeline_mode<synchronous>, transform_indices = @transform_3, window_bounds = array<i64: 1, 32>}, {pipeline_mode = #tpu.pipeline_mode<synchronous>, transform_indices = @transform_4, window_bounds = array<i64: 32, 128>}, {pipeline_mode = #tpu.pipeline_mode<synchronous>, transform_indices = @transform_5, window_bounds = array<i64: 4, 64>}, {pipeline_mode = #tpu.pipeline_mode<synchronous>, transform_indices = @transform_6, window_bounds = array<i64: 1, 64>}, {pipeline_mode = #tpu.pipeline_mode<synchronous>, transform_indices = @transform_7, window_bounds = array<i64: 64, 160>}, {pipeline_mode = #tpu.pipeline_mode<synchronous>, transform_indices = @transform_8, window_bounds = array<i64: 128, 64>}, {pipeline_mode = #tpu.pipeline_mode<synchronous>, transform_indices = @transform_9, window_bounds = array<i64: 1, 64>}, {pipeline_mode = #tpu.pipeline_mode<synchronous>, transform_indices = @transform_10, window_bounds = array<i64: 16, 64>}, {pipeline_mode = #tpu.pipeline_mode<synchronous>, transform_indices = @transform_11, window_bounds = array<i64: 1, 64>}, {pipeline_mode = #tpu.pipeline_mode<synchronous>, transform_indices = @transform_12, window_bounds = array<i64: 64, 32>}, {transform_indices = @transform_13, window_bounds = array<i64: 1, 16, 32>}, {transform_indices = @transform_14, window_bounds = array<i64: 1, 16, 64>}]} {
    %c0 = arith.constant 0 : index
    %c0_0 = arith.constant 0 : index
    %c0_1 = arith.constant 0 : index
    %0 = vector.load %arg2[%c0, %c0_0, %c0_1] : memref<1x16x32xf32, #tpu.memory_space<vmem>>, vector<1x16x32xf32>
    %1 = vector.shape_cast %0 : vector<1x16x32xf32> to vector<16x32xf32>
    %cst = arith.constant dense<0.000000e+00> : vector<16xf32>
    %2 = vector.multi_reduction <add>, %1, %cst [1] : vector<16x32xf32> to vector<16xf32>
    %3 = vector.shape_cast %2 : vector<16xf32> to vector<16x1xf32>
    %cst_2 = arith.constant 3.200000e+01 : f32
    %4 = vector.broadcast %cst_2 : f32 to vector<16x1xf32>
    %5 = arith.divf %3, %4 : vector<16x1xf32>
    %6 = vector.broadcast %5 : vector<16x1xf32> to vector<16x32xf32>
    %7 = arith.subf %1, %6 : vector<16x32xf32>
    %8 = arith.mulf %7, %7 : vector<16x32xf32>
    %cst_3 = arith.constant dense<0.000000e+00> : vector<16xf32>
    %9 = vector.multi_reduction <add>, %8, %cst_3 [1] : vector<16x32xf32> to vector<16xf32>
    %10 = vector.shape_cast %9 : vector<16xf32> to vector<16x1xf32>
    %cst_4 = arith.constant 3.200000e+01 : f32
    %11 = vector.broadcast %cst_4 : f32 to vector<16x1xf32>
    %12 = arith.divf %10, %11 : vector<16x1xf32>
    %cst_5 = arith.constant 9.99999974E-6 : f32
    %13 = vector.broadcast %cst_5 : f32 to vector<16x1xf32>
    %14 = arith.addf %12, %13 : vector<16x1xf32>
    %15 = math.rsqrt %14 : vector<16x1xf32>
    %16 = vector.broadcast %15 : vector<16x1xf32> to vector<16x32xf32>
    %17 = arith.mulf %7, %16 : vector<16x32xf32>
    %c0_6 = arith.constant 0 : index
    %c0_7 = arith.constant 0 : index
    %18 = vector.load %arg4[%c0_6, %c0_7] : memref<1x32xf32, #tpu.memory_space<vmem>>, vector<1x32xf32>
    %19 = vector.broadcast %18 : vector<1x32xf32> to vector<16x32xf32>
    %20 = arith.mulf %17, %19 : vector<16x32xf32>
    %c0_8 = arith.constant 0 : index
    %c0_9 = arith.constant 0 : index
    %21 = vector.load %arg5[%c0_8, %c0_9] : memref<1x32xf32, #tpu.memory_space<vmem>>, vector<1x32xf32>
    %22 = vector.broadcast %21 : vector<1x32xf32> to vector<16x32xf32>
    %23 = arith.addf %20, %22 : vector<16x32xf32>
    %24 = arith.truncf %23 : vector<16x32xf32> to vector<16x32xbf16>
    %c0_10 = arith.constant 0 : index
    %c0_11 = arith.constant 0 : index
    %25 = vector.load %arg6[%c0_10, %c0_11] : memref<32x128xbf16, #tpu.memory_space<vmem>>, vector<32x128xbf16>
    %cst_12 = arith.constant dense<0.000000e+00> : vector<16x128xf32>
    %26 = tpu.matmul %24, %25, %cst_12 {dimension_numbers = #tpu.dot_dimension_numbers<[1], [0], [0], [1], [0, 0, 1, 1], [], []>} : vector<16x32xbf16>, vector<32x128xbf16>, vector<16x128xf32> -> vector<16x128xf32>
    %27 = vector.extract_strided_slice %26 {offsets = [0, 0], sizes = [16, 64], strides = [1, 1]} : vector<16x128xf32> to vector<16x64xf32>
    %28 = vector.extract_strided_slice %26 {offsets = [0, 64], sizes = [16, 64], strides = [1, 1]} : vector<16x128xf32> to vector<16x64xf32>
    %29 = arith.negf %28 : vector<16x64xf32>
    %30 = math.exp %29 : vector<16x64xf32>
    %cst_13 = arith.constant 1.000000e+00 : f32
    %31 = vector.broadcast %cst_13 : f32 to vector<16x64xf32>
    %32 = arith.addf %31, %30 : vector<16x64xf32>
    %33 = arith.divf %31, %32 : vector<16x64xf32>
    %34 = arith.mulf %28, %33 : vector<16x64xf32>
    %c0_14 = arith.constant 0 : index
    %c0_15 = arith.constant 0 : index
    %35 = vector.load %arg19[%c0_14, %c0_15] : memref<16x64xf32, #tpu.memory_space<vmem>>, vector<16x64xf32>
    tpu.vector_store %arg19[%c0_14, %c0_15], %34 {strides = array<i32>} : memref<16x64xf32, #tpu.memory_space<vmem>>, vector<16x64xf32>,
    %c0_i32 = arith.constant 0 : i32
    %36 = arith.cmpi eq, %arg1, %c0_i32 : i32
    %37 = arith.extui %36 : i1 to i32
    %c0_i32_16 = arith.constant 0 : i32
    %38 = arith.cmpi ne, %37, %c0_i32_16 : i32
    scf.if %38 {
      %cst_113 = arith.constant 0.000000e+00 : f32
      %450 = vector.broadcast %cst_113 : f32 to vector<3x64xf32>
      %c5_114 = arith.constant 5 : index
      %c0_115 = arith.constant 0 : index
      %451 = vector.load %arg22[%c5_114, %c0_115] : memref<24x64xf32, #tpu.memory_space<vmem>>, vector<3x64xf32>
      tpu.vector_store %arg22[%c5_114, %c0_115], %450 {strides = array<i32>} : memref<24x64xf32, #tpu.memory_space<vmem>>, vector<3x64xf32>,
    } else {
    }
    %c0_i32_17 = arith.constant 0 : i32
    %39 = arith.cmpi sgt, %arg1, %c0_i32_17 : i32
    %40 = arith.extui %39 : i1 to i32
    %c0_i32_18 = arith.constant 0 : i32
    %41 = arith.cmpi ne, %40, %c0_i32_18 : i32
    scf.if %41 {
      %c21 = arith.constant 21 : index
      %c0_113 = arith.constant 0 : index
      %450 = vector.load %arg22[%c21, %c0_113] : memref<24x64xf32, #tpu.memory_space<vmem>>, vector<3x64xf32>
      %c5_114 = arith.constant 5 : index
      %c0_115 = arith.constant 0 : index
      %451 = vector.load %arg22[%c5_114, %c0_115] : memref<24x64xf32, #tpu.memory_space<vmem>>, vector<3x64xf32>
      tpu.vector_store %arg22[%c5_114, %c0_115], %450 {strides = array<i32>} : memref<24x64xf32, #tpu.memory_space<vmem>>, vector<3x64xf32>,
    } else {
    }
    %c8 = arith.constant 8 : index
    %c0_19 = arith.constant 0 : index
    %42 = vector.load %arg22[%c8, %c0_19] : memref<24x64xf32, #tpu.memory_space<vmem>>, vector<16x64xf32>
    tpu.vector_store %arg22[%c8, %c0_19], %27 {strides = array<i32>} : memref<24x64xf32, #tpu.memory_space<vmem>>, vector<16x64xf32>,
    %c0_20 = arith.constant 0 : index
    %c0_21 = arith.constant 0 : index
    %43 = vector.load %arg8[%c0_20, %c0_21] : memref<1x64xf32, #tpu.memory_space<vmem>>, vector<1x64xf32>
    %44 = vector.shape_cast %43 : vector<1x64xf32> to vector<1x64xf32>
    %45 = vector.broadcast %44 : vector<1x64xf32> to vector<16x64xf32>
    %c3 = arith.constant 3 : index
    %c0_22 = arith.constant 0 : index
    %46 = vector.load %arg7[%c3, %c0_22] : memref<4x64xf32, #tpu.memory_space<vmem>>, vector<1x64xf32>
    %47 = vector.broadcast %46 : vector<1x64xf32> to vector<16x64xf32>
    %48 = arith.mulf %27, %47 : vector<16x64xf32>
    %49 = arith.addf %45, %48 : vector<16x64xf32>
    %c7 = arith.constant 7 : index
    %c0_23 = arith.constant 0 : index
    %50 = vector.load %arg22[%c7, %c0_23] : memref<24x64xf32, #tpu.memory_space<vmem>>, vector<16x64xf32>
    %c2 = arith.constant 2 : index
    %c0_24 = arith.constant 0 : index
    %51 = vector.load %arg7[%c2, %c0_24] : memref<4x64xf32, #tpu.memory_space<vmem>>, vector<1x64xf32>
    %52 = vector.broadcast %51 : vector<1x64xf32> to vector<16x64xf32>
    %53 = arith.mulf %50, %52 : vector<16x64xf32>
    %54 = arith.addf %49, %53 : vector<16x64xf32>
    %c6 = arith.constant 6 : index
    %c0_25 = arith.constant 0 : index
    %55 = vector.load %arg22[%c6, %c0_25] : memref<24x64xf32, #tpu.memory_space<vmem>>, vector<16x64xf32>
    %c1 = arith.constant 1 : index
    %c0_26 = arith.constant 0 : index
    %56 = vector.load %arg7[%c1, %c0_26] : memref<4x64xf32, #tpu.memory_space<vmem>>, vector<1x64xf32>
    %57 = vector.broadcast %56 : vector<1x64xf32> to vector<16x64xf32>
    %58 = arith.mulf %55, %57 : vector<16x64xf32>
    %59 = arith.addf %54, %58 : vector<16x64xf32>
    %c5 = arith.constant 5 : index
    %c0_27 = arith.constant 0 : index
    %60 = vector.load %arg22[%c5, %c0_27] : memref<24x64xf32, #tpu.memory_space<vmem>>, vector<16x64xf32>
    %c0_28 = arith.constant 0 : index
    %c0_29 = arith.constant 0 : index
    %61 = vector.load %arg7[%c0_28, %c0_29] : memref<4x64xf32, #tpu.memory_space<vmem>>, vector<1x64xf32>
    %62 = vector.broadcast %61 : vector<1x64xf32> to vector<16x64xf32>
    %63 = arith.mulf %60, %62 : vector<16x64xf32>
    %64 = arith.addf %59, %63 : vector<16x64xf32>
    %65 = arith.negf %64 : vector<16x64xf32>
    %66 = math.exp %65 : vector<16x64xf32>
    %cst_30 = arith.constant 1.000000e+00 : f32
    %67 = vector.broadcast %cst_30 : f32 to vector<16x64xf32>
    %68 = arith.addf %67, %66 : vector<16x64xf32>
    %69 = arith.divf %67, %68 : vector<16x64xf32>
    %70 = arith.mulf %64, %69 : vector<16x64xf32>
    %c0_31 = arith.constant 0 : index
    %c0_32 = arith.constant 0 : index
    %71 = vector.load %arg17[%c0_31, %c0_32] : memref<16x64xf32, #tpu.memory_space<vmem>>, vector<16x64xf32>
    tpu.vector_store %arg17[%c0_31, %c0_32], %70 {strides = array<i32>} : memref<16x64xf32, #tpu.memory_space<vmem>>, vector<16x64xf32>,
    %72 = arith.truncf %70 : vector<16x64xf32> to vector<16x64xbf16>
    %c0_33 = arith.constant 0 : index
    %c0_34 = arith.constant 0 : index
    %73 = vector.load %arg9[%c0_33, %c0_34] : memref<64x160xbf16, #tpu.memory_space<vmem>>, vector<64x160xbf16>
    %cst_35 = arith.constant dense<0.000000e+00> : vector<16x160xf32>
    %74 = tpu.matmul %72, %73, %cst_35 {dimension_numbers = #tpu.dot_dimension_numbers<[1], [0], [0], [1], [0, 0, 1, 1], [], []>} : vector<16x64xbf16>, vector<64x160xbf16>, vector<16x160xf32> -> vector<16x160xf32>
    %75 = vector.extract_strided_slice %74 {offsets = [0, 128], sizes = [16, 32], strides = [1, 1]} : vector<16x160xf32> to vector<16x32xf32>
    %c0_36 = arith.constant 0 : index
    %c0_37 = arith.constant 0 : index
    %76 = vector.load %arg21[%c0_36, %c0_37] : memref<16x32xf32, #tpu.memory_space<vmem>>, vector<16x32xf32>
    tpu.vector_store %arg21[%c0_36, %c0_37], %75 {strides = array<i32>} : memref<16x32xf32, #tpu.memory_space<vmem>>, vector<16x32xf32>,
    %77 = vector.extract_strided_slice %74 {offsets = [0, 0], sizes = [16, 128], strides = [1, 1]} : vector<16x160xf32> to vector<16x128xf32>
    %c0_38 = arith.constant 0 : index
    %c0_39 = arith.constant 0 : index
    %78 = vector.load %arg10[%c0_38, %c0_39] : memref<128x64xf32, #tpu.memory_space<vmem>>, vector<128x64xf32>
    %cst_40 = arith.constant dense<0.000000e+00> : vector<16x64xf32>
    %79 = tpu.matmul %77, %78, %cst_40 {dimension_numbers = #tpu.dot_dimension_numbers<[1], [0], [0], [1], [0, 0, 1, 1], [], []>} : vector<16x128xf32>, vector<128x64xf32>, vector<16x64xf32> -> vector<16x64xf32>
    %c0_41 = arith.constant 0 : index
    %c0_42 = arith.constant 0 : index
    %80 = vector.load %arg11[%c0_41, %c0_42] : memref<1x64xf32, #tpu.memory_space<vmem>>, vector<1x64xf32>
    %81 = vector.broadcast %80 : vector<1x64xf32> to vector<16x64xf32>
    %82 = arith.addf %79, %81 : vector<16x64xf32>
    %cst_43 = arith.constant 2.000000e+01 : f32
    %83 = vector.broadcast %cst_43 : f32 to vector<16x64xf32>
    %84 = arith.cmpf ogt, %82, %83 : vector<16x64xf32>
    %cst_44 = arith.constant 2.000000e+01 : f32
    %85 = vector.broadcast %cst_44 : f32 to vector<16x64xf32>
    %86 = arith.minimumf %82, %85 : vector<16x64xf32>
    %87 = math.exp %86 : vector<16x64xf32>
    %88 = math.log1p %87 : vector<16x64xf32>
    %89 = arith.select %84, %82, %88 : vector<16x64xi1>, vector<16x64xf32>
    %c16_i32 = arith.constant 16 : i32
    %90 = arith.muli %arg1, %c16_i32 : i32
    %91 = tpu.iota {dimensions = array<i32: 0>} : vector<16x1xi32>
    %92 = vector.broadcast %90 : i32 to vector<16x1xi32>
    %93 = arith.addi %92, %91 : vector<16x1xi32>
    %c8_i32 = arith.constant 8 : i32
    %94 = vector.broadcast %c8_i32 : i32 to vector<16x1xi32>
    %95 = arith.cmpi slt, %93, %94 : vector<16x1xi32>
    %cst_45 = arith.constant 0.000000e+00 : f32
    %96 = vector.shape_cast %95 : vector<16x1xi1> to vector<16x1xi1>
    %97 = vector.broadcast %96 : vector<16x1xi1> to vector<16x64xi1>
    %98 = vector.broadcast %cst_45 : f32 to vector<16x64xf32>
    %99 = arith.select %97, %89, %98 : vector<16x64xi1>, vector<16x64xf32>
    %c0_46 = arith.constant 0 : index
    %c0_47 = arith.constant 0 : index
    %100 = vector.load %arg18[%c0_46, %c0_47] : memref<16x64xf32, #tpu.memory_space<vmem>>, vector<16x64xf32>
    tpu.vector_store %arg18[%c0_46, %c0_47], %99 {strides = array<i32>} : memref<16x64xf32, #tpu.memory_space<vmem>>, vector<16x64xf32>,
    %c0_48 = arith.constant 0 : index
    %c0_49 = arith.constant 0 : index
    %101 = vector.load %arg12[%c0_48, %c0_49] : memref<16x64xf32, #tpu.memory_space<vmem>>, vector<16x64xf32>
    %102 = math.exp %101 : vector<16x64xf32>
    %cst_50 = arith.constant 0.000000e+00 : f32
    %103 = vector.broadcast %cst_50 : f32 to vector<16x64xf32>
    %104 = arith.subf %103, %102 : vector<16x64xf32>
    %c0_51 = arith.constant 0 : index
    %c0_52 = arith.constant 0 : index
    %105 = vector.load %arg13[%c0_51, %c0_52] : memref<1x64xf32, #tpu.memory_space<vmem>>, vector<1x64xf32>
    %c0_i32_53 = arith.constant 0 : i32
    %106 = arith.cmpi eq, %arg1, %c0_i32_53 : i32
    %107 = arith.extui %106 : i1 to i32
    %c0_i32_54 = arith.constant 0 : i32
    %108 = arith.cmpi ne, %107, %c0_i32_54 : i32
    scf.if %108 {
      %c0_113 = arith.constant 0 : index
      %c0_114 = arith.constant 0 : index
      %c0_115 = arith.constant 0 : index
      %450 = vector.load %arg3[%c0_113, %c0_114, %c0_115] : memref<1x16x64xf32, #tpu.memory_space<vmem>>, vector<1x16x64xf32>
      %451 = vector.shape_cast %450 : vector<1x16x64xf32> to vector<16x64xf32>
      %c0_116 = arith.constant 0 : index
      %c0_117 = arith.constant 0 : index
      %452 = vector.load %arg23[%c0_116, %c0_117] : memref<16x64xf32, #tpu.memory_space<vmem>>, vector<16x64xf32>
      tpu.vector_store %arg23[%c0_116, %c0_117], %451 {strides = array<i32>} : memref<16x64xf32, #tpu.memory_space<vmem>>, vector<16x64xf32>,
    } else {
    }
    %109 = tpu.iota {dimensions = array<i32: 0>} : vector<16x16xi32>
    %110 = tpu.iota {dimensions = array<i32: 1>} : vector<16x16xi32>
    %111 = arith.cmpi eq, %109, %110 : vector<16x16xi32>
    %112 = arith.extui %111 : vector<16x16xi1> to vector<16x16xi32>
    %113 = arith.sitofp %112 : vector<16x16xi32> to vector<16x16xf32>
    %c0_55 = arith.constant 0 : index
    %c0_56 = arith.constant 0 : index
    %114 = vector.load %arg23[%c0_55, %c0_56] : memref<16x64xf32, #tpu.memory_space<vmem>>, vector<16x64xf32>
    %c0_i32_57 = arith.constant 0 : i32
    %c16_i32_58 = arith.constant 16 : i32
    %115 = arith.muli %c0_i32_57, %c16_i32_58 : i32
    %116 = tpu.assume_multiple %115, 16 : i32
    %117 = arith.index_cast %116 : i32 to index
    %c0_59 = arith.constant 0 : index
    %118 = vector.load %arg18[%117, %c0_59] : memref<16x64xf32, #tpu.memory_space<vmem>>, vector<16x64xf32>
    %119 = arith.index_cast %116 : i32 to index
    %c0_60 = arith.constant 0 : index
    %120 = vector.load %arg17[%119, %c0_60] : memref<16x64xf32, #tpu.memory_space<vmem>>, vector<16x64xf32>
    %121 = arith.index_cast %116 : i32 to index
    %c0_61 = arith.constant 0 : index
    %122 = vector.load %arg21[%121, %c0_61] : memref<16x32xf32, #tpu.memory_space<vmem>>, vector<16x32xf32>
    %cst_62 = arith.constant dense<0.000000e+00> : vector<32x16xf32>
    %123 = tpu.matmul %122, %113, %cst_62 {dimension_numbers = #tpu.dot_dimension_numbers<[0], [0], [1], [1], [0, 1, 1, 1], [], []>} : vector<16x32xf32>, vector<16x16xf32>, vector<32x16xf32> -> vector<32x16xf32>
    %124 = arith.mulf %118, %120 : vector<16x64xf32>
    %125 = vector.extract_strided_slice %118 {offsets = [0, 0], sizes = [1, 64], strides = [1, 1]} : vector<16x64xf32> to vector<1x64xf32>
    %126 = vector.broadcast %125 : vector<1x64xf32> to vector<16x64xf32>
    %127 = arith.mulf %126, %104 : vector<16x64xf32>
    %128 = math.exp %127 : vector<16x64xf32>
    %129 = vector.extract_strided_slice %123 {offsets = [0, 0], sizes = [16, 1], strides = [1, 1]} : vector<32x16xf32> to vector<16x1xf32>
    %130 = vector.extract_strided_slice %124 {offsets = [0, 0], sizes = [1, 64], strides = [1, 1]} : vector<16x64xf32> to vector<1x64xf32>
    %131 = vector.broadcast %129 : vector<16x1xf32> to vector<16x64xf32>
    %132 = vector.broadcast %130 : vector<1x64xf32> to vector<16x64xf32>
    %133 = arith.mulf %131, %132 : vector<16x64xf32>
    %134 = arith.mulf %128, %114 : vector<16x64xf32>
    %135 = arith.addf %134, %133 : vector<16x64xf32>
    %136 = vector.extract_strided_slice %123 {offsets = [16, 0], sizes = [16, 1], strides = [1, 1]} : vector<32x16xf32> to vector<16x1xf32>
    %137 = vector.broadcast %136 : vector<16x1xf32> to vector<16x64xf32>
    %138 = arith.mulf %137, %135 : vector<16x64xf32>
    %cst_63 = arith.constant dense<0.000000e+00> : vector<64xf32>
    %139 = vector.multi_reduction <add>, %138, %cst_63 [0] : vector<16x64xf32> to vector<64xf32>
    %140 = vector.shape_cast %139 : vector<64xf32> to vector<1x64xf32>
    %c0_i32_64 = arith.constant 0 : i32
    %141 = arith.addi %116, %c0_i32_64 : i32
    %142 = arith.index_cast %141 : i32 to index
    %c0_65 = arith.constant 0 : index
    %143 = vector.load %arg20[%142, %c0_65] : memref<16x64xf32, #tpu.memory_space<vmem>>, vector<1x64xf32>
    tpu.vector_store %arg20[%142, %c0_65], %140 {strides = array<i32>} : memref<16x64xf32, #tpu.memory_space<vmem>>, vector<1x64xf32>,
    %144 = vector.extract_strided_slice %118 {offsets = [1, 0], sizes = [1, 64], strides = [1, 1]} : vector<16x64xf32> to vector<1x64xf32>
    %145 = vector.broadcast %144 : vector<1x64xf32> to vector<16x64xf32>
    %146 = arith.mulf %145, %104 : vector<16x64xf32>
    %147 = math.exp %146 : vector<16x64xf32>
    %148 = vector.extract_strided_slice %123 {offsets = [0, 1], sizes = [16, 1], strides = [1, 1]} : vector<32x16xf32> to vector<16x1xf32>
    %149 = vector.extract_strided_slice %124 {offsets = [1, 0], sizes = [1, 64], strides = [1, 1]} : vector<16x64xf32> to vector<1x64xf32>
    %150 = vector.broadcast %148 : vector<16x1xf32> to vector<16x64xf32>
    %151 = vector.broadcast %149 : vector<1x64xf32> to vector<16x64xf32>
    %152 = arith.mulf %150, %151 : vector<16x64xf32>
    %153 = arith.mulf %147, %135 : vector<16x64xf32>
    %154 = arith.addf %153, %152 : vector<16x64xf32>
    %155 = vector.extract_strided_slice %123 {offsets = [16, 1], sizes = [16, 1], strides = [1, 1]} : vector<32x16xf32> to vector<16x1xf32>
    %156 = vector.broadcast %155 : vector<16x1xf32> to vector<16x64xf32>
    %157 = arith.mulf %156, %154 : vector<16x64xf32>
    %cst_66 = arith.constant dense<0.000000e+00> : vector<64xf32>
    %158 = vector.multi_reduction <add>, %157, %cst_66 [0] : vector<16x64xf32> to vector<64xf32>
    %159 = vector.shape_cast %158 : vector<64xf32> to vector<1x64xf32>
    %c1_i32 = arith.constant 1 : i32
    %160 = arith.addi %116, %c1_i32 : i32
    %161 = arith.index_cast %160 : i32 to index
    %c0_67 = arith.constant 0 : index
    %162 = vector.load %arg20[%161, %c0_67] : memref<16x64xf32, #tpu.memory_space<vmem>>, vector<1x64xf32>
    tpu.vector_store %arg20[%161, %c0_67], %159 {strides = array<i32>} : memref<16x64xf32, #tpu.memory_space<vmem>>, vector<1x64xf32>,
    %163 = vector.extract_strided_slice %118 {offsets = [2, 0], sizes = [1, 64], strides = [1, 1]} : vector<16x64xf32> to vector<1x64xf32>
    %164 = vector.broadcast %163 : vector<1x64xf32> to vector<16x64xf32>
    %165 = arith.mulf %164, %104 : vector<16x64xf32>
    %166 = math.exp %165 : vector<16x64xf32>
    %167 = vector.extract_strided_slice %123 {offsets = [0, 2], sizes = [16, 1], strides = [1, 1]} : vector<32x16xf32> to vector<16x1xf32>
    %168 = vector.extract_strided_slice %124 {offsets = [2, 0], sizes = [1, 64], strides = [1, 1]} : vector<16x64xf32> to vector<1x64xf32>
    %169 = vector.broadcast %167 : vector<16x1xf32> to vector<16x64xf32>
    %170 = vector.broadcast %168 : vector<1x64xf32> to vector<16x64xf32>
    %171 = arith.mulf %169, %170 : vector<16x64xf32>
    %172 = arith.mulf %166, %154 : vector<16x64xf32>
    %173 = arith.addf %172, %171 : vector<16x64xf32>
    %174 = vector.extract_strided_slice %123 {offsets = [16, 2], sizes = [16, 1], strides = [1, 1]} : vector<32x16xf32> to vector<16x1xf32>
    %175 = vector.broadcast %174 : vector<16x1xf32> to vector<16x64xf32>
    %176 = arith.mulf %175, %173 : vector<16x64xf32>
    %cst_68 = arith.constant dense<0.000000e+00> : vector<64xf32>
    %177 = vector.multi_reduction <add>, %176, %cst_68 [0] : vector<16x64xf32> to vector<64xf32>
    %178 = vector.shape_cast %177 : vector<64xf32> to vector<1x64xf32>
    %c2_i32 = arith.constant 2 : i32
    %179 = arith.addi %116, %c2_i32 : i32
    %180 = arith.index_cast %179 : i32 to index
    %c0_69 = arith.constant 0 : index
    %181 = vector.load %arg20[%180, %c0_69] : memref<16x64xf32, #tpu.memory_space<vmem>>, vector<1x64xf32>
    tpu.vector_store %arg20[%180, %c0_69], %178 {strides = array<i32>} : memref<16x64xf32, #tpu.memory_space<vmem>>, vector<1x64xf32>,
    %182 = vector.extract_strided_slice %118 {offsets = [3, 0], sizes = [1, 64], strides = [1, 1]} : vector<16x64xf32> to vector<1x64xf32>
    %183 = vector.broadcast %182 : vector<1x64xf32> to vector<16x64xf32>
    %184 = arith.mulf %183, %104 : vector<16x64xf32>
    %185 = math.exp %184 : vector<16x64xf32>
    %186 = vector.extract_strided_slice %123 {offsets = [0, 3], sizes = [16, 1], strides = [1, 1]} : vector<32x16xf32> to vector<16x1xf32>
    %187 = vector.extract_strided_slice %124 {offsets = [3, 0], sizes = [1, 64], strides = [1, 1]} : vector<16x64xf32> to vector<1x64xf32>
    %188 = vector.broadcast %186 : vector<16x1xf32> to vector<16x64xf32>
    %189 = vector.broadcast %187 : vector<1x64xf32> to vector<16x64xf32>
    %190 = arith.mulf %188, %189 : vector<16x64xf32>
    %191 = arith.mulf %185, %173 : vector<16x64xf32>
    %192 = arith.addf %191, %190 : vector<16x64xf32>
    %193 = vector.extract_strided_slice %123 {offsets = [16, 3], sizes = [16, 1], strides = [1, 1]} : vector<32x16xf32> to vector<16x1xf32>
    %194 = vector.broadcast %193 : vector<16x1xf32> to vector<16x64xf32>
    %195 = arith.mulf %194, %192 : vector<16x64xf32>
    %cst_70 = arith.constant dense<0.000000e+00> : vector<64xf32>
    %196 = vector.multi_reduction <add>, %195, %cst_70 [0] : vector<16x64xf32> to vector<64xf32>
    %197 = vector.shape_cast %196 : vector<64xf32> to vector<1x64xf32>
    %c3_i32 = arith.constant 3 : i32
    %198 = arith.addi %116, %c3_i32 : i32
    %199 = arith.index_cast %198 : i32 to index
    %c0_71 = arith.constant 0 : index
    %200 = vector.load %arg20[%199, %c0_71] : memref<16x64xf32, #tpu.memory_space<vmem>>, vector<1x64xf32>
    tpu.vector_store %arg20[%199, %c0_71], %197 {strides = array<i32>} : memref<16x64xf32, #tpu.memory_space<vmem>>, vector<1x64xf32>,
    %201 = vector.extract_strided_slice %118 {offsets = [4, 0], sizes = [1, 64], strides = [1, 1]} : vector<16x64xf32> to vector<1x64xf32>
    %202 = vector.broadcast %201 : vector<1x64xf32> to vector<16x64xf32>
    %203 = arith.mulf %202, %104 : vector<16x64xf32>
    %204 = math.exp %203 : vector<16x64xf32>
    %205 = vector.extract_strided_slice %123 {offsets = [0, 4], sizes = [16, 1], strides = [1, 1]} : vector<32x16xf32> to vector<16x1xf32>
    %206 = vector.extract_strided_slice %124 {offsets = [4, 0], sizes = [1, 64], strides = [1, 1]} : vector<16x64xf32> to vector<1x64xf32>
    %207 = vector.broadcast %205 : vector<16x1xf32> to vector<16x64xf32>
    %208 = vector.broadcast %206 : vector<1x64xf32> to vector<16x64xf32>
    %209 = arith.mulf %207, %208 : vector<16x64xf32>
    %210 = arith.mulf %204, %192 : vector<16x64xf32>
    %211 = arith.addf %210, %209 : vector<16x64xf32>
    %212 = vector.extract_strided_slice %123 {offsets = [16, 4], sizes = [16, 1], strides = [1, 1]} : vector<32x16xf32> to vector<16x1xf32>
    %213 = vector.broadcast %212 : vector<16x1xf32> to vector<16x64xf32>
    %214 = arith.mulf %213, %211 : vector<16x64xf32>
    %cst_72 = arith.constant dense<0.000000e+00> : vector<64xf32>
    %215 = vector.multi_reduction <add>, %214, %cst_72 [0] : vector<16x64xf32> to vector<64xf32>
    %216 = vector.shape_cast %215 : vector<64xf32> to vector<1x64xf32>
    %c4_i32 = arith.constant 4 : i32
    %217 = arith.addi %116, %c4_i32 : i32
    %218 = arith.index_cast %217 : i32 to index
    %c0_73 = arith.constant 0 : index
    %219 = vector.load %arg20[%218, %c0_73] : memref<16x64xf32, #tpu.memory_space<vmem>>, vector<1x64xf32>
    tpu.vector_store %arg20[%218, %c0_73], %216 {strides = array<i32>} : memref<16x64xf32, #tpu.memory_space<vmem>>, vector<1x64xf32>,
    %220 = vector.extract_strided_slice %118 {offsets = [5, 0], sizes = [1, 64], strides = [1, 1]} : vector<16x64xf32> to vector<1x64xf32>
    %221 = vector.broadcast %220 : vector<1x64xf32> to vector<16x64xf32>
    %222 = arith.mulf %221, %104 : vector<16x64xf32>
    %223 = math.exp %222 : vector<16x64xf32>
    %224 = vector.extract_strided_slice %123 {offsets = [0, 5], sizes = [16, 1], strides = [1, 1]} : vector<32x16xf32> to vector<16x1xf32>
    %225 = vector.extract_strided_slice %124 {offsets = [5, 0], sizes = [1, 64], strides = [1, 1]} : vector<16x64xf32> to vector<1x64xf32>
    %226 = vector.broadcast %224 : vector<16x1xf32> to vector<16x64xf32>
    %227 = vector.broadcast %225 : vector<1x64xf32> to vector<16x64xf32>
    %228 = arith.mulf %226, %227 : vector<16x64xf32>
    %229 = arith.mulf %223, %211 : vector<16x64xf32>
    %230 = arith.addf %229, %228 : vector<16x64xf32>
    %231 = vector.extract_strided_slice %123 {offsets = [16, 5], sizes = [16, 1], strides = [1, 1]} : vector<32x16xf32> to vector<16x1xf32>
    %232 = vector.broadcast %231 : vector<16x1xf32> to vector<16x64xf32>
    %233 = arith.mulf %232, %230 : vector<16x64xf32>
    %cst_74 = arith.constant dense<0.000000e+00> : vector<64xf32>
    %234 = vector.multi_reduction <add>, %233, %cst_74 [0] : vector<16x64xf32> to vector<64xf32>
    %235 = vector.shape_cast %234 : vector<64xf32> to vector<1x64xf32>
    %c5_i32 = arith.constant 5 : i32
    %236 = arith.addi %116, %c5_i32 : i32
    %237 = arith.index_cast %236 : i32 to index
    %c0_75 = arith.constant 0 : index
    %238 = vector.load %arg20[%237, %c0_75] : memref<16x64xf32, #tpu.memory_space<vmem>>, vector<1x64xf32>
    tpu.vector_store %arg20[%237, %c0_75], %235 {strides = array<i32>} : memref<16x64xf32, #tpu.memory_space<vmem>>, vector<1x64xf32>,
    %239 = vector.extract_strided_slice %118 {offsets = [6, 0], sizes = [1, 64], strides = [1, 1]} : vector<16x64xf32> to vector<1x64xf32>
    %240 = vector.broadcast %239 : vector<1x64xf32> to vector<16x64xf32>
    %241 = arith.mulf %240, %104 : vector<16x64xf32>
    %242 = math.exp %241 : vector<16x64xf32>
    %243 = vector.extract_strided_slice %123 {offsets = [0, 6], sizes = [16, 1], strides = [1, 1]} : vector<32x16xf32> to vector<16x1xf32>
    %244 = vector.extract_strided_slice %124 {offsets = [6, 0], sizes = [1, 64], strides = [1, 1]} : vector<16x64xf32> to vector<1x64xf32>
    %245 = vector.broadcast %243 : vector<16x1xf32> to vector<16x64xf32>
    %246 = vector.broadcast %244 : vector<1x64xf32> to vector<16x64xf32>
    %247 = arith.mulf %245, %246 : vector<16x64xf32>
    %248 = arith.mulf %242, %230 : vector<16x64xf32>
    %249 = arith.addf %248, %247 : vector<16x64xf32>
    %250 = vector.extract_strided_slice %123 {offsets = [16, 6], sizes = [16, 1], strides = [1, 1]} : vector<32x16xf32> to vector<16x1xf32>
    %251 = vector.broadcast %250 : vector<16x1xf32> to vector<16x64xf32>
    %252 = arith.mulf %251, %249 : vector<16x64xf32>
    %cst_76 = arith.constant dense<0.000000e+00> : vector<64xf32>
    %253 = vector.multi_reduction <add>, %252, %cst_76 [0] : vector<16x64xf32> to vector<64xf32>
    %254 = vector.shape_cast %253 : vector<64xf32> to vector<1x64xf32>
    %c6_i32 = arith.constant 6 : i32
    %255 = arith.addi %116, %c6_i32 : i32
    %256 = arith.index_cast %255 : i32 to index
    %c0_77 = arith.constant 0 : index
    %257 = vector.load %arg20[%256, %c0_77] : memref<16x64xf32, #tpu.memory_space<vmem>>, vector<1x64xf32>
    tpu.vector_store %arg20[%256, %c0_77], %254 {strides = array<i32>} : memref<16x64xf32, #tpu.memory_space<vmem>>, vector<1x64xf32>,
    %258 = vector.extract_strided_slice %118 {offsets = [7, 0], sizes = [1, 64], strides = [1, 1]} : vector<16x64xf32> to vector<1x64xf32>
    %259 = vector.broadcast %258 : vector<1x64xf32> to vector<16x64xf32>
    %260 = arith.mulf %259, %104 : vector<16x64xf32>
    %261 = math.exp %260 : vector<16x64xf32>
    %262 = vector.extract_strided_slice %123 {offsets = [0, 7], sizes = [16, 1], strides = [1, 1]} : vector<32x16xf32> to vector<16x1xf32>
    %263 = vector.extract_strided_slice %124 {offsets = [7, 0], sizes = [1, 64], strides = [1, 1]} : vector<16x64xf32> to vector<1x64xf32>
    %264 = vector.broadcast %262 : vector<16x1xf32> to vector<16x64xf32>
    %265 = vector.broadcast %263 : vector<1x64xf32> to vector<16x64xf32>
    %266 = arith.mulf %264, %265 : vector<16x64xf32>
    %267 = arith.mulf %261, %249 : vector<16x64xf32>
    %268 = arith.addf %267, %266 : vector<16x64xf32>
    %269 = vector.extract_strided_slice %123 {offsets = [16, 7], sizes = [16, 1], strides = [1, 1]} : vector<32x16xf32> to vector<16x1xf32>
    %270 = vector.broadcast %269 : vector<16x1xf32> to vector<16x64xf32>
    %271 = arith.mulf %270, %268 : vector<16x64xf32>
    %cst_78 = arith.constant dense<0.000000e+00> : vector<64xf32>
    %272 = vector.multi_reduction <add>, %271, %cst_78 [0] : vector<16x64xf32> to vector<64xf32>
    %273 = vector.shape_cast %272 : vector<64xf32> to vector<1x64xf32>
    %c7_i32 = arith.constant 7 : i32
    %274 = arith.addi %116, %c7_i32 : i32
    %275 = arith.index_cast %274 : i32 to index
    %c0_79 = arith.constant 0 : index
    %276 = vector.load %arg20[%275, %c0_79] : memref<16x64xf32, #tpu.memory_space<vmem>>, vector<1x64xf32>
    tpu.vector_store %arg20[%275, %c0_79], %273 {strides = array<i32>} : memref<16x64xf32, #tpu.memory_space<vmem>>, vector<1x64xf32>,
    %277 = vector.extract_strided_slice %118 {offsets = [8, 0], sizes = [1, 64], strides = [1, 1]} : vector<16x64xf32> to vector<1x64xf32>
    %278 = vector.broadcast %277 : vector<1x64xf32> to vector<16x64xf32>
    %279 = arith.mulf %278, %104 : vector<16x64xf32>
    %280 = math.exp %279 : vector<16x64xf32>
    %281 = vector.extract_strided_slice %123 {offsets = [0, 8], sizes = [16, 1], strides = [1, 1]} : vector<32x16xf32> to vector<16x1xf32>
    %282 = vector.extract_strided_slice %124 {offsets = [8, 0], sizes = [1, 64], strides = [1, 1]} : vector<16x64xf32> to vector<1x64xf32>
    %283 = vector.broadcast %281 : vector<16x1xf32> to vector<16x64xf32>
    %284 = vector.broadcast %282 : vector<1x64xf32> to vector<16x64xf32>
    %285 = arith.mulf %283, %284 : vector<16x64xf32>
    %286 = arith.mulf %280, %268 : vector<16x64xf32>
    %287 = arith.addf %286, %285 : vector<16x64xf32>
    %288 = vector.extract_strided_slice %123 {offsets = [16, 8], sizes = [16, 1], strides = [1, 1]} : vector<32x16xf32> to vector<16x1xf32>
    %289 = vector.broadcast %288 : vector<16x1xf32> to vector<16x64xf32>
    %290 = arith.mulf %289, %287 : vector<16x64xf32>
    %cst_80 = arith.constant dense<0.000000e+00> : vector<64xf32>
    %291 = vector.multi_reduction <add>, %290, %cst_80 [0] : vector<16x64xf32> to vector<64xf32>
    %292 = vector.shape_cast %291 : vector<64xf32> to vector<1x64xf32>
    %c8_i32_81 = arith.constant 8 : i32
    %293 = arith.addi %116, %c8_i32_81 : i32
    %294 = arith.index_cast %293 : i32 to index
    %c0_82 = arith.constant 0 : index
    %295 = vector.load %arg20[%294, %c0_82] : memref<16x64xf32, #tpu.memory_space<vmem>>, vector<1x64xf32>
    tpu.vector_store %arg20[%294, %c0_82], %292 {strides = array<i32>} : memref<16x64xf32, #tpu.memory_space<vmem>>, vector<1x64xf32>,
    %296 = vector.extract_strided_slice %118 {offsets = [9, 0], sizes = [1, 64], strides = [1, 1]} : vector<16x64xf32> to vector<1x64xf32>
    %297 = vector.broadcast %296 : vector<1x64xf32> to vector<16x64xf32>
    %298 = arith.mulf %297, %104 : vector<16x64xf32>
    %299 = math.exp %298 : vector<16x64xf32>
    %300 = vector.extract_strided_slice %123 {offsets = [0, 9], sizes = [16, 1], strides = [1, 1]} : vector<32x16xf32> to vector<16x1xf32>
    %301 = vector.extract_strided_slice %124 {offsets = [9, 0], sizes = [1, 64], strides = [1, 1]} : vector<16x64xf32> to vector<1x64xf32>
    %302 = vector.broadcast %300 : vector<16x1xf32> to vector<16x64xf32>
    %303 = vector.broadcast %301 : vector<1x64xf32> to vector<16x64xf32>
    %304 = arith.mulf %302, %303 : vector<16x64xf32>
    %305 = arith.mulf %299, %287 : vector<16x64xf32>
    %306 = arith.addf %305, %304 : vector<16x64xf32>
    %307 = vector.extract_strided_slice %123 {offsets = [16, 9], sizes = [16, 1], strides = [1, 1]} : vector<32x16xf32> to vector<16x1xf32>
    %308 = vector.broadcast %307 : vector<16x1xf32> to vector<16x64xf32>
    %309 = arith.mulf %308, %306 : vector<16x64xf32>
    %cst_83 = arith.constant dense<0.000000e+00> : vector<64xf32>
    %310 = vector.multi_reduction <add>, %309, %cst_83 [0] : vector<16x64xf32> to vector<64xf32>
    %311 = vector.shape_cast %310 : vector<64xf32> to vector<1x64xf32>
    %c9_i32 = arith.constant 9 : i32
    %312 = arith.addi %116, %c9_i32 : i32
    %313 = arith.index_cast %312 : i32 to index
    %c0_84 = arith.constant 0 : index
    %314 = vector.load %arg20[%313, %c0_84] : memref<16x64xf32, #tpu.memory_space<vmem>>, vector<1x64xf32>
    tpu.vector_store %arg20[%313, %c0_84], %311 {strides = array<i32>} : memref<16x64xf32, #tpu.memory_space<vmem>>, vector<1x64xf32>,
    %315 = vector.extract_strided_slice %118 {offsets = [10, 0], sizes = [1, 64], strides = [1, 1]} : vector<16x64xf32> to vector<1x64xf32>
    %316 = vector.broadcast %315 : vector<1x64xf32> to vector<16x64xf32>
    %317 = arith.mulf %316, %104 : vector<16x64xf32>
    %318 = math.exp %317 : vector<16x64xf32>
    %319 = vector.extract_strided_slice %123 {offsets = [0, 10], sizes = [16, 1], strides = [1, 1]} : vector<32x16xf32> to vector<16x1xf32>
    %320 = vector.extract_strided_slice %124 {offsets = [10, 0], sizes = [1, 64], strides = [1, 1]} : vector<16x64xf32> to vector<1x64xf32>
    %321 = vector.broadcast %319 : vector<16x1xf32> to vector<16x64xf32>
    %322 = vector.broadcast %320 : vector<1x64xf32> to vector<16x64xf32>
    %323 = arith.mulf %321, %322 : vector<16x64xf32>
    %324 = arith.mulf %318, %306 : vector<16x64xf32>
    %325 = arith.addf %324, %323 : vector<16x64xf32>
    %326 = vector.extract_strided_slice %123 {offsets = [16, 10], sizes = [16, 1], strides = [1, 1]} : vector<32x16xf32> to vector<16x1xf32>
    %327 = vector.broadcast %326 : vector<16x1xf32> to vector<16x64xf32>
    %328 = arith.mulf %327, %325 : vector<16x64xf32>
    %cst_85 = arith.constant dense<0.000000e+00> : vector<64xf32>
    %329 = vector.multi_reduction <add>, %328, %cst_85 [0] : vector<16x64xf32> to vector<64xf32>
    %330 = vector.shape_cast %329 : vector<64xf32> to vector<1x64xf32>
    %c10_i32 = arith.constant 10 : i32
    %331 = arith.addi %116, %c10_i32 : i32
    %332 = arith.index_cast %331 : i32 to index
    %c0_86 = arith.constant 0 : index
    %333 = vector.load %arg20[%332, %c0_86] : memref<16x64xf32, #tpu.memory_space<vmem>>, vector<1x64xf32>
    tpu.vector_store %arg20[%332, %c0_86], %330 {strides = array<i32>} : memref<16x64xf32, #tpu.memory_space<vmem>>, vector<1x64xf32>,
    %334 = vector.extract_strided_slice %118 {offsets = [11, 0], sizes = [1, 64], strides = [1, 1]} : vector<16x64xf32> to vector<1x64xf32>
    %335 = vector.broadcast %334 : vector<1x64xf32> to vector<16x64xf32>
    %336 = arith.mulf %335, %104 : vector<16x64xf32>
    %337 = math.exp %336 : vector<16x64xf32>
    %338 = vector.extract_strided_slice %123 {offsets = [0, 11], sizes = [16, 1], strides = [1, 1]} : vector<32x16xf32> to vector<16x1xf32>
    %339 = vector.extract_strided_slice %124 {offsets = [11, 0], sizes = [1, 64], strides = [1, 1]} : vector<16x64xf32> to vector<1x64xf32>
    %340 = vector.broadcast %338 : vector<16x1xf32> to vector<16x64xf32>
    %341 = vector.broadcast %339 : vector<1x64xf32> to vector<16x64xf32>
    %342 = arith.mulf %340, %341 : vector<16x64xf32>
    %343 = arith.mulf %337, %325 : vector<16x64xf32>
    %344 = arith.addf %343, %342 : vector<16x64xf32>
    %345 = vector.extract_strided_slice %123 {offsets = [16, 11], sizes = [16, 1], strides = [1, 1]} : vector<32x16xf32> to vector<16x1xf32>
    %346 = vector.broadcast %345 : vector<16x1xf32> to vector<16x64xf32>
    %347 = arith.mulf %346, %344 : vector<16x64xf32>
    %cst_87 = arith.constant dense<0.000000e+00> : vector<64xf32>
    %348 = vector.multi_reduction <add>, %347, %cst_87 [0] : vector<16x64xf32> to vector<64xf32>
    %349 = vector.shape_cast %348 : vector<64xf32> to vector<1x64xf32>
    %c11_i32 = arith.constant 11 : i32
    %350 = arith.addi %116, %c11_i32 : i32
    %351 = arith.index_cast %350 : i32 to index
    %c0_88 = arith.constant 0 : index
    %352 = vector.load %arg20[%351, %c0_88] : memref<16x64xf32, #tpu.memory_space<vmem>>, vector<1x64xf32>
    tpu.vector_store %arg20[%351, %c0_88], %349 {strides = array<i32>} : memref<16x64xf32, #tpu.memory_space<vmem>>, vector<1x64xf32>,
    %353 = vector.extract_strided_slice %118 {offsets = [12, 0], sizes = [1, 64], strides = [1, 1]} : vector<16x64xf32> to vector<1x64xf32>
    %354 = vector.broadcast %353 : vector<1x64xf32> to vector<16x64xf32>
    %355 = arith.mulf %354, %104 : vector<16x64xf32>
    %356 = math.exp %355 : vector<16x64xf32>
    %357 = vector.extract_strided_slice %123 {offsets = [0, 12], sizes = [16, 1], strides = [1, 1]} : vector<32x16xf32> to vector<16x1xf32>
    %358 = vector.extract_strided_slice %124 {offsets = [12, 0], sizes = [1, 64], strides = [1, 1]} : vector<16x64xf32> to vector<1x64xf32>
    %359 = vector.broadcast %357 : vector<16x1xf32> to vector<16x64xf32>
    %360 = vector.broadcast %358 : vector<1x64xf32> to vector<16x64xf32>
    %361 = arith.mulf %359, %360 : vector<16x64xf32>
    %362 = arith.mulf %356, %344 : vector<16x64xf32>
    %363 = arith.addf %362, %361 : vector<16x64xf32>
    %364 = vector.extract_strided_slice %123 {offsets = [16, 12], sizes = [16, 1], strides = [1, 1]} : vector<32x16xf32> to vector<16x1xf32>
    %365 = vector.broadcast %364 : vector<16x1xf32> to vector<16x64xf32>
    %366 = arith.mulf %365, %363 : vector<16x64xf32>
    %cst_89 = arith.constant dense<0.000000e+00> : vector<64xf32>
    %367 = vector.multi_reduction <add>, %366, %cst_89 [0] : vector<16x64xf32> to vector<64xf32>
    %368 = vector.shape_cast %367 : vector<64xf32> to vector<1x64xf32>
    %c12_i32 = arith.constant 12 : i32
    %369 = arith.addi %116, %c12_i32 : i32
    %370 = arith.index_cast %369 : i32 to index
    %c0_90 = arith.constant 0 : index
    %371 = vector.load %arg20[%370, %c0_90] : memref<16x64xf32, #tpu.memory_space<vmem>>, vector<1x64xf32>
    tpu.vector_store %arg20[%370, %c0_90], %368 {strides = array<i32>} : memref<16x64xf32, #tpu.memory_space<vmem>>, vector<1x64xf32>,
    %372 = vector.extract_strided_slice %118 {offsets = [13, 0], sizes = [1, 64], strides = [1, 1]} : vector<16x64xf32> to vector<1x64xf32>
    %373 = vector.broadcast %372 : vector<1x64xf32> to vector<16x64xf32>
    %374 = arith.mulf %373, %104 : vector<16x64xf32>
    %375 = math.exp %374 : vector<16x64xf32>
    %376 = vector.extract_strided_slice %123 {offsets = [0, 13], sizes = [16, 1], strides = [1, 1]} : vector<32x16xf32> to vector<16x1xf32>
    %377 = vector.extract_strided_slice %124 {offsets = [13, 0], sizes = [1, 64], strides = [1, 1]} : vector<16x64xf32> to vector<1x64xf32>
    %378 = vector.broadcast %376 : vector<16x1xf32> to vector<16x64xf32>
    %379 = vector.broadcast %377 : vector<1x64xf32> to vector<16x64xf32>
    %380 = arith.mulf %378, %379 : vector<16x64xf32>
    %381 = arith.mulf %375, %363 : vector<16x64xf32>
    %382 = arith.addf %381, %380 : vector<16x64xf32>
    %383 = vector.extract_strided_slice %123 {offsets = [16, 13], sizes = [16, 1], strides = [1, 1]} : vector<32x16xf32> to vector<16x1xf32>
    %384 = vector.broadcast %383 : vector<16x1xf32> to vector<16x64xf32>
    %385 = arith.mulf %384, %382 : vector<16x64xf32>
    %cst_91 = arith.constant dense<0.000000e+00> : vector<64xf32>
    %386 = vector.multi_reduction <add>, %385, %cst_91 [0] : vector<16x64xf32> to vector<64xf32>
    %387 = vector.shape_cast %386 : vector<64xf32> to vector<1x64xf32>
    %c13_i32 = arith.constant 13 : i32
    %388 = arith.addi %116, %c13_i32 : i32
    %389 = arith.index_cast %388 : i32 to index
    %c0_92 = arith.constant 0 : index
    %390 = vector.load %arg20[%389, %c0_92] : memref<16x64xf32, #tpu.memory_space<vmem>>, vector<1x64xf32>
    tpu.vector_store %arg20[%389, %c0_92], %387 {strides = array<i32>} : memref<16x64xf32, #tpu.memory_space<vmem>>, vector<1x64xf32>,
    %391 = vector.extract_strided_slice %118 {offsets = [14, 0], sizes = [1, 64], strides = [1, 1]} : vector<16x64xf32> to vector<1x64xf32>
    %392 = vector.broadcast %391 : vector<1x64xf32> to vector<16x64xf32>
    %393 = arith.mulf %392, %104 : vector<16x64xf32>
    %394 = math.exp %393 : vector<16x64xf32>
    %395 = vector.extract_strided_slice %123 {offsets = [0, 14], sizes = [16, 1], strides = [1, 1]} : vector<32x16xf32> to vector<16x1xf32>
    %396 = vector.extract_strided_slice %124 {offsets = [14, 0], sizes = [1, 64], strides = [1, 1]} : vector<16x64xf32> to vector<1x64xf32>
    %397 = vector.broadcast %395 : vector<16x1xf32> to vector<16x64xf32>
    %398 = vector.broadcast %396 : vector<1x64xf32> to vector<16x64xf32>
    %399 = arith.mulf %397, %398 : vector<16x64xf32>
    %400 = arith.mulf %394, %382 : vector<16x64xf32>
    %401 = arith.addf %400, %399 : vector<16x64xf32>
    %402 = vector.extract_strided_slice %123 {offsets = [16, 14], sizes = [16, 1], strides = [1, 1]} : vector<32x16xf32> to vector<16x1xf32>
    %403 = vector.broadcast %402 : vector<16x1xf32> to vector<16x64xf32>
    %404 = arith.mulf %403, %401 : vector<16x64xf32>
    %cst_93 = arith.constant dense<0.000000e+00> : vector<64xf32>
    %405 = vector.multi_reduction <add>, %404, %cst_93 [0] : vector<16x64xf32> to vector<64xf32>
    %406 = vector.shape_cast %405 : vector<64xf32> to vector<1x64xf32>
    %c14_i32 = arith.constant 14 : i32
    %407 = arith.addi %116, %c14_i32 : i32
    %408 = arith.index_cast %407 : i32 to index
    %c0_94 = arith.constant 0 : index
    %409 = vector.load %arg20[%408, %c0_94] : memref<16x64xf32, #tpu.memory_space<vmem>>, vector<1x64xf32>
    tpu.vector_store %arg20[%408, %c0_94], %406 {strides = array<i32>} : memref<16x64xf32, #tpu.memory_space<vmem>>, vector<1x64xf32>,
    %410 = vector.extract_strided_slice %118 {offsets = [15, 0], sizes = [1, 64], strides = [1, 1]} : vector<16x64xf32> to vector<1x64xf32>
    %411 = vector.broadcast %410 : vector<1x64xf32> to vector<16x64xf32>
    %412 = arith.mulf %411, %104 : vector<16x64xf32>
    %413 = math.exp %412 : vector<16x64xf32>
    %414 = vector.extract_strided_slice %123 {offsets = [0, 15], sizes = [16, 1], strides = [1, 1]} : vector<32x16xf32> to vector<16x1xf32>
    %415 = vector.extract_strided_slice %124 {offsets = [15, 0], sizes = [1, 64], strides = [1, 1]} : vector<16x64xf32> to vector<1x64xf32>
    %416 = vector.broadcast %414 : vector<16x1xf32> to vector<16x64xf32>
    %417 = vector.broadcast %415 : vector<1x64xf32> to vector<16x64xf32>
    %418 = arith.mulf %416, %417 : vector<16x64xf32>
    %419 = arith.mulf %413, %401 : vector<16x64xf32>
    %420 = arith.addf %419, %418 : vector<16x64xf32>
    %421 = vector.extract_strided_slice %123 {offsets = [16, 15], sizes = [16, 1], strides = [1, 1]} : vector<32x16xf32> to vector<16x1xf32>
    %422 = vector.broadcast %421 : vector<16x1xf32> to vector<16x64xf32>
    %423 = arith.mulf %422, %420 : vector<16x64xf32>
    %cst_95 = arith.constant dense<0.000000e+00> : vector<64xf32>
    %424 = vector.multi_reduction <add>, %423, %cst_95 [0] : vector<16x64xf32> to vector<64xf32>
    %425 = vector.shape_cast %424 : vector<64xf32> to vector<1x64xf32>
    %c15_i32 = arith.constant 15 : i32
    %426 = arith.addi %116, %c15_i32 : i32
    %427 = arith.index_cast %426 : i32 to index
    %c0_96 = arith.constant 0 : index
    %428 = vector.load %arg20[%427, %c0_96] : memref<16x64xf32, #tpu.memory_space<vmem>>, vector<1x64xf32>
    tpu.vector_store %arg20[%427, %c0_96], %425 {strides = array<i32>} : memref<16x64xf32, #tpu.memory_space<vmem>>, vector<1x64xf32>,
    %429 = arith.index_cast %116 : i32 to index
    %c0_97 = arith.constant 0 : index
    %430 = vector.load %arg19[%429, %c0_97] : memref<16x64xf32, #tpu.memory_space<vmem>>, vector<16x64xf32>
    %431 = arith.index_cast %116 : i32 to index
    %c0_98 = arith.constant 0 : index
    %432 = vector.load %arg20[%431, %c0_98] : memref<16x64xf32, #tpu.memory_space<vmem>>, vector<16x64xf32>
    %433 = vector.broadcast %105 : vector<1x64xf32> to vector<16x64xf32>
    %434 = arith.mulf %433, %120 : vector<16x64xf32>
    %435 = arith.addf %432, %434 : vector<16x64xf32>
    %436 = arith.mulf %435, %430 : vector<16x64xf32>
    %437 = arith.index_cast %116 : i32 to index
    %c0_99 = arith.constant 0 : index
    %438 = vector.load %arg20[%437, %c0_99] : memref<16x64xf32, #tpu.memory_space<vmem>>, vector<16x64xf32>
    tpu.vector_store %arg20[%437, %c0_99], %436 {strides = array<i32>} : memref<16x64xf32, #tpu.memory_space<vmem>>, vector<16x64xf32>,
    %c1_i32_100 = arith.constant 1 : i32
    %c0_101 = arith.constant 0 : index
    %c0_102 = arith.constant 0 : index
    %439 = vector.load %arg23[%c0_101, %c0_102] : memref<16x64xf32, #tpu.memory_space<vmem>>, vector<16x64xf32>
    tpu.vector_store %arg23[%c0_101, %c0_102], %420 {strides = array<i32>} : memref<16x64xf32, #tpu.memory_space<vmem>>, vector<16x64xf32>,
    %c0_i32_103 = arith.constant 0 : i32
    %440 = arith.cmpi eq, %arg1, %c0_i32_103 : i32
    %441 = arith.extui %440 : i1 to i32
    %c0_i32_104 = arith.constant 0 : i32
    %442 = arith.cmpi ne, %441, %c0_i32_104 : i32
    scf.if %442 {
      %c0_113 = arith.constant 0 : index
      %c0_114 = arith.constant 0 : index
      %450 = vector.load %arg23[%c0_113, %c0_114] : memref<16x64xf32, #tpu.memory_space<vmem>>, vector<16x64xf32>
      %c0_115 = arith.constant 0 : index
      %c0_116 = arith.constant 0 : index
      %c0_117 = arith.constant 0 : index
      %451 = vector.load %arg16[%c0_115, %c0_116, %c0_117] : memref<1x16x64xf32, #tpu.memory_space<vmem>>, vector<1x16x64xf32>
      %452 = vector.shape_cast %451 : vector<1x16x64xf32> to vector<16x64xf32>
      %453 = vector.shape_cast %450 : vector<16x64xf32> to vector<1x16x64xf32>
      tpu.vector_store %arg16[%c0_115, %c0_116, %c0_117], %453 {strides = array<i32>} : memref<1x16x64xf32, #tpu.memory_space<vmem>>, vector<1x16x64xf32>,
    } else {
    }
    %c0_105 = arith.constant 0 : index
    %c0_106 = arith.constant 0 : index
    %443 = vector.load %arg20[%c0_105, %c0_106] : memref<16x64xf32, #tpu.memory_space<vmem>>, vector<16x64xf32>
    %444 = arith.truncf %443 : vector<16x64xf32> to vector<16x64xbf16>
    %c0_107 = arith.constant 0 : index
    %c0_108 = arith.constant 0 : index
    %445 = vector.load %arg14[%c0_107, %c0_108] : memref<64x32xbf16, #tpu.memory_space<vmem>>, vector<64x32xbf16>
    %cst_109 = arith.constant dense<0.000000e+00> : vector<16x32xf32>
    %446 = tpu.matmul %444, %445, %cst_109 {dimension_numbers = #tpu.dot_dimension_numbers<[1], [0], [0], [1], [0, 0, 1, 1], [], []>} : vector<16x64xbf16>, vector<64x32xbf16>, vector<16x32xf32> -> vector<16x32xf32>
    %c0_110 = arith.constant 0 : index
    %c0_111 = arith.constant 0 : index
    %c0_112 = arith.constant 0 : index
    %447 = vector.load %arg15[%c0_110, %c0_111, %c0_112] : memref<1x16x32xf32, #tpu.memory_space<vmem>>, vector<1x16x32xf32>
    %448 = vector.shape_cast %447 : vector<1x16x32xf32> to vector<16x32xf32>
    %449 = vector.shape_cast %446 : vector<16x32xf32> to vector<1x16x32xf32>
    tpu.vector_store %arg15[%c0_110, %c0_111, %c0_112], %449 {strides = array<i32>} : memref<1x16x32xf32, #tpu.memory_space<vmem>>, vector<1x16x32xf32>,
    return
  }
  func.func @transform_0(%arg0: i32, %arg1: i32) -> (i32, i32, i32) {
    %c0_i32 = arith.constant 0 : i32
    %c0_i32_0 = arith.constant 0 : i32
    return %arg0, %arg1, %c0_i32 : i32, i32, i32
  }
  func.func @transform_1(%arg0: i32, %arg1: i32) -> (i32, i32, i32) {
    %c0_i32 = arith.constant 0 : i32
    %c0_i32_0 = arith.constant 0 : i32
    %c0_i32_1 = arith.constant 0 : i32
    return %arg0, %c0_i32, %c0_i32_0 : i32, i32, i32
  }
  func.func @transform_2(%arg0: i32, %arg1: i32) -> (i32, i32) {
    %c0_i32 = arith.constant 0 : i32
    %c0_i32_0 = arith.constant 0 : i32
    %c0_i32_1 = arith.constant 0 : i32
    return %c0_i32, %c0_i32_0 : i32, i32
  }
  func.func @transform_3(%arg0: i32, %arg1: i32) -> (i32, i32) {
    %c0_i32 = arith.constant 0 : i32
    %c0_i32_0 = arith.constant 0 : i32
    %c0_i32_1 = arith.constant 0 : i32
    return %c0_i32, %c0_i32_0 : i32, i32
  }
  func.func @transform_4(%arg0: i32, %arg1: i32) -> (i32, i32) {
    %c0_i32 = arith.constant 0 : i32
    %c0_i32_0 = arith.constant 0 : i32
    %c0_i32_1 = arith.constant 0 : i32
    return %c0_i32, %c0_i32_0 : i32, i32
  }
  func.func @transform_5(%arg0: i32, %arg1: i32) -> (i32, i32) {
    %c0_i32 = arith.constant 0 : i32
    %c0_i32_0 = arith.constant 0 : i32
    %c0_i32_1 = arith.constant 0 : i32
    return %c0_i32, %c0_i32_0 : i32, i32
  }
  func.func @transform_6(%arg0: i32, %arg1: i32) -> (i32, i32) {
    %c0_i32 = arith.constant 0 : i32
    %c0_i32_0 = arith.constant 0 : i32
    %c0_i32_1 = arith.constant 0 : i32
    return %c0_i32, %c0_i32_0 : i32, i32
  }
  func.func @transform_7(%arg0: i32, %arg1: i32) -> (i32, i32) {
    %c0_i32 = arith.constant 0 : i32
    %c0_i32_0 = arith.constant 0 : i32
    %c0_i32_1 = arith.constant 0 : i32
    return %c0_i32, %c0_i32_0 : i32, i32
  }
  func.func @transform_8(%arg0: i32, %arg1: i32) -> (i32, i32) {
    %c0_i32 = arith.constant 0 : i32
    %c0_i32_0 = arith.constant 0 : i32
    %c0_i32_1 = arith.constant 0 : i32
    return %c0_i32, %c0_i32_0 : i32, i32
  }
  func.func @transform_9(%arg0: i32, %arg1: i32) -> (i32, i32) {
    %c0_i32 = arith.constant 0 : i32
    %c0_i32_0 = arith.constant 0 : i32
    %c0_i32_1 = arith.constant 0 : i32
    return %c0_i32, %c0_i32_0 : i32, i32
  }
  func.func @transform_10(%arg0: i32, %arg1: i32) -> (i32, i32) {
    %c0_i32 = arith.constant 0 : i32
    %c0_i32_0 = arith.constant 0 : i32
    %c0_i32_1 = arith.constant 0 : i32
    return %c0_i32, %c0_i32_0 : i32, i32
  }
  func.func @transform_11(%arg0: i32, %arg1: i32) -> (i32, i32) {
    %c0_i32 = arith.constant 0 : i32
    %c0_i32_0 = arith.constant 0 : i32
    %c0_i32_1 = arith.constant 0 : i32
    return %c0_i32, %c0_i32_0 : i32, i32
  }
  func.func @transform_12(%arg0: i32, %arg1: i32) -> (i32, i32) {
    %c0_i32 = arith.constant 0 : i32
    %c0_i32_0 = arith.constant 0 : i32
    %c0_i32_1 = arith.constant 0 : i32
    return %c0_i32, %c0_i32_0 : i32, i32
  }
  func.func @transform_13(%arg0: i32, %arg1: i32) -> (i32, i32, i32) {
    %c0_i32 = arith.constant 0 : i32
    %c0_i32_0 = arith.constant 0 : i32
    return %arg0, %arg1, %c0_i32 : i32, i32, i32
  }
  func.func @transform_14(%arg0: i32, %arg1: i32) -> (i32, i32, i32) {
    %c0_i32 = arith.constant 0 : i32
    %c0_i32_0 = arith.constant 0 : i32
    %c0_i32_1 = arith.constant 0 : i32
    return %arg0, %c0_i32, %c0_i32_0 : i32, i32, i32
  }
}

</mosaic_0001>

<llo_original>
// kernel: tpu_custom_call.1
$region0: #{tpu_custom_call.1}
  #allocation0 [shape = 'u32[]', space=smem, size = 0x4, offset = 0x4, fixed_abs, tag = 'smem constant byte address 0x4 - core index']
  #allocation1 [shape = 'u32[144,128]{1,0:T(1,128)}', space=vmem, size = 0x12000, scoped, tag = 'internal scratch']
  #allocation2 [shape = 'f32[16,64]{1,0:T(8,128)}', space=vmem, size = 0x2000, scoped, tag = 'scratch operand']
  #allocation3 [shape = 'f32[16,64]{1,0:T(8,128)}', space=vmem, size = 0x2000, scoped, tag = 'scratch operand']
  #allocation4 [shape = 'f32[16,64]{1,0:T(8,128)}', space=vmem, size = 0x2000, scoped, tag = 'scratch operand']
  #allocation5 [shape = 'f32[16,64]{1,0:T(8,128)}', space=vmem, size = 0x2000, scoped, tag = 'scratch operand']
  #allocation6 [shape = 'f32[16,32]{1,0:T(8,128)}', space=vmem, size = 0x2000, scoped, tag = 'scratch operand']
  #allocation7 [shape = 'f32[24,64]{1,0:T(8,128)}', space=vmem, size = 0x3000, scoped, tag = 'scratch operand']
  #allocation8 [shape = 'f32[16,64]{1,0:T(8,128)}', space=vmem, size = 0x2000, scoped, tag = 'scratch operand']
  %s0 = inlined_call_operand.vmem [shape: f32[2,16,32], index: 0, kind: input, shape index: {}]
  %s1 = inlined_call_operand.vmem [shape: f32[2,16,64], index: 1, kind: input, shape index: {}]
  %s2 = inlined_call_operand.vmem [shape: f32[1,32], index: 2, kind: input, shape index: {}]
  %s3 = inlined_call_operand.vmem [shape: f32[1,32], index: 3, kind: input, shape index: {}]
  %s4 = inlined_call_operand.vmem [shape: bf16[32,128], index: 4, kind: input, shape index: {}]
  %s5 = inlined_call_operand.vmem [shape: f32[4,64], index: 5, kind: input, shape index: {}]
  %s6 = inlined_call_operand.vmem [shape: f32[1,64], index: 6, kind: input, shape index: {}]
  %s7 = inlined_call_operand.vmem [shape: bf16[64,160], index: 7, kind: input, shape index: {}]
  %s8 = inlined_call_operand.vmem [shape: f32[128,64], index: 8, kind: input, shape index: {}]
  %s9 = inlined_call_operand.vmem [shape: f32[1,64], index: 9, kind: input, shape index: {}]
  %s10 = inlined_call_operand.vmem [shape: f32[16,64], index: 10, kind: input, shape index: {}]
  %s11 = inlined_call_operand.vmem [shape: f32[1,64], index: 11, kind: input, shape index: {}]
  %s12 = inlined_call_operand.vmem [shape: bf16[64,32], index: 12, kind: input, shape index: {}]
  %s13 = inlined_call_operand.hbm [shape: f32[2,16,32], index: 13, kind: output, shape index: {0}]
  %s14 = inlined_call_operand.hbm [shape: f32[2,16,64], index: 14, kind: output, shape index: {1}]
  %15 = xla_tuple %s13, %s14
  %s16 = sld [smem:[#allocation0]]
  $region109: #{tpu_custom_call.1} parent=0
    _
  %s18 = ssub.s32 1, %s16
  %s19 = scalar_select 0, %s18, %s16
  $region1: #{tpu_custom_call.1} parent=0
    #allocation9 [shape = 'u8[16384]{0}', space=vmem, size = 0x4000, scoped, tag = 'output window, operand 0']
    #allocation10 [shape = 's32[2]{0}', space=sflag, size = 0x8, scoped, tag = 'scoped memory for tpu_custom_call.1']
    #allocation11 [shape = 'u8[16384]{0}', space=vmem, size = 0x4000, scoped, tag = 'output window, operand 1']
    #allocation12 [shape = 's32[2]{0}', space=sflag, size = 0x8, scoped, tag = 'scoped memory for tpu_custom_call.1']
    %20 = vsyncpa [#allocation10], 0
    %s21 = scalar_lea.sflag [#allocation10], 1
    %22 = vsyncpa %s21, 0
    %23 = vsyncpa [#allocation12], 0
    %s24 = scalar_lea.sflag [#allocation12], 1
    %25 = vsyncpa %s24, 0
    loop: start=0, step=1, limit=4
    $region2: #{tpu_custom_call.1} parent=1 // loop_pre_header
      _
    $region3: #{tpu_custom_call.1} parent=1 // loop_header
      %s27 = sphi 0, %s31
      %p28 = scmp.ge.s32.totalorder %s27, 4
      %s34 = sphi 0, %s46
      %s35 = sphi 0, %s42
      %s36 = sphi 0, %s34
      %s37 = sphi 0, %s35
      %s38 = sphi 0, %s36
      %s39 = sphi 0, %s37
      %s51 = sphi 0, %s53
      %s54 = sphi 0, %s51
      %s55 = sphi 0, %s54
      %s71 = sphi 0, %s55
      %s77 = sphi 0, %s79
      %s80 = sphi 0, %s77
      %s81 = sphi 0, %s80
      %s97 = sphi 0, %s81
      %s101 = sphi 0, %s101
      %s103 = sphi 0, %s101
      %s104 = sphi 0, %s103
      %s118 = sphi 0, %s104
      %s122 = sphi 0, %s122
      %s124 = sphi 0, %s122
      %s125 = sphi 0, %s124
      %s139 = sphi 0, %s125
      %s143 = sphi 0, %s143
      %s145 = sphi 0, %s143
      %s146 = sphi 0, %s145
      %s160 = sphi 0, %s146
      %s164 = sphi 0, %s164
      %s166 = sphi 0, %s164
      %s167 = sphi 0, %s166
      %s181 = sphi 0, %s167
      %s185 = sphi 0, %s185
      %s187 = sphi 0, %s185
      %s188 = sphi 0, %s187
      %s202 = sphi 0, %s188
      %s206 = sphi 0, %s206
      %s208 = sphi 0, %s206
      %s209 = sphi 0, %s208
      %s223 = sphi 0, %s209
      %s227 = sphi 0, %s227
      %s229 = sphi 0, %s227
      %s230 = sphi 0, %s229
      %s244 = sphi 0, %s230
      %s248 = sphi 0, %s248
      %s250 = sphi 0, %s248
      %s251 = sphi 0, %s250
      %s265 = sphi 0, %s251
      %s269 = sphi 0, %s269
      %s271 = sphi 0, %s269
      %s272 = sphi 0, %s271
      %s286 = sphi 0, %s272
      %s290 = sphi 0, %s290
      %s292 = sphi 0, %s290
      %s293 = sphi 0, %s292
      %s307 = sphi 0, %s293
      %s311 = sphi 0, %s311
      %s313 = sphi 0, %s311
      %s314 = sphi 0, %s313
      %s328 = sphi 0, %s314
      %s336 = sphi 0, %s338
      %s339 = sphi 0, %s336
      %s340 = sphi 0, %s339
      %s356 = sphi 0, %s340
      %s362 = sphi 0, %s364
      %s365 = sphi 0, %s362
      %s366 = sphi 0, %s365
      %s382 = sphi 0, %s366
    $region4: #{tpu_custom_call.1} parent=1 // loop_header_branch
      %30 = sbr.rel (%p28) target = $region8
    $region5: #{tpu_custom_call.1} parent=1 // loop_body
      %s32 = ssub.s32 %s27, 1
      %s33 = ssub.s32 %s27, 2
      %s40 = sadd.s32 1, %s35
      %p41 = scmp.ge.s32.totalorder %s40, 1
      %s42 = scalar_select %p41, 0, %s40
      %s43 = sadd.s32 1, %s34
      %s44 = scalar_select %p41, %s43, %s34
      %p45 = scmp.ge.s32.totalorder %s44, 2
      %s46 = scalar_select %p45, 0, %s44
      %s47 = ssub.s32 %s34, %s46
      %s48 = ssub.s32 %s35, %s42
      %s49 = sor.u32 %s47, %s48
      %p50 = scmp.eq.s32.totalorder %s49, 0
      %s52 = sadd.s32 %s51, 1
      %s53 = scalar_select %p50, %s51, %s52
      %p56 = pneg %p50
      %p57 = scmp.eq.s32.totalorder %s27, 1
      %p58 = por %p56, %p57
      %p59 = scmp.ne.s32.totalorder %s51, %s54
      %p60 = scmp.eq.s32.totalorder %s27, 0
      %p61 = por %p59, %p60
      %p62 = scmp.ne.s32.totalorder %s51, %s54
      %p63 = scmp.eq.s32.totalorder %s32, 1
      %p64 = por %p62, %p63
      %p65 = scmp.ne.s32.totalorder %s54, %s55
      %p66 = scmp.eq.s32.totalorder %s32, 0
      %p67 = por %p65, %p66
      %p68 = scmp.ne.s32.totalorder %s54, %s55
      %p69 = scmp.eq.s32.totalorder %s33, 1
      %p70 = por %p68, %p69
      %p72 = scmp.ne.s32.totalorder %s55, %s71
      %p73 = scmp.eq.s32.totalorder %s33, 0
      %p74 = por %p72, %p73
      %s75 = ssub.s32 %s34, %s46
      %p76 = scmp.eq.s32.totalorder %s75, 0
      %s78 = sadd.s32 %s77, 1
      %s79 = scalar_select %p76, %s77, %s78
      %p82 = pneg %p76
      %p83 = scmp.eq.s32.totalorder %s27, 1
      %p84 = por %p82, %p83
      %p85 = scmp.ne.s32.totalorder %s77, %s80
      %p86 = scmp.eq.s32.totalorder %s27, 0
      %p87 = por %p85, %p86
      %p88 = scmp.ne.s32.totalorder %s77, %s80
      %p89 = scmp.eq.s32.totalorder %s32, 1
      %p90 = por %p88, %p89
      %p91 = scmp.ne.s32.totalorder %s80, %s81
      %p92 = scmp.eq.s32.totalorder %s32, 0
      %p93 = por %p91, %p92
      %p94 = scmp.ne.s32.totalorder %s80, %s81
      %p95 = scmp.eq.s32.totalorder %s33, 1
      %p96 = por %p94, %p95
      %p98 = scmp.ne.s32.totalorder %s81, %s97
      %p99 = scmp.eq.s32.totalorder %s33, 0
      %p100 = por %p98, %p99
      %s102 = sadd.s32 %s101, 1
      %p105 = scmp.eq.s32.totalorder %s27, 1
      %p106 = scmp.ne.s32.totalorder %s101, %s103
      %p107 = scmp.eq.s32.totalorder %s27, 0
      %p108 = por %p106, %p107
      %p109 = scmp.ne.s32.totalorder %s101, %s103
      %p110 = scmp.eq.s32.totalorder %s32, 1
      %p111 = por %p109, %p110
      %p112 = scmp.ne.s32.totalorder %s103, %s104
      %p113 = scmp.eq.s32.totalorder %s32, 0
      %p114 = por %p112, %p113
      %p115 = scmp.ne.s32.totalorder %s103, %s104
      %p116 = scmp.eq.s32.totalorder %s33, 1
      %p117 = por %p115, %p116
      %p119 = scmp.ne.s32.totalorder %s104, %s118
      %p120 = scmp.eq.s32.totalorder %s33, 0
      %p121 = por %p119, %p120
      %s123 = sadd.s32 %s122, 1
      %p126 = scmp.eq.s32.totalorder %s27, 1
      %p127 = scmp.ne.s32.totalorder %s122, %s124
      %p128 = scmp.eq.s32.totalorder %s27, 0
      %p129 = por %p127, %p128
      %p130 = scmp.ne.s32.totalorder %s122, %s124
      %p131 = scmp.eq.s32.totalorder %s32, 1
      %p132 = por %p130, %p131
      %p133 = scmp.ne.s32.totalorder %s124, %s125
      %p134 = scmp.eq.s32.totalorder %s32, 0
      %p135 = por %p133, %p134
      %p136 = scmp.ne.s32.totalorder %s124, %s125
      %p137 = scmp.eq.s32.totalorder %s33, 1
      %p138 = por %p136, %p137
      %p140 = scmp.ne.s32.totalorder %s125, %s139
      %p141 = scmp.eq.s32.totalorder %s33, 0
      %p142 = por %p140, %p141
      %s144 = sadd.s32 %s143, 1
      %p147 = scmp.eq.s32.totalorder %s27, 1
      %p148 = scmp.ne.s32.totalorder %s143, %s145
      %p149 = scmp.eq.s32.totalorder %s27, 0
      %p150 = por %p148, %p149
      %p151 = scmp.ne.s32.totalorder %s143, %s145
      %p152 = scmp.eq.s32.totalorder %s32, 1
      %p153 = por %p151, %p152
      %p154 = scmp.ne.s32.totalorder %s145, %s146
      %p155 = scmp.eq.s32.totalorder %s32, 0
      %p156 = por %p154, %p155
      %p157 = scmp.ne.s32.totalorder %s145, %s146
      %p158 = scmp.eq.s32.totalorder %s33, 1
      %p159 = por %p157, %p158
      %p161 = scmp.ne.s32.totalorder %s146, %s160
      %p162 = scmp.eq.s32.totalorder %s33, 0
      %p163 = por %p161, %p162
      %s165 = sadd.s32 %s164, 1
      %p168 = scmp.eq.s32.totalorder %s27, 1
      %p169 = scmp.ne.s32.totalorder %s164, %s166
      %p170 = scmp.eq.s32.totalorder %s27, 0
      %p171 = por %p169, %p170
      %p172 = scmp.ne.s32.totalorder %s164, %s166
      %p173 = scmp.eq.s32.totalorder %s32, 1
      %p174 = por %p172, %p173
      %p175 = scmp.ne.s32.totalorder %s166, %s167
      %p176 = scmp.eq.s32.totalorder %s32, 0
      %p177 = por %p175, %p176
      %p178 = scmp.ne.s32.totalorder %s166, %s167
      %p179 = scmp.eq.s32.totalorder %s33, 1
      %p180 = por %p178, %p179
      %p182 = scmp.ne.s32.totalorder %s167, %s181
      %p183 = scmp.eq.s32.totalorder %s33, 0
      %p184 = por %p182, %p183
      %s186 = sadd.s32 %s185, 1
      %p189 = scmp.eq.s32.totalorder %s27, 1
      %p190 = scmp.ne.s32.totalorder %s185, %s187
      %p191 = scmp.eq.s32.totalorder %s27, 0
      %p192 = por %p190, %p191
      %p193 = scmp.ne.s32.totalorder %s185, %s187
      %p194 = scmp.eq.s32.totalorder %s32, 1
      %p195 = por %p193, %p194
      %p196 = scmp.ne.s32.totalorder %s187, %s188
      %p197 = scmp.eq.s32.totalorder %s32, 0
      %p198 = por %p196, %p197
      %p199 = scmp.ne.s32.totalorder %s187, %s188
      %p200 = scmp.eq.s32.totalorder %s33, 1
      %p201 = por %p199, %p200
      %p203 = scmp.ne.s32.totalorder %s188, %s202
      %p204 = scmp.eq.s32.totalorder %s33, 0
      %p205 = por %p203, %p204
      %s207 = sadd.s32 %s206, 1
      %p210 = scmp.eq.s32.totalorder %s27, 1
      %p211 = scmp.ne.s32.totalorder %s206, %s208
      %p212 = scmp.eq.s32.totalorder %s27, 0
      %p213 = por %p211, %p212
      %p214 = scmp.ne.s32.totalorder %s206, %s208
      %p215 = scmp.eq.s32.totalorder %s32, 1
      %p216 = por %p214, %p215
      %p217 = scmp.ne.s32.totalorder %s208, %s209
      %p218 = scmp.eq.s32.totalorder %s32, 0
      %p219 = por %p217, %p218
      %p220 = scmp.ne.s32.totalorder %s208, %s209
      %p221 = scmp.eq.s32.totalorder %s33, 1
      %p222 = por %p220, %p221
      %p224 = scmp.ne.s32.totalorder %s209, %s223
      %p225 = scmp.eq.s32.totalorder %s33, 0
      %p226 = por %p224, %p225
      %s228 = sadd.s32 %s227, 1
      %p231 = scmp.eq.s32.totalorder %s27, 1
      %p232 = scmp.ne.s32.totalorder %s227, %s229
      %p233 = scmp.eq.s32.totalorder %s27, 0
      %p234 = por %p232, %p233
      %p235 = scmp.ne.s32.totalorder %s227, %s229
      %p236 = scmp.eq.s32.totalorder %s32, 1
      %p237 = por %p235, %p236
      %p238 = scmp.ne.s32.totalorder %s229, %s230
      %p239 = scmp.eq.s32.totalorder %s32, 0
      %p240 = por %p238, %p239
      %p241 = scmp.ne.s32.totalorder %s229, %s230
      %p242 = scmp.eq.s32.totalorder %s33, 1
      %p243 = por %p241, %p242
      %p245 = scmp.ne.s32.totalorder %s230, %s244
      %p246 = scmp.eq.s32.totalorder %s33, 0
      %p247 = por %p245, %p246
      %s249 = sadd.s32 %s248, 1
      %p252 = scmp.eq.s32.totalorder %s27, 1
      %p253 = scmp.ne.s32.totalorder %s248, %s250
      %p254 = scmp.eq.s32.totalorder %s27, 0
      %p255 = por %p253, %p254
      %p256 = scmp.ne.s32.totalorder %s248, %s250
      %p257 = scmp.eq.s32.totalorder %s32, 1
      %p258 = por %p256, %p257
      %p259 = scmp.ne.s32.totalorder %s250, %s251
      %p260 = scmp.eq.s32.totalorder %s32, 0
      %p261 = por %p259, %p260
      %p262 = scmp.ne.s32.totalorder %s250, %s251
      %p263 = scmp.eq.s32.totalorder %s33, 1
      %p264 = por %p262, %p263
      %p266 = scmp.ne.s32.totalorder %s251, %s265
      %p267 = scmp.eq.s32.totalorder %s33, 0
      %p268 = por %p266, %p267
      %s270 = sadd.s32 %s269, 1
      %p273 = scmp.eq.s32.totalorder %s27, 1
      %p274 = scmp.ne.s32.totalorder %s269, %s271
      %p275 = scmp.eq.s32.totalorder %s27, 0
      %p276 = por %p274, %p275
      %p277 = scmp.ne.s32.totalorder %s269, %s271
      %p278 = scmp.eq.s32.totalorder %s32, 1
      %p279 = por %p277, %p278
      %p280 = scmp.ne.s32.totalorder %s271, %s272
      %p281 = scmp.eq.s32.totalorder %s32, 0
      %p282 = por %p280, %p281
      %p283 = scmp.ne.s32.totalorder %s271, %s272
      %p284 = scmp.eq.s32.totalorder %s33, 1
      %p285 = por %p283, %p284
      %p287 = scmp.ne.s32.totalorder %s272, %s286
      %p288 = scmp.eq.s32.totalorder %s33, 0
      %p289 = por %p287, %p288
      %s291 = sadd.s32 %s290, 1
      %p294 = scmp.eq.s32.totalorder %s27, 1
      %p295 = scmp.ne.s32.totalorder %s290, %s292
      %p296 = scmp.eq.s32.totalorder %s27, 0
      %p297 = por %p295, %p296
      %p298 = scmp.ne.s32.totalorder %s290, %s292
      %p299 = scmp.eq.s32.totalorder %s32, 1
      %p300 = por %p298, %p299
      %p301 = scmp.ne.s32.totalorder %s292, %s293
      %p302 = scmp.eq.s32.totalorder %s32, 0
      %p303 = por %p301, %p302
      %p304 = scmp.ne.s32.totalorder %s292, %s293
      %p305 = scmp.eq.s32.totalorder %s33, 1
      %p306 = por %p304, %p305
      %p308 = scmp.ne.s32.totalorder %s293, %s307
      %p309 = scmp.eq.s32.totalorder %s33, 0
      %p310 = por %p308, %p309
      %s312 = sadd.s32 %s311, 1
      %p315 = scmp.eq.s32.totalorder %s27, 1
      %p316 = scmp.ne.s32.totalorder %s311, %s313
      %p317 = scmp.eq.s32.totalorder %s27, 0
      %p318 = por %p316, %p317
      %p319 = scmp.ne.s32.totalorder %s311, %s313
      %p320 = scmp.eq.s32.totalorder %s32, 1
      %p321 = por %p319, %p320
      %p322 = scmp.ne.s32.totalorder %s313, %s314
      %p323 = scmp.eq.s32.totalorder %s32, 0
      %p324 = por %p322, %p323
      %p325 = scmp.ne.s32.totalorder %s313, %s314
      %p326 = scmp.eq.s32.totalorder %s33, 1
      %p327 = por %p325, %p326
      %p329 = scmp.ne.s32.totalorder %s314, %s328
      %p330 = scmp.eq.s32.totalorder %s33, 0
      %p331 = por %p329, %p330
      %s332 = ssub.s32 %s34, %s46
      %s333 = ssub.s32 %s35, %s42
      %s334 = sor.u32 %s332, %s333
      %p335 = scmp.eq.s32.totalorder %s334, 0
      %s337 = sadd.s32 %s336, 1
      %s338 = scalar_select %p335, %s336, %s337
      %p341 = pneg %p335
      %p342 = scmp.eq.s32.totalorder %s27, 1
      %p343 = por %p341, %p342
      %p344 = scmp.ne.s32.totalorder %s336, %s339
      %p345 = scmp.eq.s32.totalorder %s27, 0
      %p346 = por %p344, %p345
      %p347 = scmp.ne.s32.totalorder %s336, %s339
      %p348 = scmp.eq.s32.totalorder %s32, 1
      %p349 = por %p347, %p348
      %p350 = scmp.ne.s32.totalorder %s339, %s340
      %p351 = scmp.eq.s32.totalorder %s32, 0
      %p352 = por %p350, %p351
      %p353 = scmp.ne.s32.totalorder %s339, %s340
      %p354 = scmp.eq.s32.totalorder %s33, 1
      %p355 = por %p353, %p354
      %p357 = scmp.ne.s32.totalorder %s340, %s356
      %p358 = scmp.eq.s32.totalorder %s33, 0
      %p359 = por %p357, %p358
      %s360 = ssub.s32 %s34, %s46
      %p361 = scmp.eq.s32.totalorder %s360, 0
      %s363 = sadd.s32 %s362, 1
      %s364 = scalar_select %p361, %s362, %s363
      %p367 = pneg %p361
      %p368 = scmp.eq.s32.totalorder %s27, 1
      %p369 = por %p367, %p368
      %p370 = scmp.ne.s32.totalorder %s362, %s365
      %p371 = scmp.eq.s32.totalorder %s27, 0
      %p372 = por %p370, %p371
      %p373 = scmp.ne.s32.totalorder %s362, %s365
      %p374 = scmp.eq.s32.totalorder %s32, 1
      %p375 = por %p373, %p374
      %p376 = scmp.ne.s32.totalorder %s365, %s366
      %p377 = scmp.eq.s32.totalorder %s32, 0
      %p378 = por %p376, %p377
      %p379 = scmp.ne.s32.totalorder %s365, %s366
      %p380 = scmp.eq.s32.totalorder %s33, 1
      %p381 = por %p379, %p380
      %p383 = scmp.ne.s32.totalorder %s366, %s382
      %p384 = scmp.eq.s32.totalorder %s33, 0
      %p385 = por %p383, %p384
      %p386 = scmp.le.s32.totalorder 1, %s27
      %p387 = scmp.lt.s32.totalorder %s27, 3
      %p388 = pnand %p386, %p387
      %p389 = pneg %p388
      // Predicated region
      $region9: #{tpu_custom_call.1} parent=5 // pred_check
        _
      $region10: #{tpu_custom_call.1} parent=5 // pred_check_branch
        %391 = sbr.rel (%p388) target = $region12
      $region11: #{tpu_custom_call.1} parent=5 // pred_region
        %s392 = ssub.s32 %s27, 1
        // Predicated region
        $region13: #{tpu_custom_call.1} parent=11 // pred_check
          %p393 = pneg %p114
        $region14: #{tpu_custom_call.1} parent=11 // pred_check_branch
          %395 = sbr.rel (%p393) target = $region16
        $region15: #{tpu_custom_call.1} parent=11 // pred_region
          _
        $region16: #{tpu_custom_call.1} parent=11 // pred_fallthru
          _
        // Predicated region
        $region17: #{tpu_custom_call.1} parent=11 // pred_check
          %p396 = pneg %p135
        $region18: #{tpu_custom_call.1} parent=11 // pred_check_branch
          %398 = sbr.rel (%p396) target = $region20
        $region19: #{tpu_custom_call.1} parent=11 // pred_region
          _
        $region20: #{tpu_custom_call.1} parent=11 // pred_fallthru
          _
        // Predicated region
        $region21: #{tpu_custom_call.1} parent=11 // pred_check
          %p399 = pneg %p156
        $region22: #{tpu_custom_call.1} parent=11 // pred_check_branch
          %401 = sbr.rel (%p399) target = $region24
        $region23: #{tpu_custom_call.1} parent=11 // pred_region
          _
        $region24: #{tpu_custom_call.1} parent=11 // pred_fallthru
          _
        // Predicated region
        $region25: #{tpu_custom_call.1} parent=11 // pred_check
          %p402 = pneg %p177
        $region26: #{tpu_custom_call.1} parent=11 // pred_check_branch
          %404 = sbr.rel (%p402) target = $region28
        $region27: #{tpu_custom_call.1} parent=11 // pred_region
          _
        $region28: #{tpu_custom_call.1} parent=11 // pred_fallthru
          _
        // Predicated region
        $region29: #{tpu_custom_call.1} parent=11 // pred_check
          %p405 = pneg %p198
        $region30: #{tpu_custom_call.1} parent=11 // pred_check_branch
          %407 = sbr.rel (%p405) target = $region32
        $region31: #{tpu_custom_call.1} parent=11 // pred_region
          _
        $region32: #{tpu_custom_call.1} parent=11 // pred_fallthru
          _
        // Predicated region
        $region33: #{tpu_custom_call.1} parent=11 // pred_check
          %p408 = pneg %p219
        $region34: #{tpu_custom_call.1} parent=11 // pred_check_branch
          %410 = sbr.rel (%p408) target = $region36
        $region35: #{tpu_custom_call.1} parent=11 // pred_region
          _
        $region36: #{tpu_custom_call.1} parent=11 // pred_fallthru
          _
        // Predicated region
        $region37: #{tpu_custom_call.1} parent=11 // pred_check
          %p411 = pneg %p240
        $region38: #{tpu_custom_call.1} parent=11 // pred_check_branch
          %413 = sbr.rel (%p411) target = $region40
        $region39: #{tpu_custom_call.1} parent=11 // pred_region
          _
        $region40: #{tpu_custom_call.1} parent=11 // pred_fallthru
          _
        // Predicated region
        $region41: #{tpu_custom_call.1} parent=11 // pred_check
          %p414 = pneg %p261
        $region42: #{tpu_custom_call.1} parent=11 // pred_check_branch
          %416 = sbr.rel (%p414) target = $region44
        $region43: #{tpu_custom_call.1} parent=11 // pred_region
          _
        $region44: #{tpu_custom_call.1} parent=11 // pred_fallthru
          _
        // Predicated region
        $region45: #{tpu_custom_call.1} parent=11 // pred_check
          %p417 = pneg %p282
        $region46: #{tpu_custom_call.1} parent=11 // pred_check_branch
          %419 = sbr.rel (%p417) target = $region48
        $region47: #{tpu_custom_call.1} parent=11 // pred_region
          _
        $region48: #{tpu_custom_call.1} parent=11 // pred_fallthru
          _
        // Predicated region
        $region49: #{tpu_custom_call.1} parent=11 // pred_check
          %p420 = pneg %p303
        $region50: #{tpu_custom_call.1} parent=11 // pred_check_branch
          %422 = sbr.rel (%p420) target = $region52
        $region51: #{tpu_custom_call.1} parent=11 // pred_region
          _
        $region52: #{tpu_custom_call.1} parent=11 // pred_fallthru
          _
        // Predicated region
        $region53: #{tpu_custom_call.1} parent=11 // pred_check
          %p423 = pneg %p324
        $region54: #{tpu_custom_call.1} parent=11 // pred_check_branch
          %425 = sbr.rel (%p423) target = $region56
        $region55: #{tpu_custom_call.1} parent=11 // pred_region
          _
        $region56: #{tpu_custom_call.1} parent=11 // pred_fallthru
          _
      $region12: #{tpu_custom_call.1} parent=5 // pred_fallthru
        _
      %p426 = scmp.lt.s32.totalorder %s27, 2
      // Predicated region
      $region57: #{tpu_custom_call.1} parent=5 // pred_check
        %p427 = pneg %p426
      $region58: #{tpu_custom_call.1} parent=5 // pred_check_branch
        %429 = sbr.rel (%p427) target = $region60
      $region59: #{tpu_custom_call.1} parent=5 // pred_region
        // Predicated region
        $region61: #{tpu_custom_call.1} parent=59 // pred_check
          %p430 = pneg %p61
        $region62: #{tpu_custom_call.1} parent=59 // pred_check_branch
          %432 = sbr.rel (%p430) target = $region64
        $region63: #{tpu_custom_call.1} parent=59 // pred_region
          %s433 = smul.u32 2, %s35
          %p434 = scmp.lt.s32.totalorder %s34, 1
          %s435 = scalar_select %p434, %s34, 1
          %p436 = scmp.lt.s32.totalorder %s433, 1
          %s437 = scalar_select %p436, %s433, 1
          %s438 = smul.addr %s435, 2
          %s439 = sadd.s32 %s437, %s438
          %s440 = smul.addr %s439, 8
          %s441 = scalar_lea.vmem %s0, %s440
          %s442 = smul.u32 2, %s35
        $region64: #{tpu_custom_call.1} parent=59 // pred_fallthru
          _
        // Predicated region
        $region65: #{tpu_custom_call.1} parent=59 // pred_check
          %p443 = pneg %p87
        $region66: #{tpu_custom_call.1} parent=59 // pred_check_branch
          %445 = sbr.rel (%p443) target = $region68
        $region67: #{tpu_custom_call.1} parent=59 // pred_region
          %p446 = scmp.lt.s32.totalorder %s34, 1
          %s447 = scalar_select %p446, %s34, 1
          %s448 = smul.addr %s447, 2
          %s449 = smul.addr %s448, 8
          %s450 = scalar_lea.vmem %s1, %s449
        $region68: #{tpu_custom_call.1} parent=59 // pred_fallthru
          _
      $region60: #{tpu_custom_call.1} parent=5 // pred_fallthru
        _
      %p451 = scmp.le.s32.totalorder 1, %s27
      %p452 = scmp.lt.s32.totalorder %s27, 3
      %p453 = pnand %p451, %p452
      %p454 = pneg %p453
      // Predicated region
      $region69: #{tpu_custom_call.1} parent=5 // pred_check
        _
      $region70: #{tpu_custom_call.1} parent=5 // pred_check_branch
        %456 = sbr.rel (%p453) target = $region72
      $region71: #{tpu_custom_call.1} parent=5 // pred_region
        %s457 = ssub.s32 %s27, 1
        %s458 = smul.u32 2, %s37
        %p459 = scmp.lt.s32.totalorder %s36, 1
        %s460 = scalar_select %p459, %s36, 1
        %p461 = scmp.lt.s32.totalorder %s458, 1
        %s462 = scalar_select %p461, %s458, 1
        %s463 = smul.addr %s460, 2
        %s464 = sadd.s32 %s462, %s463
        %s465 = smul.addr %s464, 8
        %s466 = scalar_lea.vmem %s0, %s465
        %p467 = pneg %p67
        %p468 = pneg %p64
        %p469 = scmp.lt.s32.totalorder %s36, 1
        %s470 = scalar_select %p469, %s36, 1
        %s471 = smul.addr %s470, 2
        %s472 = smul.addr %s471, 8
        %s473 = scalar_lea.vmem %s1, %s472
        %p474 = pneg %p93
        %p475 = pneg %p90
        %p476 = pneg %p114
        %p477 = pneg %p111
        %p478 = pneg %p135
        %p479 = pneg %p132
        %p480 = pneg %p156
        %p481 = pneg %p153
        %p482 = pneg %p177
        %p483 = pneg %p174
        %p484 = pneg %p198
        %p485 = pneg %p195
        %p486 = pneg %p219
        %p487 = pneg %p216
        %p488 = pneg %p240
        %p489 = pneg %p237
        %p490 = pneg %p261
        %p491 = pneg %p258
        %p492 = pneg %p282
        %p493 = pneg %p279
        %p494 = pneg %p303
        %p495 = pneg %p300
        %p496 = pneg %p324
        %p497 = pneg %p321
        %p498 = pneg %p352
        %p499 = pneg %p349
        %s500 = sand.u32 %s339, 1
        %s501 = scalar_lea.sflag [#allocation10], %s500
        %s502 = sand.u32 %s339, 1
        %s503 = smul.addr %s502, 16
        %s504 = scalar_lea.vmem [#allocation9], %s503
        %p505 = pneg %p378
        %p506 = pneg %p375
        %s507 = sand.u32 %s365, 1
        %s508 = scalar_lea.sflag [#allocation12], %s507
        %s509 = sand.u32 %s365, 1
        %s510 = smul.addr %s509, 16
        %s511 = scalar_lea.vmem [#allocation11], %s510
        %s512 = smul.u32 2, %s37
        %p513 = scmp.lt.s32.totalorder %s36, 1
        %s514 = scalar_select %p513, %s36, 1
        %p515 = scmp.lt.s32.totalorder %s512, 1
        %s516 = scalar_select %p515, %s512, 1
        %s517 = smul.addr %s514, 2
        %s518 = sadd.s32 %s516, %s517
        %s519 = smul.addr %s518, 8
        %s520 = scalar_lea.vmem %s0, %s519
        %s521 = smul.u32 2, %s37
        %p522 = scmp.lt.s32.totalorder %s36, 1
        %s523 = scalar_select %p522, %s36, 1
        %s524 = smul.addr %s523, 2
        %s525 = smul.addr %s524, 8
        %s526 = scalar_lea.vmem %s1, %s525
        %s527 = smul.u32 2, %s37
        %v529 = vld [vmem:[%s520] sm:$0xff]
        %v530 = vld [vmem:[%s520 + $0x8] sm:$0xff]
        %vm531 = vcmask 261120
        %v532 = vsel %vm531, %v529, 0.0
        %533 = vadd.xlane.f32.xlu0 %v532
        %v534 = vpop.xlane.xlu0 %533
        %v535 = vsel %vm531, %v530, 0.0
        %536 = vadd.xlane.f32.xlu0 %v535
        %v537 = vpop.xlane.xlu0 %536
        %v538 = vrcp.pop 32.0
        %v539 = vmul.f32 %v534, %v538
        %v540 = vmul.f32 %v537, %v538
        %v541 = vsub.f32 %v529, %v539
        %v542 = vsub.f32 %v530, %v540
        %v543 = vmul.f32 %v541, %v541
        %v544 = vmul.f32 %v542, %v542
        %v545 = vsel %vm531, %v543, 0.0
        %546 = vadd.xlane.f32.xlu0 %v545
        %v547 = vpop.xlane.xlu0 %546
        %v548 = vsel %vm531, %v544, 0.0
        %549 = vadd.xlane.f32.xlu0 %v548
        %v550 = vpop.xlane.xlu0 %549
        %v551 = vmul.f32 %v547, %v538
        %v552 = vmul.f32 %v550, %v538
        %v553 = vadd.f32 %v551, 1e-05
        %v554 = vadd.f32 %v552, 1e-05
        %v555 = vrsqrt.pop %v553
        %v556 = vrsqrt.pop %v554
        %v557 = vmul.f32 %v541, %v555
        %v558 = vmul.f32 %v542, %v556
        %v559 = vld [vmem:[%s2] sm:$0x1]
        %v561 = vlaneseq
        %v562 = vshrl.u32 %v561, 7
        %v563 = vsub.s32 0, %v562
        %v564 = vrot.slane %v559, %v563
        %v566 = vmul.f32 %v557, %v564
        %v567 = vmul.f32 %v558, %v564
        %v568 = vld [vmem:[%s3] sm:$0x1]
        %v570 = vlaneseq
        %v571 = vshrl.u32 %v570, 7
        %v572 = vsub.s32 0, %v571
        %v573 = vrot.slane %v568, %v572
        %v575 = vadd.f32 %v566, %v573
        %v576 = vadd.f32 %v567, %v573
        %v577 = vpack.c.bf16 %v576, %v575
        %v578 = vld [vmem:[%s4] sm:$0xf]
        %v579 = vld [vmem:[%s4 + $0x4] sm:$0xf]
        %v580 = vld [vmem:[%s4 + $0x8] sm:$0xf]
        %v581 = vld [vmem:[%s4 + $0xc] sm:$0xf]
        %v586 = vunpack.c.l.b16 %v578
        %v587 = vunpack.c.l.b16 %v579
        %v588 = vunpack.c.l.b16 %v580
        %v589 = vunpack.c.l.b16 %v581
        %v590 = vpack.c.b16 %v587, %v586
        %v591 = vpack.c.b16 %v589, %v588
        %v595 = vsel %vm531, %v577, 0
        %597 = vmatprep.subr.bf16.mxu0 0
        %598 = vmatpush1.bf16.msra.mxu0 %v590
        %599 = vmatprep.subr.bf16.mxu0 0
        %600 = vmatpush1.bf16.msra.mxu0 %v591
        %601 = vmatprep.subr.bf16.mxu0 0
        %602 = vmatpush1.bf16.msra.mxu0 0
        %603 = vmatprep.subr.bf16.mxu0 0
        %604 = vmatpush1.bf16.msra.mxu0 0
        %605 = vmatprep.subr.bf16.mxu0 0
        %606 = vmatpush1.bf16.msra.mxu0 0
        %607 = vmatprep.subr.bf16.mxu0 0
        %608 = vmatpush1.bf16.msra.mxu0 0
        %609 = vmatprep.subr.bf16.mxu0 0
        %610 = vmatpush1.bf16.msra.mxu0 0
        %611 = vmatprep.subr.bf16.mxu0 0
        %612 = vmatpush1.bf16.msra.mxu0 0
        %613 = vmatprep.subr.bf16.mxu0 0
        %614 = vmatpush1.bf16.msra.mxu0 0
        %615 = vmatprep.subr.bf16.mxu0 0
        %616 = vmatpush1.bf16.msra.mxu0 0
        %617 = vmatprep.subr.bf16.mxu0 0
        %618 = vmatpush1.bf16.msra.mxu0 0
        %619 = vmatprep.subr.bf16.mxu0 0
        %620 = vmatpush1.bf16.msra.mxu0 0
        %621 = vmatprep.subr.bf16.mxu0 0
        %622 = vmatpush1.bf16.msra.mxu0 0
        %623 = vmatprep.subr.bf16.mxu0 0
        %624 = vmatpush1.bf16.msra.mxu0 0
        %625 = vmatprep.subr.bf16.mxu0 0
        %626 = vmatpush1.bf16.msra.mxu0 0
        %627 = vmatprep.subr.bf16.mxu0 0
        %628 = vmatpush1.bf16.msra.mxu0 0
        %629 = vmatprep.mubr.bf16.mxu0 0
        %630 = vmatmul.mubr.bf16.gmra.mrb[0].mxu0 %v595
        %v631 = vpop.f32.mrb[0].mxu0
        %v632 = vadd.f32 0.0, %v631
        %v633 = vpop.f32.mrb[0].mxu0
        %v634 = vpop.f32.mrb[0].mxu0
        %v635 = vadd.f32 0.0, %v634
        %v636 = vpop.f32.mrb[0].mxu0
        %637 = vdwg.mxu0
        %v638 = vxor.u32 %v632, 2147483648
        %v639 = vxor.u32 %v635, 2147483648
        %v640 = vmul.f32 %v638, 1.442695
        %v641 = vpow.pop %v640
        %v642 = vmul.f32 %v639, 1.442695
        %v643 = vpow.pop %v642
        %v644 = vadd.f32 %v641, 1.0
        %v645 = vadd.f32 %v643, 1.0
        %v646 = vrcp.pop %v644
        %v647 = vmul.f32 1.0, %v646
        %v648 = vrcp.pop %v645
        %v649 = vmul.f32 1.0, %v648
        %v650 = vmul.f32 %v632, %v647
        %v651 = vmul.f32 %v635, %v649
        %654 = vrot.lane.b32.xlu0 %v650, 64
        %v655 = vpop.permute.xlu0 %654
        %656 = vrot.lane.b32.xlu0 %v651, 64
        %v657 = vpop.permute.xlu0 %656
        %vm660 = vcmask 523264
        %661 = vst.msk [vmem:[#allocation4] sm:$0xff] %vm660, %v655
        %662 = vst.msk [vmem:[#allocation4 + $0x8] sm:$0xff] %vm660, %v657
        %p663 = scmp.eq.s32.totalorder %s37, 0
        // Predicated region
        $region73: #{tpu_custom_call.1} parent=71 // pred_check
          %p664 = pneg %p663
        $region74: #{tpu_custom_call.1} parent=71 // pred_check_branch
          %666 = sbr.rel (%p664) target = $region76
        $region75: #{tpu_custom_call.1} parent=71 // pred_region
          %vm667 = vcmask 518144
          %668 = vst.msk [vmem:[#allocation7 + $0x5] sm:$0x7] %vm667, 0.0
        $region76: #{tpu_custom_call.1} parent=71 // pred_fallthru
          _
        %p669 = scmp.gt.s32.totalorder %s37, 0
        // Predicated region
        $region77: #{tpu_custom_call.1} parent=71 // pred_check
          %p670 = pneg %p669
        $region78: #{tpu_custom_call.1} parent=71 // pred_check_branch
          %672 = sbr.rel (%p670) target = $region80
        $region79: #{tpu_custom_call.1} parent=71 // pred_region
          %v673 = vld [vmem:[#allocation7 + $0x15] sm:$0x7]
          %vm674 = vcmask 518144
          %675 = vst.msk [vmem:[#allocation7 + $0x5] sm:$0x7] %vm674, %v673
        $region80: #{tpu_custom_call.1} parent=71 // pred_fallthru
          _
        %676 = vst.msk [vmem:[#allocation7 + $0x8] sm:$0xff] %vm660, %v632
        %677 = vst.msk [vmem:[#allocation7 + $0x10] sm:$0xff] %vm660, %v635
        %v678 = vld [vmem:[%s6] sm:$0x1]
        %v680 = vlaneseq
        %v681 = vshrl.u32 %v680, 7
        %v682 = vsub.s32 0, %v681
        %v683 = vrot.slane %v678, %v682
        %v685 = vld [vmem:[%s5 + $0x3] sm:$0x1]
        %v686 = vlaneseq
        %v687 = vshrl.u32 %v686, 7
        %v688 = vsub.s32 0, %v687
        %v689 = vrot.slane %v685, %v688
        %v690 = vmul.f32 %v632, %v689
        %v691 = vmul.f32 %v635, %v689
        %v692 = vadd.f32 %v683, %v690
        %v693 = vadd.f32 %v683, %v691
        %v694 = vld [vmem:[#allocation7 + $0x7] sm:$0xff]
        %v695 = vld [vmem:[#allocation7 + $0xf] sm:$0xff]
        %v696 = vld [vmem:[%s5 + $0x2] sm:$0x1]
        %v697 = vlaneseq
        %v698 = vshrl.u32 %v697, 7
        %v699 = vsub.s32 0, %v698
        %v700 = vrot.slane %v696, %v699
        %v701 = vmul.f32 %v694, %v700
        %v702 = vmul.f32 %v695, %v700
        %v703 = vadd.f32 %v692, %v701
        %v704 = vadd.f32 %v693, %v702
        %v705 = vld [vmem:[#allocation7 + $0x6] sm:$0xff]
        %v706 = vld [vmem:[#allocation7 + $0xe] sm:$0xff]
        %v707 = vld [vmem:[%s5 + $0x1] sm:$0x1]
        %v708 = vlaneseq
        %v709 = vshrl.u32 %v708, 7
        %v710 = vsub.s32 0, %v709
        %v711 = vrot.slane %v707, %v710
        %v712 = vmul.f32 %v705, %v711
        %v713 = vmul.f32 %v706, %v711
        %v714 = vadd.f32 %v703, %v712
        %v715 = vadd.f32 %v704, %v713
        %v716 = vld [vmem:[#allocation7 + $0x5] sm:$0xff]
        %v717 = vld [vmem:[#allocation7 + $0xd] sm:$0xff]
        %v718 = vld [vmem:[%s5] sm:$0x1]
        %v719 = vlaneseq
        %v720 = vshrl.u32 %v719, 7
        %v721 = vsub.s32 0, %v720
        %v722 = vrot.slane %v718, %v721
        %v723 = vmul.f32 %v716, %v722
        %v724 = vmul.f32 %v717, %v722
        %v725 = vadd.f32 %v714, %v723
        %v726 = vadd.f32 %v715, %v724
        %v727 = vxor.u32 %v725, 2147483648
        %v728 = vxor.u32 %v726, 2147483648
        %v729 = vmul.f32 %v727, 1.442695
        %v730 = vpow.pop %v729
        %v731 = vmul.f32 %v728, 1.442695
        %v732 = vpow.pop %v731
        %v733 = vadd.f32 %v730, 1.0
        %v734 = vadd.f32 %v732, 1.0
        %v735 = vrcp.pop %v733
        %v736 = vmul.f32 1.0, %v735
        %v737 = vrcp.pop %v734
        %v738 = vmul.f32 1.0, %v737
        %v739 = vmul.f32 %v725, %v736
        %v740 = vmul.f32 %v726, %v738
        %741 = vst.msk [vmem:[#allocation2] sm:$0xff] %vm660, %v739
        %742 = vst.msk [vmem:[#allocation2 + $0x8] sm:$0xff] %vm660, %v740
        %v743 = vpack.c.bf16 %v740, %v739
        %v744 = vld [vmem:[%s7] sm:$0xff]
        %v745 = vld [vmem:[%s7 + $0x8] sm:$0xff]
        %v746 = vld [vmem:[%s7 + $0x10] sm:$0xff]
        %v747 = vld [vmem:[%s7 + $0x18] sm:$0xff]
        %v748 = vld [vmem:[%s7 + $0x20] sm:$0xff]
        %v749 = vld [vmem:[%s7 + $0x28] sm:$0xff]
        %v750 = vld [vmem:[%s7 + $0x30] sm:$0xff]
        %v751 = vld [vmem:[%s7 + $0x38] sm:$0xff]
        %v760 = vunpack.c.l.b16 %v744
        %v761 = vunpack.c.h.b16 %v744
        %v762 = vunpack.c.l.b16 %v745
        %v763 = vunpack.c.h.b16 %v745
        %v764 = vunpack.c.l.b16 %v746
        %v765 = vunpack.c.h.b16 %v746
        %v766 = vunpack.c.l.b16 %v747
        %v767 = vunpack.c.h.b16 %v747
        %v768 = vunpack.c.l.b16 %v748
        %v769 = vunpack.c.h.b16 %v748
        %v770 = vunpack.c.l.b16 %v749
        %v771 = vunpack.c.h.b16 %v749
        %v772 = vunpack.c.l.b16 %v750
        %v773 = vunpack.c.h.b16 %v750
        %v774 = vunpack.c.l.b16 %v751
        %v775 = vunpack.c.h.b16 %v751
        %v776 = vpack.c.b16 %v762, %v760
        %v777 = vpack.c.b16 %v763, %v761
        %v778 = vpack.c.b16 %v766, %v764
        %v779 = vpack.c.b16 %v767, %v765
        %v780 = vpack.c.b16 %v770, %v768
        %v781 = vpack.c.b16 %v771, %v769
        %v782 = vpack.c.b16 %v774, %v772
        %v783 = vpack.c.b16 %v775, %v773
        %v793 = vsel %vm660, %v743, 0
        %795 = vmatprep.subr.bf16.mxu0 %v777
        %796 = vmatpush1.bf16.msra.mxu0 %v776
        %797 = vmatprep.subr.bf16.mxu0 %v779
        %798 = vmatpush1.bf16.msra.mxu0 %v778
        %799 = vmatprep.subr.bf16.mxu0 %v781
        %800 = vmatpush1.bf16.msra.mxu0 %v780
        %801 = vmatprep.subr.bf16.mxu0 %v783
        %802 = vmatpush1.bf16.msra.mxu0 %v782
        %803 = vmatprep.subr.bf16.mxu0 0
        %804 = vmatpush1.bf16.msra.mxu0 0
        %805 = vmatprep.subr.bf16.mxu0 0
        %806 = vmatpush1.bf16.msra.mxu0 0
        %807 = vmatprep.subr.bf16.mxu0 0
        %808 = vmatpush1.bf16.msra.mxu0 0
        %809 = vmatprep.subr.bf16.mxu0 0
        %810 = vmatpush1.bf16.msra.mxu0 0
        %811 = vmatprep.subr.bf16.mxu0 0
        %812 = vmatpush1.bf16.msra.mxu0 0
        %813 = vmatprep.subr.bf16.mxu0 0
        %814 = vmatpush1.bf16.msra.mxu0 0
        %815 = vmatprep.subr.bf16.mxu0 0
        %816 = vmatpush1.bf16.msra.mxu0 0
        %817 = vmatprep.subr.bf16.mxu0 0
        %818 = vmatpush1.bf16.msra.mxu0 0
        %819 = vmatprep.subr.bf16.mxu0 0
        %820 = vmatpush1.bf16.msra.mxu0 0
        %821 = vmatprep.subr.bf16.mxu0 0
        %822 = vmatpush1.bf16.msra.mxu0 0
        %823 = vmatprep.subr.bf16.mxu0 0
        %824 = vmatpush1.bf16.msra.mxu0 0
        %825 = vmatprep.subr.bf16.mxu0 0
        %826 = vmatpush1.bf16.msra.mxu0 0
        %827 = vmatprep.mubr.bf16.mxu0 0
        %828 = vmatmul.mubr.bf16.gmra.mrb[0].mxu0 %v793
        %v829 = vpop.f32.mrb[0].mxu0
        %v830 = vadd.f32 0.0, %v829
        %v831 = vpop.f32.mrb[0].mxu0
        %v832 = vadd.f32 0.0, %v831
        %v833 = vpop.f32.mrb[0].mxu0
        %v834 = vadd.f32 0.0, %v833
        %v835 = vpop.f32.mrb[0].mxu0
        %v836 = vadd.f32 0.0, %v835
        %837 = vdwg.mxu0
        %838 = vst.msk [vmem:[#allocation6] sm:$0xff] %vm531, %v832
        %839 = vst.msk [vmem:[#allocation6 + $0x8] sm:$0xff] %vm531, %v836
        %v840 = vld [vmem:[%s8] sm:$0xff]
        %v841 = vld [vmem:[%s8 + $0x8] sm:$0xff]
        %v842 = vld [vmem:[%s8 + $0x10] sm:$0xff]
        %v843 = vld [vmem:[%s8 + $0x18] sm:$0xff]
        %v844 = vld [vmem:[%s8 + $0x20] sm:$0xff]
        %v845 = vld [vmem:[%s8 + $0x28] sm:$0xff]
        %v846 = vld [vmem:[%s8 + $0x30] sm:$0xff]
        %v847 = vld [vmem:[%s8 + $0x38] sm:$0xff]
        %v848 = vld [vmem:[%s8 + $0x40] sm:$0xff]
        %v849 = vld [vmem:[%s8 + $0x48] sm:$0xff]
        %v850 = vld [vmem:[%s8 + $0x50] sm:$0xff]
        %v851 = vld [vmem:[%s8 + $0x58] sm:$0xff]
        %v852 = vld [vmem:[%s8 + $0x60] sm:$0xff]
        %v853 = vld [vmem:[%s8 + $0x68] sm:$0xff]
        %v854 = vld [vmem:[%s8 + $0x70] sm:$0xff]
        %v855 = vld [vmem:[%s8 + $0x78] sm:$0xff]
        %v856 = vld [vmem:[%s9] sm:$0x1]
        %v858 = vlaneseq
        %v859 = vshrl.u32 %v858, 7
        %v860 = vsub.s32 0, %v859
        %v861 = vrot.slane %v856, %v860
        %863 = vmatprep.subr.mxu0 0.0
        %864 = vmatpush1.msra.mxu0 %v840
        %865 = vmatprep.subr.mxu0 0.0
        %866 = vmatpush1.msra.mxu0 %v841
        %867 = vmatprep.subr.mxu0 0.0
        %868 = vmatpush1.msra.mxu0 %v842
        %869 = vmatprep.subr.mxu0 0.0
        %870 = vmatpush1.msra.mxu0 %v843
        %871 = vmatprep.subr.mxu0 0.0
        %872 = vmatpush1.msra.mxu0 %v844
        %873 = vmatprep.subr.mxu0 0.0
        %874 = vmatpush1.msra.mxu0 %v845
        %875 = vmatprep.subr.mxu0 0.0
        %876 = vmatpush1.msra.mxu0 %v846
        %877 = vmatprep.subr.mxu0 0.0
        %878 = vmatpush1.msra.mxu0 %v847
        %879 = vmatprep.subr.mxu0 0.0
        %880 = vmatpush1.msra.mxu0 %v848
        %881 = vmatprep.subr.mxu0 0.0
        %882 = vmatpush1.msra.mxu0 %v849
        %883 = vmatprep.subr.mxu0 0.0
        %884 = vmatpush1.msra.mxu0 %v850
        %885 = vmatprep.subr.mxu0 0.0
        %886 = vmatpush1.msra.mxu0 %v851
        %887 = vmatprep.subr.mxu0 0.0
        %888 = vmatpush1.msra.mxu0 %v852
        %889 = vmatprep.subr.mxu0 0.0
        %890 = vmatpush1.msra.mxu0 %v853
        %891 = vmatprep.subr.mxu0 0.0
        %892 = vmatpush1.msra.mxu0 %v854
        %893 = vmatprep.subr.mxu0 0.0
        %894 = vmatpush1.msra.mxu0 %v855
        %895 = vmatprep.subr.mxu0 0.0
        %896 = vmatpush1.msra.mxu0 0.0
        %897 = vmatprep.subr.mxu0 0.0
        %898 = vmatpush1.msra.mxu0 0.0
        %899 = vmatprep.subr.mxu0 0.0
        %900 = vmatpush1.msra.mxu0 0.0
        %901 = vmatprep.subr.mxu0 0.0
        %902 = vmatpush1.msra.mxu0 0.0
        %903 = vmatprep.subr.mxu0 0.0
        %904 = vmatpush1.msra.mxu0 0.0
        %905 = vmatprep.subr.mxu0 0.0
        %906 = vmatpush1.msra.mxu0 0.0
        %907 = vmatprep.subr.mxu0 0.0
        %908 = vmatpush1.msra.mxu0 0.0
        %909 = vmatprep.subr.mxu0 0.0
        %910 = vmatpush1.msra.mxu0 0.0
        %911 = vmatprep.subr.mxu0 0.0
        %912 = vmatpush1.msra.mxu0 0.0
        %913 = vmatprep.subr.mxu0 0.0
        %914 = vmatpush1.msra.mxu0 0.0
        %915 = vmatprep.subr.mxu0 0.0
        %916 = vmatpush1.msra.mxu0 0.0
        %917 = vmatprep.subr.mxu0 0.0
        %918 = vmatpush1.msra.mxu0 0.0
        %919 = vmatprep.subr.mxu0 0.0
        %920 = vmatpush1.msra.mxu0 0.0
        %921 = vmatprep.subr.mxu0 0.0
        %922 = vmatpush1.msra.mxu0 0.0
        %923 = vmatprep.subr.mxu0 0.0
        %924 = vmatpush1.msra.mxu0 0.0
        %925 = vmatprep.subr.mxu0 0.0
        %926 = vmatpush1.msra.mxu0 0.0
        %927 = vmatprep.mubr.f32.mxu0 0.0
        %928 = vmatmul.mubr.f32.gmra.mrb[0].mxu0 %v830
        %v929 = vpop.f32.mrb[0].mxu0
        %v930 = vadd.f32 %v861, %v929
        %v931 = vpop.f32.mrb[0].mxu0
        %932 = vmatprep.mubr.f32.mxu0 0.0
        %933 = vmatmul.mubr.f32.gmra.mrb[0].mxu0 %v834
        %v934 = vpop.f32.mrb[0].mxu0
        %v935 = vadd.f32 %v861, %v934
        %v936 = vpop.f32.mrb[0].mxu0
        %937 = vdwg.mxu0
        %vm938 = vcmp.gt.f32.partialorder %v930, 20.0
        %vm939 = vcmp.gt.f32.partialorder %v935, 20.0
        %v940 = vmin.f32 %v930, 20.0
        %v941 = vmin.f32 %v935, 20.0
        %v942 = vmul.f32 %v940, 1.442695
        %v943 = vpow.pop %v942
        %v944 = vmul.f32 %v941, 1.442695
        %v945 = vpow.pop %v944
        %v946 = vadd.f32 %v943, 1.0
        %v947 = vlog2.pop %v946
        %v948 = vmul.f32 %v947, 0.6931472
        %v949 = vmul.f32 -0.5, %v943
        %v950 = vadd.f32 %v949, 1.0
        %v951 = vmul.f32 %v950, %v943
        %v952 = vand.u32 2147483647, %v943
        %vm953 = vcmp.lt.f32.partialorder %v952, 0.0004427343
        %v954 = vsel %vm953, %v951, %v948
        %v955 = vadd.f32 %v945, 1.0
        %v956 = vlog2.pop %v955
        %v957 = vmul.f32 %v956, 0.6931472
        %v958 = vmul.f32 -0.5, %v945
        %v959 = vadd.f32 %v958, 1.0
        %v960 = vmul.f32 %v959, %v945
        %v961 = vand.u32 2147483647, %v945
        %vm962 = vcmp.lt.f32.partialorder %v961, 0.0004427343
        %v963 = vsel %vm962, %v960, %v957
        %v964 = vsel %vm938, %v930, %v954
        %v965 = vsel %vm939, %v935, %v963
        %s966 = smul.u32 %s37, 16
        %v967 = vlaneseq
        %v968 = vshrl.u32 %v967, 7
        %v969 = vadd.s32 %v968, 8
        %v970 = vstv %s966
        %v971 = vadd.s32 %v970, %v968
        %v972 = vadd.s32 %v970, %v969
        %vm973 = vcmp.lt.s32.totalorder %v971, 8
        %vm974 = vcmp.lt.s32.totalorder %v972, 8
        %v975 = vsel %vm973, 1, 0
        %v976 = vsel %vm974, 1, 0
        %vm977 = vcmp.eq.s32.totalorder %v975, 1
        %vm978 = vcmp.eq.s32.totalorder %v976, 1
        %v979 = vsel %vm977, %v964, 0.0
        %v980 = vsel %vm978, %v965, 0.0
        %981 = vst.msk [vmem:[#allocation3] sm:$0xff] %vm660, %v979
        %982 = vst.msk [vmem:[#allocation3 + $0x8] sm:$0xff] %vm660, %v980
        %v983 = vld [vmem:[%s10] sm:$0xff]
        %v984 = vld [vmem:[%s10 + $0x8] sm:$0xff]
        %v985 = vmul.f32 %v983, 1.442695
        %v986 = vpow.pop %v985
        %v987 = vmul.f32 %v984, 1.442695
        %v988 = vpow.pop %v987
        %v989 = vsub.f32 0.0, %v986
        %v990 = vsub.f32 0.0, %v988
        %v991 = vld [vmem:[%s11] sm:$0x1]
        // Predicated region
        $region81: #{tpu_custom_call.1} parent=71 // pred_check
          %p992 = pneg %p663
        $region82: #{tpu_custom_call.1} parent=71 // pred_check_branch
          %994 = sbr.rel (%p992) target = $region84
        $region83: #{tpu_custom_call.1} parent=71 // pred_region
          %v995 = vld [vmem:[%s526] sm:$0xff]
          %v996 = vld [vmem:[%s526 + $0x8] sm:$0xff]
          %997 = vst.msk [vmem:[#allocation8] sm:$0xff] %vm660, %v995
          %998 = vst.msk [vmem:[#allocation8 + $0x8] sm:$0xff] %vm660, %v996
        $region84: #{tpu_custom_call.1} parent=71 // pred_fallthru
          _
        %v999 = vlaneseq
        %v1000 = vand.u32 %v999, 127
        %vm1001 = vcmp.eq.s32.totalorder %v968, %v1000
        %vm1002 = vcmp.eq.s32.totalorder %v969, %v1000
        %v1003 = vsel %vm1001, 1, 0
        %v1004 = vsel %vm1002, 1, 0
        %v1005 = vcvt.s32.f32 %v1003
        %v1006 = vcvt.s32.f32 %v1004
        %v1007 = vld [vmem:[#allocation8] sm:$0xff]
        %v1008 = vld [vmem:[#allocation8 + $0x8] sm:$0xff]
        %v1009 = vld [vmem:[#allocation3] sm:$0xff]
        %v1010 = vld [vmem:[#allocation3 + $0x8] sm:$0xff]
        %v1011 = vld [vmem:[#allocation2] sm:$0xff]
        %v1012 = vld [vmem:[#allocation2 + $0x8] sm:$0xff]
        %v1013 = vld [vmem:[#allocation6] sm:$0xff]
        %v1014 = vld [vmem:[#allocation6 + $0x8] sm:$0xff]
        %1015 = vxpose.xlu0.b32.start [1/16] %v1013, 128
        %1016 = vxpose.xlu0.b32.cont [2/16] %v1014, 128
        %1017 = vxpose.xlu0.b32.cont [3/16] 0.0, 128
        %1018 = vxpose.xlu0.b32.cont [4/16] 0.0, 128
        %1019 = vxpose.xlu0.b32.cont [5/16] 0.0, 128
        %1020 = vxpose.xlu0.b32.cont [6/16] 0.0, 128
        %1021 = vxpose.xlu0.b32.cont [7/16] 0.0, 128
        %1022 = vxpose.xlu0.b32.cont [8/16] 0.0, 128
        %1023 = vxpose.xlu0.b32.cont [9/16] 0.0, 128
        %1024 = vxpose.xlu0.b32.cont [10/16] 0.0, 128
        %1025 = vxpose.xlu0.b32.cont [11/16] 0.0, 128
        %1026 = vxpose.xlu0.b32.cont [12/16] 0.0, 128
        %1027 = vxpose.xlu0.b32.cont [13/16] 0.0, 128
        %1028 = vxpose.xlu0.b32.cont [14/16] 0.0, 128
        %1029 = vxpose.xlu0.b32.cont [15/16] 0.0, 128
        %1030 = vxpose.xlu0.b32.end [16/16] 0.0, 128
        %v1031 = vpop.trf.xlu0
        %v1032 = vpop.trf.xlu0
        %v1033 = vpop.trf.xlu0
        %v1034 = vpop.trf.xlu0
        %v1035 = vpop.trf.xlu0
        %v1036 = vpop.trf.xlu0
        %v1037 = vpop.trf.xlu0
        %v1038 = vpop.trf.xlu0
        %v1039 = vpop.trf.xlu0
        %v1040 = vpop.trf.xlu0
        %v1041 = vpop.trf.xlu0
        %v1042 = vpop.trf.xlu0
        %v1043 = vpop.trf.xlu0
        %v1044 = vpop.trf.xlu0
        %v1045 = vpop.trf.xlu0
        %v1046 = vpop.trf.xlu0
        %vm1047 = vcmask 130048
        %v1049 = vsel %vm1047, %v1031, 0
        %v1052 = vsel %vm1047, %v1032, 0
        %v1055 = vsel %vm1047, %v1033, 0
        %v1058 = vsel %vm1047, %v1034, 0
        %1060 = vmatprep.subr.mxu0 0.0
        %1061 = vmatpush1.msra.mxu0 %v1005
        %1062 = vmatprep.subr.mxu0 0.0
        %1063 = vmatpush1.msra.mxu0 %v1006
        %1064 = vmatprep.subr.mxu0 0.0
        %1065 = vmatpush1.msra.mxu0 0.0
        %1066 = vmatprep.subr.mxu0 0.0
        %1067 = vmatpush1.msra.mxu0 0.0
        %1068 = vmatprep.subr.mxu0 0.0
        %1069 = vmatpush1.msra.mxu0 0.0
        %1070 = vmatprep.subr.mxu0 0.0
        %1071 = vmatpush1.msra.mxu0 0.0
        %1072 = vmatprep.subr.mxu0 0.0
        %1073 = vmatpush1.msra.mxu0 0.0
        %1074 = vmatprep.subr.mxu0 0.0
        %1075 = vmatpush1.msra.mxu0 0.0
        %1076 = vmatprep.subr.mxu0 0.0
        %1077 = vmatpush1.msra.mxu0 0.0
        %1078 = vmatprep.subr.mxu0 0.0
        %1079 = vmatpush1.msra.mxu0 0.0
        %1080 = vmatprep.subr.mxu0 0.0
        %1081 = vmatpush1.msra.mxu0 0.0
        %1082 = vmatprep.subr.mxu0 0.0
        %1083 = vmatpush1.msra.mxu0 0.0
        %1084 = vmatprep.subr.mxu0 0.0
        %1085 = vmatpush1.msra.mxu0 0.0
        %1086 = vmatprep.subr.mxu0 0.0
        %1087 = vmatpush1.msra.mxu0 0.0
        %1088 = vmatprep.subr.mxu0 0.0
        %1089 = vmatpush1.msra.mxu0 0.0
        %1090 = vmatprep.subr.mxu0 0.0
        %1091 = vmatpush1.msra.mxu0 0.0
        %1092 = vmatprep.subr.mxu0 0.0
        %1093 = vmatpush1.msra.mxu0 0.0
        %1094 = vmatprep.subr.mxu0 0.0
        %1095 = vmatpush1.msra.mxu0 0.0
        %1096 = vmatprep.subr.mxu0 0.0
        %1097 = vmatpush1.msra.mxu0 0.0
        %1098 = vmatprep.subr.mxu0 0.0
        %1099 = vmatpush1.msra.mxu0 0.0
        %1100 = vmatprep.subr.mxu0 0.0
        %1101 = vmatpush1.msra.mxu0 0.0
        %1102 = vmatprep.subr.mxu0 0.0
        %1103 = vmatpush1.msra.mxu0 0.0
        %1104 = vmatprep.subr.mxu0 0.0
        %1105 = vmatpush1.msra.mxu0 0.0
        %1106 = vmatprep.subr.mxu0 0.0
        %1107 = vmatpush1.msra.mxu0 0.0
        %1108 = vmatprep.subr.mxu0 0.0
        %1109 = vmatpush1.msra.mxu0 0.0
        %1110 = vmatprep.subr.mxu0 0.0
        %1111 = vmatpush1.msra.mxu0 0.0
        %1112 = vmatprep.subr.mxu0 0.0
        %1113 = vmatpush1.msra.mxu0 0.0
        %1114 = vmatprep.subr.mxu0 0.0
        %1115 = vmatpush1.msra.mxu0 0.0
        %1116 = vmatprep.subr.mxu0 0.0
        %1117 = vmatpush1.msra.mxu0 0.0
        %1118 = vmatprep.subr.mxu0 0.0
        %1119 = vmatpush1.msra.mxu0 0.0
        %1120 = vmatprep.subr.mxu0 0.0
        %1121 = vmatpush1.msra.mxu0 0.0
        %1122 = vmatprep.subr.mxu0 0.0
        %1123 = vmatpush1.msra.mxu0 0.0
        %1124 = vmatprep.mubr.f32.mxu0 0.0
        %1125 = vmatmul.mubr.f32.gmra.mrb[0].mxu0 %v1049
        %v1126 = vpop.f32.mrb[0].mxu0
        %v1127 = vadd.f32 0.0, %v1126
        %v1128 = vpop.f32.mrb[0].mxu0
        %1129 = vmatprep.mubr.f32.mxu0 0.0
        %1130 = vmatmul.mubr.f32.gmra.mrb[0].mxu0 %v1052
        %v1131 = vpop.f32.mrb[0].mxu0
        %v1132 = vadd.f32 0.0, %v1131
        %v1133 = vpop.f32.mrb[0].mxu0
        %1134 = vmatprep.mubr.f32.mxu0 0.0
        %1135 = vmatmul.mubr.f32.gmra.mrb[0].mxu0 %v1055
        %v1136 = vpop.f32.mrb[0].mxu0
        %v1137 = vadd.f32 0.0, %v1136
        %v1138 = vpop.f32.mrb[0].mxu0
        %1139 = vmatprep.mubr.f32.mxu0 0.0
        %1140 = vmatmul.mubr.f32.gmra.mrb[0].mxu0 %v1058
        %v1141 = vpop.f32.mrb[0].mxu0
        %v1142 = vadd.f32 0.0, %v1141
        %v1143 = vpop.f32.mrb[0].mxu0
        %1144 = vdwg.mxu0
        %v1145 = vmul.f32 %v1009, %v1011
        %v1146 = vmul.f32 %v1010, %v1012
        %v1147 = vlaneseq
        %v1148 = vshrl.u32 %v1147, 7
        %v1149 = vsub.s32 0, %v1148
        %v1150 = vrot.slane %v1009, %v1149
        %v1151 = vmul.f32 %v1150, %v989
        %v1152 = vmul.f32 %v1150, %v990
        %v1153 = vmul.f32 %v1151, 1.442695
        %v1154 = vpow.pop %v1153
        %v1155 = vmul.f32 %v1152, 1.442695
        %v1156 = vpow.pop %v1155
        %1158 = vset.pattern.permute.xlu0 0
        %1159 = vperm.xlu0 %1158, %v1127
        %v1160 = vpop.permute.xlu0 %1159
        %1163 = vset.pattern.permute.xlu0 0
        %1164 = vperm.xlu0 %1163, %v1132
        %v1165 = vpop.permute.xlu0 %1164
        %v1167 = vlaneseq
        %v1168 = vshrl.u32 %v1167, 7
        %v1169 = vsub.s32 0, %v1168
        %v1170 = vrot.slane %v1145, %v1169
        %v1171 = vmul.f32 %v1160, %v1170
        %v1172 = vmul.f32 %v1165, %v1170
        %v1173 = vmul.f32 %v1154, %v1007
        %v1174 = vmul.f32 %v1156, %v1008
        %v1175 = vadd.f32 %v1173, %v1171
        %v1176 = vadd.f32 %v1174, %v1172
        %1178 = vset.pattern.permute.xlu0 0
        %1179 = vperm.xlu0 %1178, %v1137
        %v1180 = vpop.permute.xlu0 %1179
        %1183 = vset.pattern.permute.xlu0 0
        %1184 = vperm.xlu0 %1183, %v1142
        %v1185 = vpop.permute.xlu0 %1184
        %v1187 = vmul.f32 %v1180, %v1175
        %v1188 = vmul.f32 %v1185, %v1176
        %v1189 = vsel %vm660, %v1187, 0.0
        %v1190 = vsel %vm660, %v1188, 0.0
        %v1191 = vadd.f32 %v1189, %v1190
        %v1192 = vrot.slane %v1191, 4
        %v1193 = vadd.f32 %v1191, %v1192
        %v1194 = vrot.slane %v1193, 2
        %v1195 = vadd.f32 %v1193, %v1194
        %v1196 = vrot.slane %v1195, 1
        %v1197 = vadd.f32 %v1195, %v1196
        %vm1198 = vcmask 516096
        %1199 = vst.msk [vmem:[#allocation5] sm:$0x1] %vm1198, %v1197
        %v1200 = vlaneseq
        %v1201 = vshrl.u32 %v1200, 7
        %v1202 = vsub.s32 1, %v1201
        %v1203 = vrot.slane %v1009, %v1202
        %v1204 = vmul.f32 %v1203, %v989
        %v1205 = vmul.f32 %v1203, %v990
        %v1206 = vmul.f32 %v1204, 1.442695
        %v1207 = vpow.pop %v1206
        %v1208 = vmul.f32 %v1205, 1.442695
        %v1209 = vpow.pop %v1208
        %1210 = vset.pattern.permute.xlu0 1
        %1211 = vperm.xlu0 %1210, %v1127
        %v1212 = vpop.permute.xlu0 %1211
        %1214 = vset.pattern.permute.xlu0 1
        %1215 = vperm.xlu0 %1214, %v1132
        %v1216 = vpop.permute.xlu0 %1215
        %v1218 = vlaneseq
        %v1219 = vshrl.u32 %v1218, 7
        %v1220 = vsub.s32 1, %v1219
        %v1221 = vrot.slane %v1145, %v1220
        %v1222 = vmul.f32 %v1212, %v1221
        %v1223 = vmul.f32 %v1216, %v1221
        %v1224 = vmul.f32 %v1207, %v1175
        %v1225 = vmul.f32 %v1209, %v1176
        %v1226 = vadd.f32 %v1224, %v1222
        %v1227 = vadd.f32 %v1225, %v1223
        %1228 = vset.pattern.permute.xlu0 1
        %1229 = vperm.xlu0 %1228, %v1137
        %v1230 = vpop.permute.xlu0 %1229
        %1232 = vset.pattern.permute.xlu0 1
        %1233 = vperm.xlu0 %1232, %v1142
        %v1234 = vpop.permute.xlu0 %1233
        %v1236 = vmul.f32 %v1230, %v1226
        %v1237 = vmul.f32 %v1234, %v1227
        %v1238 = vsel %vm660, %v1236, 0.0
        %v1239 = vsel %vm660, %v1237, 0.0
        %v1240 = vadd.f32 %v1238, %v1239
        %v1241 = vrot.slane %v1240, 4
        %v1242 = vadd.f32 %v1240, %v1241
        %v1243 = vrot.slane %v1242, 2
        %v1244 = vadd.f32 %v1242, %v1243
        %v1245 = vrot.slane %v1244, 1
        %v1246 = vadd.f32 %v1244, %v1245
        %s1247 = sadd.s32 0, 1
        %s1248 = scalar_lea.vmem [#allocation5], %s1247
        %1249 = vst.msk [vmem:[%s1248] sm:$0x1] %vm1198, %v1246
        %v1250 = vlaneseq
        %v1251 = vshrl.u32 %v1250, 7
        %v1252 = vsub.s32 2, %v1251
        %v1253 = vrot.slane %v1009, %v1252
        %v1254 = vmul.f32 %v1253, %v989
        %v1255 = vmul.f32 %v1253, %v990
        %v1256 = vmul.f32 %v1254, 1.442695
        %v1257 = vpow.pop %v1256
        %v1258 = vmul.f32 %v1255, 1.442695
        %v1259 = vpow.pop %v1258
        %1260 = vset.pattern.permute.xlu0 2
        %1261 = vperm.xlu0 %1260, %v1127
        %v1262 = vpop.permute.xlu0 %1261
        %1264 = vset.pattern.permute.xlu0 2
        %1265 = vperm.xlu0 %1264, %v1132
        %v1266 = vpop.permute.xlu0 %1265
        %v1268 = vlaneseq
        %v1269 = vshrl.u32 %v1268, 7
        %v1270 = vsub.s32 2, %v1269
        %v1271 = vrot.slane %v1145, %v1270
        %v1272 = vmul.f32 %v1262, %v1271
        %v1273 = vmul.f32 %v1266, %v1271
        %v1274 = vmul.f32 %v1257, %v1226
        %v1275 = vmul.f32 %v1259, %v1227
        %v1276 = vadd.f32 %v1274, %v1272
        %v1277 = vadd.f32 %v1275, %v1273
        %1278 = vset.pattern.permute.xlu0 2
        %1279 = vperm.xlu0 %1278, %v1137
        %v1280 = vpop.permute.xlu0 %1279
        %1282 = vset.pattern.permute.xlu0 2
        %1283 = vperm.xlu0 %1282, %v1142
        %v1284 = vpop.permute.xlu0 %1283
        %v1286 = vmul.f32 %v1280, %v1276
        %v1287 = vmul.f32 %v1284, %v1277
        %v1288 = vsel %vm660, %v1286, 0.0
        %v1289 = vsel %vm660, %v1287, 0.0
        %v1290 = vadd.f32 %v1288, %v1289
        %v1291 = vrot.slane %v1290, 4
        %v1292 = vadd.f32 %v1290, %v1291
        %v1293 = vrot.slane %v1292, 2
        %v1294 = vadd.f32 %v1292, %v1293
        %v1295 = vrot.slane %v1294, 1
        %v1296 = vadd.f32 %v1294, %v1295
        %s1297 = sadd.s32 0, 2
        %s1298 = scalar_lea.vmem [#allocation5], %s1297
        %1299 = vst.msk [vmem:[%s1298] sm:$0x1] %vm1198, %v1296
        %v1300 = vlaneseq
        %v1301 = vshrl.u32 %v1300, 7
        %v1302 = vsub.s32 3, %v1301
        %v1303 = vrot.slane %v1009, %v1302
        %v1304 = vmul.f32 %v1303, %v989
        %v1305 = vmul.f32 %v1303, %v990
        %v1306 = vmul.f32 %v1304, 1.442695
        %v1307 = vpow.pop %v1306
        %v1308 = vmul.f32 %v1305, 1.442695
        %v1309 = vpow.pop %v1308
        %1310 = vset.pattern.permute.xlu0 3
        %1311 = vperm.xlu0 %1310, %v1127
        %v1312 = vpop.permute.xlu0 %1311
        %1314 = vset.pattern.permute.xlu0 3
        %1315 = vperm.xlu0 %1314, %v1132
        %v1316 = vpop.permute.xlu0 %1315
        %v1318 = vlaneseq
        %v1319 = vshrl.u32 %v1318, 7
        %v1320 = vsub.s32 3, %v1319
        %v1321 = vrot.slane %v1145, %v1320
        %v1322 = vmul.f32 %v1312, %v1321
        %v1323 = vmul.f32 %v1316, %v1321
        %v1324 = vmul.f32 %v1307, %v1276
        %v1325 = vmul.f32 %v1309, %v1277
        %v1326 = vadd.f32 %v1324, %v1322
        %v1327 = vadd.f32 %v1325, %v1323
        %1328 = vset.pattern.permute.xlu0 3
        %1329 = vperm.xlu0 %1328, %v1137
        %v1330 = vpop.permute.xlu0 %1329
        %1332 = vset.pattern.permute.xlu0 3
        %1333 = vperm.xlu0 %1332, %v1142
        %v1334 = vpop.permute.xlu0 %1333
        %v1336 = vmul.f32 %v1330, %v1326
        %v1337 = vmul.f32 %v1334, %v1327
        %v1338 = vsel %vm660, %v1336, 0.0
        %v1339 = vsel %vm660, %v1337, 0.0
        %v1340 = vadd.f32 %v1338, %v1339
        %v1341 = vrot.slane %v1340, 4
        %v1342 = vadd.f32 %v1340, %v1341
        %v1343 = vrot.slane %v1342, 2
        %v1344 = vadd.f32 %v1342, %v1343
        %v1345 = vrot.slane %v1344, 1
        %v1346 = vadd.f32 %v1344, %v1345
        %s1347 = sadd.s32 0, 3
        %s1348 = scalar_lea.vmem [#allocation5], %s1347
        %1349 = vst.msk [vmem:[%s1348] sm:$0x1] %vm1198, %v1346
        %v1350 = vlaneseq
        %v1351 = vshrl.u32 %v1350, 7
        %v1352 = vsub.s32 4, %v1351
        %v1353 = vrot.slane %v1009, %v1352
        %v1354 = vmul.f32 %v1353, %v989
        %v1355 = vmul.f32 %v1353, %v990
        %v1356 = vmul.f32 %v1354, 1.442695
        %v1357 = vpow.pop %v1356
        %v1358 = vmul.f32 %v1355, 1.442695
        %v1359 = vpow.pop %v1358
        %1360 = vset.pattern.permute.xlu0 4
        %1361 = vperm.xlu0 %1360, %v1127
        %v1362 = vpop.permute.xlu0 %1361
        %1364 = vset.pattern.permute.xlu0 4
        %1365 = vperm.xlu0 %1364, %v1132
        %v1366 = vpop.permute.xlu0 %1365
        %v1368 = vlaneseq
        %v1369 = vshrl.u32 %v1368, 7
        %v1370 = vsub.s32 4, %v1369
        %v1371 = vrot.slane %v1145, %v1370
        %v1372 = vmul.f32 %v1362, %v1371
        %v1373 = vmul.f32 %v1366, %v1371
        %v1374 = vmul.f32 %v1357, %v1326
        %v1375 = vmul.f32 %v1359, %v1327
        %v1376 = vadd.f32 %v1374, %v1372
        %v1377 = vadd.f32 %v1375, %v1373
        %1378 = vset.pattern.permute.xlu0 4
        %1379 = vperm.xlu0 %1378, %v1137
        %v1380 = vpop.permute.xlu0 %1379
        %1382 = vset.pattern.permute.xlu0 4
        %1383 = vperm.xlu0 %1382, %v1142
        %v1384 = vpop.permute.xlu0 %1383
        %v1386 = vmul.f32 %v1380, %v1376
        %v1387 = vmul.f32 %v1384, %v1377
        %v1388 = vsel %vm660, %v1386, 0.0
        %v1389 = vsel %vm660, %v1387, 0.0
        %v1390 = vadd.f32 %v1388, %v1389
        %v1391 = vrot.slane %v1390, 4
        %v1392 = vadd.f32 %v1390, %v1391
        %v1393 = vrot.slane %v1392, 2
        %v1394 = vadd.f32 %v1392, %v1393
        %v1395 = vrot.slane %v1394, 1
        %v1396 = vadd.f32 %v1394, %v1395
        %s1397 = sadd.s32 0, 4
        %s1398 = scalar_lea.vmem [#allocation5], %s1397
        %1399 = vst.msk [vmem:[%s1398] sm:$0x1] %vm1198, %v1396
        %v1400 = vlaneseq
        %v1401 = vshrl.u32 %v1400, 7
        %v1402 = vsub.s32 5, %v1401
        %v1403 = vrot.slane %v1009, %v1402
        %v1404 = vmul.f32 %v1403, %v989
        %v1405 = vmul.f32 %v1403, %v990
        %v1406 = vmul.f32 %v1404, 1.442695
        %v1407 = vpow.pop %v1406
        %v1408 = vmul.f32 %v1405, 1.442695
        %v1409 = vpow.pop %v1408
        %1410 = vset.pattern.permute.xlu0 5
        %1411 = vperm.xlu0 %1410, %v1127
        %v1412 = vpop.permute.xlu0 %1411
        %1414 = vset.pattern.permute.xlu0 5
        %1415 = vperm.xlu0 %1414, %v1132
        %v1416 = vpop.permute.xlu0 %1415
        %v1418 = vlaneseq
        %v1419 = vshrl.u32 %v1418, 7
        %v1420 = vsub.s32 5, %v1419
        %v1421 = vrot.slane %v1145, %v1420
        %v1422 = vmul.f32 %v1412, %v1421
        %v1423 = vmul.f32 %v1416, %v1421
        %v1424 = vmul.f32 %v1407, %v1376
        %v1425 = vmul.f32 %v1409, %v1377
        %v1426 = vadd.f32 %v1424, %v1422
        %v1427 = vadd.f32 %v1425, %v1423
        %1428 = vset.pattern.permute.xlu0 5
        %1429 = vperm.xlu0 %1428, %v1137
        %v1430 = vpop.permute.xlu0 %1429
        %1432 = vset.pattern.permute.xlu0 5
        %1433 = vperm.xlu0 %1432, %v1142
        %v1434 = vpop.permute.xlu0 %1433
        %v1436 = vmul.f32 %v1430, %v1426
        %v1437 = vmul.f32 %v1434, %v1427
        %v1438 = vsel %vm660, %v1436, 0.0
        %v1439 = vsel %vm660, %v1437, 0.0
        %v1440 = vadd.f32 %v1438, %v1439
        %v1441 = vrot.slane %v1440, 4
        %v1442 = vadd.f32 %v1440, %v1441
        %v1443 = vrot.slane %v1442, 2
        %v1444 = vadd.f32 %v1442, %v1443
        %v1445 = vrot.slane %v1444, 1
        %v1446 = vadd.f32 %v1444, %v1445
        %s1447 = sadd.s32 0, 5
        %s1448 = scalar_lea.vmem [#allocation5], %s1447
        %1449 = vst.msk [vmem:[%s1448] sm:$0x1] %vm1198, %v1446
        %v1450 = vlaneseq
        %v1451 = vshrl.u32 %v1450, 7
        %v1452 = vsub.s32 6, %v1451
        %v1453 = vrot.slane %v1009, %v1452
        %v1454 = vmul.f32 %v1453, %v989
        %v1455 = vmul.f32 %v1453, %v990
        %v1456 = vmul.f32 %v1454, 1.442695
        %v1457 = vpow.pop %v1456
        %v1458 = vmul.f32 %v1455, 1.442695
        %v1459 = vpow.pop %v1458
        %1460 = vset.pattern.permute.xlu0 6
        %1461 = vperm.xlu0 %1460, %v1127
        %v1462 = vpop.permute.xlu0 %1461
        %1464 = vset.pattern.permute.xlu0 6
        %1465 = vperm.xlu0 %1464, %v1132
        %v1466 = vpop.permute.xlu0 %1465
        %v1468 = vlaneseq
        %v1469 = vshrl.u32 %v1468, 7
        %v1470 = vsub.s32 6, %v1469
        %v1471 = vrot.slane %v1145, %v1470
        %v1472 = vmul.f32 %v1462, %v1471
        %v1473 = vmul.f32 %v1466, %v1471
        %v1474 = vmul.f32 %v1457, %v1426
        %v1475 = vmul.f32 %v1459, %v1427
        %v1476 = vadd.f32 %v1474, %v1472
        %v1477 = vadd.f32 %v1475, %v1473
        %1478 = vset.pattern.permute.xlu0 6
        %1479 = vperm.xlu0 %1478, %v1137
        %v1480 = vpop.permute.xlu0 %1479
        %1482 = vset.pattern.permute.xlu0 6
        %1483 = vperm.xlu0 %1482, %v1142
        %v1484 = vpop.permute.xlu0 %1483
        %v1486 = vmul.f32 %v1480, %v1476
        %v1487 = vmul.f32 %v1484, %v1477
        %v1488 = vsel %vm660, %v1486, 0.0
        %v1489 = vsel %vm660, %v1487, 0.0
        %v1490 = vadd.f32 %v1488, %v1489
        %v1491 = vrot.slane %v1490, 4
        %v1492 = vadd.f32 %v1490, %v1491
        %v1493 = vrot.slane %v1492, 2
        %v1494 = vadd.f32 %v1492, %v1493
        %v1495 = vrot.slane %v1494, 1
        %v1496 = vadd.f32 %v1494, %v1495
        %s1497 = sadd.s32 0, 6
        %s1498 = scalar_lea.vmem [#allocation5], %s1497
        %1499 = vst.msk [vmem:[%s1498] sm:$0x1] %vm1198, %v1496
        %v1500 = vlaneseq
        %v1501 = vshrl.u32 %v1500, 7
        %v1502 = vsub.s32 7, %v1501
        %v1503 = vrot.slane %v1009, %v1502
        %v1504 = vmul.f32 %v1503, %v989
        %v1505 = vmul.f32 %v1503, %v990
        %v1506 = vmul.f32 %v1504, 1.442695
        %v1507 = vpow.pop %v1506
        %v1508 = vmul.f32 %v1505, 1.442695
        %v1509 = vpow.pop %v1508
        %1510 = vset.pattern.permute.xlu0 7
        %1511 = vperm.xlu0 %1510, %v1127
        %v1512 = vpop.permute.xlu0 %1511
        %1514 = vset.pattern.permute.xlu0 7
        %1515 = vperm.xlu0 %1514, %v1132
        %v1516 = vpop.permute.xlu0 %1515
        %v1518 = vlaneseq
        %v1519 = vshrl.u32 %v1518, 7
        %v1520 = vsub.s32 7, %v1519
        %v1521 = vrot.slane %v1145, %v1520
        %v1522 = vmul.f32 %v1512, %v1521
        %v1523 = vmul.f32 %v1516, %v1521
        %v1524 = vmul.f32 %v1507, %v1476
        %v1525 = vmul.f32 %v1509, %v1477
        %v1526 = vadd.f32 %v1524, %v1522
        %v1527 = vadd.f32 %v1525, %v1523
        %1528 = vset.pattern.permute.xlu0 7
        %1529 = vperm.xlu0 %1528, %v1137
        %v1530 = vpop.permute.xlu0 %1529
        %1532 = vset.pattern.permute.xlu0 7
        %1533 = vperm.xlu0 %1532, %v1142
        %v1534 = vpop.permute.xlu0 %1533
        %v1536 = vmul.f32 %v1530, %v1526
        %v1537 = vmul.f32 %v1534, %v1527
        %v1538 = vsel %vm660, %v1536, 0.0
        %v1539 = vsel %vm660, %v1537, 0.0
        %v1540 = vadd.f32 %v1538, %v1539
        %v1541 = vrot.slane %v1540, 4
        %v1542 = vadd.f32 %v1540, %v1541
        %v1543 = vrot.slane %v1542, 2
        %v1544 = vadd.f32 %v1542, %v1543
        %v1545 = vrot.slane %v1544, 1
        %v1546 = vadd.f32 %v1544, %v1545
        %s1547 = sadd.s32 0, 7
        %s1548 = scalar_lea.vmem [#allocation5], %s1547
        %1549 = vst.msk [vmem:[%s1548] sm:$0x1] %vm1198, %v1546
        %v1550 = vlaneseq
        %v1551 = vshrl.u32 %v1550, 7
        %v1552 = vsub.s32 0, %v1551
        %v1553 = vrot.slane %v1010, %v1552
        %v1554 = vmul.f32 %v1553, %v989
        %v1555 = vmul.f32 %v1553, %v990
        %v1556 = vmul.f32 %v1554, 1.442695
        %v1557 = vpow.pop %v1556
        %v1558 = vmul.f32 %v1555, 1.442695
        %v1559 = vpow.pop %v1558
        %1560 = vset.pattern.permute.xlu0 8
        %1561 = vperm.xlu0 %1560, %v1127
        %v1562 = vpop.permute.xlu0 %1561
        %1564 = vset.pattern.permute.xlu0 8
        %1565 = vperm.xlu0 %1564, %v1132
        %v1566 = vpop.permute.xlu0 %1565
        %v1568 = vlaneseq
        %v1569 = vshrl.u32 %v1568, 7
        %v1570 = vsub.s32 0, %v1569
        %v1571 = vrot.slane %v1146, %v1570
        %v1572 = vmul.f32 %v1562, %v1571
        %v1573 = vmul.f32 %v1566, %v1571
        %v1574 = vmul.f32 %v1557, %v1526
        %v1575 = vmul.f32 %v1559, %v1527
        %v1576 = vadd.f32 %v1574, %v1572
        %v1577 = vadd.f32 %v1575, %v1573
        %1578 = vset.pattern.permute.xlu0 8
        %1579 = vperm.xlu0 %1578, %v1137
        %v1580 = vpop.permute.xlu0 %1579
        %1582 = vset.pattern.permute.xlu0 8
        %1583 = vperm.xlu0 %1582, %v1142
        %v1584 = vpop.permute.xlu0 %1583
        %v1586 = vmul.f32 %v1580, %v1576
        %v1587 = vmul.f32 %v1584, %v1577
        %v1588 = vsel %vm660, %v1586, 0.0
        %v1589 = vsel %vm660, %v1587, 0.0
        %v1590 = vadd.f32 %v1588, %v1589
        %v1591 = vrot.slane %v1590, 4
        %v1592 = vadd.f32 %v1590, %v1591
        %v1593 = vrot.slane %v1592, 2
        %v1594 = vadd.f32 %v1592, %v1593
        %v1595 = vrot.slane %v1594, 1
        %v1596 = vadd.f32 %v1594, %v1595
        %s1597 = sadd.s32 0, 8
        %s1598 = scalar_lea.vmem [#allocation5], %s1597
        %1599 = vst.msk [vmem:[%s1598] sm:$0x1] %vm1198, %v1596
        %v1600 = vlaneseq
        %v1601 = vshrl.u32 %v1600, 7
        %v1602 = vsub.s32 1, %v1601
        %v1603 = vrot.slane %v1010, %v1602
        %v1604 = vmul.f32 %v1603, %v989
        %v1605 = vmul.f32 %v1603, %v990
        %v1606 = vmul.f32 %v1604, 1.442695
        %v1607 = vpow.pop %v1606
        %v1608 = vmul.f32 %v1605, 1.442695
        %v1609 = vpow.pop %v1608
        %1610 = vset.pattern.permute.xlu0 9
        %1611 = vperm.xlu0 %1610, %v1127
        %v1612 = vpop.permute.xlu0 %1611
        %1614 = vset.pattern.permute.xlu0 9
        %1615 = vperm.xlu0 %1614, %v1132
        %v1616 = vpop.permute.xlu0 %1615
        %v1618 = vlaneseq
        %v1619 = vshrl.u32 %v1618, 7
        %v1620 = vsub.s32 1, %v1619
        %v1621 = vrot.slane %v1146, %v1620
        %v1622 = vmul.f32 %v1612, %v1621
        %v1623 = vmul.f32 %v1616, %v1621
        %v1624 = vmul.f32 %v1607, %v1576
        %v1625 = vmul.f32 %v1609, %v1577
        %v1626 = vadd.f32 %v1624, %v1622
        %v1627 = vadd.f32 %v1625, %v1623
        %1628 = vset.pattern.permute.xlu0 9
        %1629 = vperm.xlu0 %1628, %v1137
        %v1630 = vpop.permute.xlu0 %1629
        %1632 = vset.pattern.permute.xlu0 9
        %1633 = vperm.xlu0 %1632, %v1142
        %v1634 = vpop.permute.xlu0 %1633
        %v1636 = vmul.f32 %v1630, %v1626
        %v1637 = vmul.f32 %v1634, %v1627
        %v1638 = vsel %vm660, %v1636, 0.0
        %v1639 = vsel %vm660, %v1637, 0.0
        %v1640 = vadd.f32 %v1638, %v1639
        %v1641 = vrot.slane %v1640, 4
        %v1642 = vadd.f32 %v1640, %v1641
        %v1643 = vrot.slane %v1642, 2
        %v1644 = vadd.f32 %v1642, %v1643
        %v1645 = vrot.slane %v1644, 1
        %v1646 = vadd.f32 %v1644, %v1645
        %s1647 = sadd.s32 0, 9
        %s1648 = scalar_lea.vmem [#allocation5], %s1647
        %1649 = vst.msk [vmem:[%s1648] sm:$0x1] %vm1198, %v1646
        %v1650 = vlaneseq
        %v1651 = vshrl.u32 %v1650, 7
        %v1652 = vsub.s32 2, %v1651
        %v1653 = vrot.slane %v1010, %v1652
        %v1654 = vmul.f32 %v1653, %v989
        %v1655 = vmul.f32 %v1653, %v990
        %v1656 = vmul.f32 %v1654, 1.442695
        %v1657 = vpow.pop %v1656
        %v1658 = vmul.f32 %v1655, 1.442695
        %v1659 = vpow.pop %v1658
        %1660 = vset.pattern.permute.xlu0 10
        %1661 = vperm.xlu0 %1660, %v1127
        %v1662 = vpop.permute.xlu0 %1661
        %1664 = vset.pattern.permute.xlu0 10
        %1665 = vperm.xlu0 %1664, %v1132
        %v1666 = vpop.permute.xlu0 %1665
        %v1668 = vlaneseq
        %v1669 = vshrl.u32 %v1668, 7
        %v1670 = vsub.s32 2, %v1669
        %v1671 = vrot.slane %v1146, %v1670
        %v1672 = vmul.f32 %v1662, %v1671
        %v1673 = vmul.f32 %v1666, %v1671
        %v1674 = vmul.f32 %v1657, %v1626
        %v1675 = vmul.f32 %v1659, %v1627
        %v1676 = vadd.f32 %v1674, %v1672
        %v1677 = vadd.f32 %v1675, %v1673
        %1678 = vset.pattern.permute.xlu0 10
        %1679 = vperm.xlu0 %1678, %v1137
        %v1680 = vpop.permute.xlu0 %1679
        %1682 = vset.pattern.permute.xlu0 10
        %1683 = vperm.xlu0 %1682, %v1142
        %v1684 = vpop.permute.xlu0 %1683
        %v1686 = vmul.f32 %v1680, %v1676
        %v1687 = vmul.f32 %v1684, %v1677
        %v1688 = vsel %vm660, %v1686, 0.0
        %v1689 = vsel %vm660, %v1687, 0.0
        %v1690 = vadd.f32 %v1688, %v1689
        %v1691 = vrot.slane %v1690, 4
        %v1692 = vadd.f32 %v1690, %v1691
        %v1693 = vrot.slane %v1692, 2
        %v1694 = vadd.f32 %v1692, %v1693
        %v1695 = vrot.slane %v1694, 1
        %v1696 = vadd.f32 %v1694, %v1695
        %s1697 = sadd.s32 0, 10
        %s1698 = scalar_lea.vmem [#allocation5], %s1697
        %1699 = vst.msk [vmem:[%s1698] sm:$0x1] %vm1198, %v1696
        %v1700 = vlaneseq
        %v1701 = vshrl.u32 %v1700, 7
        %v1702 = vsub.s32 3, %v1701
        %v1703 = vrot.slane %v1010, %v1702
        %v1704 = vmul.f32 %v1703, %v989
        %v1705 = vmul.f32 %v1703, %v990
        %v1706 = vmul.f32 %v1704, 1.442695
        %v1707 = vpow.pop %v1706
        %v1708 = vmul.f32 %v1705, 1.442695
        %v1709 = vpow.pop %v1708
        %1710 = vset.pattern.permute.xlu0 11
        %1711 = vperm.xlu0 %1710, %v1127
        %v1712 = vpop.permute.xlu0 %1711
        %1714 = vset.pattern.permute.xlu0 11
        %1715 = vperm.xlu0 %1714, %v1132
        %v1716 = vpop.permute.xlu0 %1715
        %v1718 = vlaneseq
        %v1719 = vshrl.u32 %v1718, 7
        %v1720 = vsub.s32 3, %v1719
        %v1721 = vrot.slane %v1146, %v1720
        %v1722 = vmul.f32 %v1712, %v1721
        %v1723 = vmul.f32 %v1716, %v1721
        %v1724 = vmul.f32 %v1707, %v1676
        %v1725 = vmul.f32 %v1709, %v1677
        %v1726 = vadd.f32 %v1724, %v1722
        %v1727 = vadd.f32 %v1725, %v1723
        %1728 = vset.pattern.permute.xlu0 11
        %1729 = vperm.xlu0 %1728, %v1137
        %v1730 = vpop.permute.xlu0 %1729
        %1732 = vset.pattern.permute.xlu0 11
        %1733 = vperm.xlu0 %1732, %v1142
        %v1734 = vpop.permute.xlu0 %1733
        %v1736 = vmul.f32 %v1730, %v1726
        %v1737 = vmul.f32 %v1734, %v1727
        %v1738 = vsel %vm660, %v1736, 0.0
        %v1739 = vsel %vm660, %v1737, 0.0
        %v1740 = vadd.f32 %v1738, %v1739
        %v1741 = vrot.slane %v1740, 4
        %v1742 = vadd.f32 %v1740, %v1741
        %v1743 = vrot.slane %v1742, 2
        %v1744 = vadd.f32 %v1742, %v1743
        %v1745 = vrot.slane %v1744, 1
        %v1746 = vadd.f32 %v1744, %v1745
        %s1747 = sadd.s32 0, 11
        %s1748 = scalar_lea.vmem [#allocation5], %s1747
        %1749 = vst.msk [vmem:[%s1748] sm:$0x1] %vm1198, %v1746
        %v1750 = vlaneseq
        %v1751 = vshrl.u32 %v1750, 7
        %v1752 = vsub.s32 4, %v1751
        %v1753 = vrot.slane %v1010, %v1752
        %v1754 = vmul.f32 %v1753, %v989
        %v1755 = vmul.f32 %v1753, %v990
        %v1756 = vmul.f32 %v1754, 1.442695
        %v1757 = vpow.pop %v1756
        %v1758 = vmul.f32 %v1755, 1.442695
        %v1759 = vpow.pop %v1758
        %1760 = vset.pattern.permute.xlu0 12
        %1761 = vperm.xlu0 %1760, %v1127
        %v1762 = vpop.permute.xlu0 %1761
        %1764 = vset.pattern.permute.xlu0 12
        %1765 = vperm.xlu0 %1764, %v1132
        %v1766 = vpop.permute.xlu0 %1765
        %v1768 = vlaneseq
        %v1769 = vshrl.u32 %v1768, 7
        %v1770 = vsub.s32 4, %v1769
        %v1771 = vrot.slane %v1146, %v1770
        %v1772 = vmul.f32 %v1762, %v1771
        %v1773 = vmul.f32 %v1766, %v1771
        %v1774 = vmul.f32 %v1757, %v1726
        %v1775 = vmul.f32 %v1759, %v1727
        %v1776 = vadd.f32 %v1774, %v1772
        %v1777 = vadd.f32 %v1775, %v1773
        %1778 = vset.pattern.permute.xlu0 12
        %1779 = vperm.xlu0 %1778, %v1137
        %v1780 = vpop.permute.xlu0 %1779
        %1782 = vset.pattern.permute.xlu0 12
        %1783 = vperm.xlu0 %1782, %v1142
        %v1784 = vpop.permute.xlu0 %1783
        %v1786 = vmul.f32 %v1780, %v1776
        %v1787 = vmul.f32 %v1784, %v1777
        %v1788 = vsel %vm660, %v1786, 0.0
        %v1789 = vsel %vm660, %v1787, 0.0
        %v1790 = vadd.f32 %v1788, %v1789
        %v1791 = vrot.slane %v1790, 4
        %v1792 = vadd.f32 %v1790, %v1791
        %v1793 = vrot.slane %v1792, 2
        %v1794 = vadd.f32 %v1792, %v1793
        %v1795 = vrot.slane %v1794, 1
        %v1796 = vadd.f32 %v1794, %v1795
        %s1797 = sadd.s32 0, 12
        %s1798 = scalar_lea.vmem [#allocation5], %s1797
        %1799 = vst.msk [vmem:[%s1798] sm:$0x1] %vm1198, %v1796
        %v1800 = vlaneseq
        %v1801 = vshrl.u32 %v1800, 7
        %v1802 = vsub.s32 5, %v1801
        %v1803 = vrot.slane %v1010, %v1802
        %v1804 = vmul.f32 %v1803, %v989
        %v1805 = vmul.f32 %v1803, %v990
        %v1806 = vmul.f32 %v1804, 1.442695
        %v1807 = vpow.pop %v1806
        %v1808 = vmul.f32 %v1805, 1.442695
        %v1809 = vpow.pop %v1808
        %1810 = vset.pattern.permute.xlu0 13
        %1811 = vperm.xlu0 %1810, %v1127
        %v1812 = vpop.permute.xlu0 %1811
        %1814 = vset.pattern.permute.xlu0 13
        %1815 = vperm.xlu0 %1814, %v1132
        %v1816 = vpop.permute.xlu0 %1815
        %v1818 = vlaneseq
        %v1819 = vshrl.u32 %v1818, 7
        %v1820 = vsub.s32 5, %v1819
        %v1821 = vrot.slane %v1146, %v1820
        %v1822 = vmul.f32 %v1812, %v1821
        %v1823 = vmul.f32 %v1816, %v1821
        %v1824 = vmul.f32 %v1807, %v1776
        %v1825 = vmul.f32 %v1809, %v1777
        %v1826 = vadd.f32 %v1824, %v1822
        %v1827 = vadd.f32 %v1825, %v1823
        %1828 = vset.pattern.permute.xlu0 13
        %1829 = vperm.xlu0 %1828, %v1137
        %v1830 = vpop.permute.xlu0 %1829
        %1832 = vset.pattern.permute.xlu0 13
        %1833 = vperm.xlu0 %1832, %v1142
        %v1834 = vpop.permute.xlu0 %1833
        %v1836 = vmul.f32 %v1830, %v1826
        %v1837 = vmul.f32 %v1834, %v1827
        %v1838 = vsel %vm660, %v1836, 0.0
        %v1839 = vsel %vm660, %v1837, 0.0
        %v1840 = vadd.f32 %v1838, %v1839
        %v1841 = vrot.slane %v1840, 4
        %v1842 = vadd.f32 %v1840, %v1841
        %v1843 = vrot.slane %v1842, 2
        %v1844 = vadd.f32 %v1842, %v1843
        %v1845 = vrot.slane %v1844, 1
        %v1846 = vadd.f32 %v1844, %v1845
        %s1847 = sadd.s32 0, 13
        %s1848 = scalar_lea.vmem [#allocation5], %s1847
        %1849 = vst.msk [vmem:[%s1848] sm:$0x1] %vm1198, %v1846
        %v1850 = vlaneseq
        %v1851 = vshrl.u32 %v1850, 7
        %v1852 = vsub.s32 6, %v1851
        %v1853 = vrot.slane %v1010, %v1852
        %v1854 = vmul.f32 %v1853, %v989
        %v1855 = vmul.f32 %v1853, %v990
        %v1856 = vmul.f32 %v1854, 1.442695
        %v1857 = vpow.pop %v1856
        %v1858 = vmul.f32 %v1855, 1.442695
        %v1859 = vpow.pop %v1858
        %1860 = vset.pattern.permute.xlu0 14
        %1861 = vperm.xlu0 %1860, %v1127
        %v1862 = vpop.permute.xlu0 %1861
        %1864 = vset.pattern.permute.xlu0 14
        %1865 = vperm.xlu0 %1864, %v1132
        %v1866 = vpop.permute.xlu0 %1865
        %v1868 = vlaneseq
        %v1869 = vshrl.u32 %v1868, 7
        %v1870 = vsub.s32 6, %v1869
        %v1871 = vrot.slane %v1146, %v1870
        %v1872 = vmul.f32 %v1862, %v1871
        %v1873 = vmul.f32 %v1866, %v1871
        %v1874 = vmul.f32 %v1857, %v1826
        %v1875 = vmul.f32 %v1859, %v1827
        %v1876 = vadd.f32 %v1874, %v1872
        %v1877 = vadd.f32 %v1875, %v1873
        %1878 = vset.pattern.permute.xlu0 14
        %1879 = vperm.xlu0 %1878, %v1137
        %v1880 = vpop.permute.xlu0 %1879
        %1882 = vset.pattern.permute.xlu0 14
        %1883 = vperm.xlu0 %1882, %v1142
        %v1884 = vpop.permute.xlu0 %1883
        %v1886 = vmul.f32 %v1880, %v1876
        %v1887 = vmul.f32 %v1884, %v1877
        %v1888 = vsel %vm660, %v1886, 0.0
        %v1889 = vsel %vm660, %v1887, 0.0
        %v1890 = vadd.f32 %v1888, %v1889
        %v1891 = vrot.slane %v1890, 4
        %v1892 = vadd.f32 %v1890, %v1891
        %v1893 = vrot.slane %v1892, 2
        %v1894 = vadd.f32 %v1892, %v1893
        %v1895 = vrot.slane %v1894, 1
        %v1896 = vadd.f32 %v1894, %v1895
        %s1897 = sadd.s32 0, 14
        %s1898 = scalar_lea.vmem [#allocation5], %s1897
        %1899 = vst.msk [vmem:[%s1898] sm:$0x1] %vm1198, %v1896
        %v1900 = vlaneseq
        %v1901 = vshrl.u32 %v1900, 7
        %v1902 = vsub.s32 7, %v1901
        %v1903 = vrot.slane %v1010, %v1902
        %v1904 = vmul.f32 %v1903, %v989
        %v1905 = vmul.f32 %v1903, %v990
        %v1906 = vmul.f32 %v1904, 1.442695
        %v1907 = vpow.pop %v1906
        %v1908 = vmul.f32 %v1905, 1.442695
        %v1909 = vpow.pop %v1908
        %1910 = vset.pattern.permute.xlu0 15
        %1911 = vperm.xlu0 %1910, %v1127
        %v1912 = vpop.permute.xlu0 %1911
        %1914 = vset.pattern.permute.xlu0 15
        %1915 = vperm.xlu0 %1914, %v1132
        %v1916 = vpop.permute.xlu0 %1915
        %v1918 = vlaneseq
        %v1919 = vshrl.u32 %v1918, 7
        %v1920 = vsub.s32 7, %v1919
        %v1921 = vrot.slane %v1146, %v1920
        %v1922 = vmul.f32 %v1912, %v1921
        %v1923 = vmul.f32 %v1916, %v1921
        %v1924 = vmul.f32 %v1907, %v1876
        %v1925 = vmul.f32 %v1909, %v1877
        %v1926 = vadd.f32 %v1924, %v1922
        %v1927 = vadd.f32 %v1925, %v1923
        %1928 = vset.pattern.permute.xlu0 15
        %1929 = vperm.xlu0 %1928, %v1137
        %v1930 = vpop.permute.xlu0 %1929
        %1932 = vset.pattern.permute.xlu0 15
        %1933 = vperm.xlu0 %1932, %v1142
        %v1934 = vpop.permute.xlu0 %1933
        %v1936 = vmul.f32 %v1930, %v1926
        %v1937 = vmul.f32 %v1934, %v1927
        %v1938 = vsel %vm660, %v1936, 0.0
        %v1939 = vsel %vm660, %v1937, 0.0
        %v1940 = vadd.f32 %v1938, %v1939
        %v1941 = vrot.slane %v1940, 4
        %v1942 = vadd.f32 %v1940, %v1941
        %v1943 = vrot.slane %v1942, 2
        %v1944 = vadd.f32 %v1942, %v1943
        %v1945 = vrot.slane %v1944, 1
        %v1946 = vadd.f32 %v1944, %v1945
        %s1947 = sadd.s32 0, 15
        %s1948 = scalar_lea.vmem [#allocation5], %s1947
        %1949 = vst.msk [vmem:[%s1948] sm:$0x1] %vm1198, %v1946
        %v1950 = vld [vmem:[#allocation4] sm:$0xff]
        %v1951 = vld [vmem:[#allocation4 + $0x8] sm:$0xff]
        %v1952 = vld [vmem:[#allocation5] sm:$0xff]
        %v1953 = vld [vmem:[#allocation5 + $0x8] sm:$0xff]
        %v1955 = vlaneseq
        %v1956 = vshrl.u32 %v1955, 7
        %v1957 = vsub.s32 0, %v1956
        %v1958 = vrot.slane %v991, %v1957
        %v1960 = vmul.f32 %v1958, %v1011
        %v1961 = vmul.f32 %v1958, %v1012
        %v1962 = vadd.f32 %v1952, %v1960
        %v1963 = vadd.f32 %v1953, %v1961
        %v1964 = vmul.f32 %v1962, %v1950
        %v1965 = vmul.f32 %v1963, %v1951
        %1966 = vst.msk [vmem:[#allocation5] sm:$0xff] %vm660, %v1964
        %1967 = vst.msk [vmem:[#allocation5 + $0x8] sm:$0xff] %vm660, %v1965
        %1968 = vst.msk [vmem:[#allocation8] sm:$0xff] %vm660, %v1926
        %1969 = vst.msk [vmem:[#allocation8 + $0x8] sm:$0xff] %vm660, %v1927
        // Predicated region
        $region85: #{tpu_custom_call.1} parent=71 // pred_check
          %p1970 = pneg %p663
        $region86: #{tpu_custom_call.1} parent=71 // pred_check_branch
          %1972 = sbr.rel (%p1970) target = $region88
        $region87: #{tpu_custom_call.1} parent=71 // pred_region
          %v1973 = vld [vmem:[#allocation8] sm:$0xff]
          %v1974 = vld [vmem:[#allocation8 + $0x8] sm:$0xff]
          %1975 = vst.msk [vmem:[%s511] sm:$0xff] %vm660, %v1973
          %1976 = vst.msk [vmem:[%s511 + $0x8] sm:$0xff] %vm660, %v1974
        $region88: #{tpu_custom_call.1} parent=71 // pred_fallthru
          _
        %v1977 = vld [vmem:[#allocation5] sm:$0xff]
        %v1978 = vld [vmem:[#allocation5 + $0x8] sm:$0xff]
        %v1979 = vpack.c.bf16 %v1978, %v1977
        %v1980 = vld [vmem:[%s12] sm:$0xf]
        %v1981 = vld [vmem:[%s12 + $0x4] sm:$0xf]
        %v1982 = vld [vmem:[%s12 + $0x8] sm:$0xf]
        %v1983 = vld [vmem:[%s12 + $0xc] sm:$0xf]
        %v1984 = vld [vmem:[%s12 + $0x10] sm:$0xf]
        %v1985 = vld [vmem:[%s12 + $0x14] sm:$0xf]
        %v1986 = vld [vmem:[%s12 + $0x18] sm:$0xf]
        %v1987 = vld [vmem:[%s12 + $0x1c] sm:$0xf]
        %v1996 = vunpack.c.l.b16 %v1980
        %v1997 = vunpack.c.l.b16 %v1981
        %v1998 = vunpack.c.l.b16 %v1982
        %v1999 = vunpack.c.l.b16 %v1983
        %v2000 = vunpack.c.l.b16 %v1984
        %v2001 = vunpack.c.l.b16 %v1985
        %v2002 = vunpack.c.l.b16 %v1986
        %v2003 = vunpack.c.l.b16 %v1987
        %v2004 = vpack.c.b16 %v1997, %v1996
        %v2005 = vpack.c.b16 %v1999, %v1998
        %v2006 = vpack.c.b16 %v2001, %v2000
        %v2007 = vpack.c.b16 %v2003, %v2002
        %v2013 = vsel %vm660, %v1979, 0
        %2015 = vmatprep.subr.bf16.mxu0 0
        %2016 = vmatpush1.bf16.msra.mxu0 %v2004
        %2017 = vmatprep.subr.bf16.mxu0 0
        %2018 = vmatpush1.bf16.msra.mxu0 %v2005
        %2019 = vmatprep.subr.bf16.mxu0 0
        %2020 = vmatpush1.bf16.msra.mxu0 %v2006
        %2021 = vmatprep.subr.bf16.mxu0 0
        %2022 = vmatpush1.bf16.msra.mxu0 %v2007
        %2023 = vmatprep.subr.bf16.mxu0 0
        %2024 = vmatpush1.bf16.msra.mxu0 0
        %2025 = vmatprep.subr.bf16.mxu0 0
        %2026 = vmatpush1.bf16.msra.mxu0 0
        %2027 = vmatprep.subr.bf16.mxu0 0
        %2028 = vmatpush1.bf16.msra.mxu0 0
        %2029 = vmatprep.subr.bf16.mxu0 0
        %2030 = vmatpush1.bf16.msra.mxu0 0
        %2031 = vmatprep.subr.bf16.mxu0 0
        %2032 = vmatpush1.bf16.msra.mxu0 0
        %2033 = vmatprep.subr.bf16.mxu0 0
        %2034 = vmatpush1.bf16.msra.mxu0 0
        %2035 = vmatprep.subr.bf16.mxu0 0
        %2036 = vmatpush1.bf16.msra.mxu0 0
        %2037 = vmatprep.subr.bf16.mxu0 0
        %2038 = vmatpush1.bf16.msra.mxu0 0
        %2039 = vmatprep.subr.bf16.mxu0 0
        %2040 = vmatpush1.bf16.msra.mxu0 0
        %2041 = vmatprep.subr.bf16.mxu0 0
        %2042 = vmatpush1.bf16.msra.mxu0 0
        %2043 = vmatprep.subr.bf16.mxu0 0
        %2044 = vmatpush1.bf16.msra.mxu0 0
        %2045 = vmatprep.subr.bf16.mxu0 0
        %2046 = vmatpush1.bf16.msra.mxu0 0
        %2047 = vmatprep.mubr.bf16.mxu0 0
        %2048 = vmatmul.mubr.bf16.gmra.mrb[0].mxu0 %v2013
        %v2049 = vpop.f32.mrb[0].mxu0
        %v2050 = vadd.f32 0.0, %v2049
        %v2051 = vpop.f32.mrb[0].mxu0
        %v2052 = vpop.f32.mrb[0].mxu0
        %v2053 = vadd.f32 0.0, %v2052
        %v2054 = vpop.f32.mrb[0].mxu0
        %2055 = vdwg.mxu0
        %2056 = vst.msk [vmem:[%s504] sm:$0xff] %vm531, %v2050
        %2057 = vst.msk [vmem:[%s504 + $0x8] sm:$0xff] %vm531, %v2053
        %s2058 = sand.u32 %s339, 1
        %s2059 = scalar_lea.sflag [#allocation10], %s2058
        %s2060 = sand.u32 %s339, 1
        %s2061 = smul.addr %s2060, 16
        %s2062 = scalar_lea.vmem [#allocation9], %s2061
        %s2063 = sand.u32 %s365, 1
        %s2064 = scalar_lea.sflag [#allocation12], %s2063
        %s2065 = sand.u32 %s365, 1
        %s2066 = smul.addr %s2065, 16
        %s2067 = scalar_lea.vmem [#allocation11], %s2066
        // Predicated region
        $region89: #{tpu_custom_call.1} parent=71 // pred_check
          %p2068 = pneg %p349
        $region90: #{tpu_custom_call.1} parent=71 // pred_check_branch
          %2070 = sbr.rel (%p2068) target = $region92
        $region91: #{tpu_custom_call.1} parent=71 // pred_region
          %s2071 = smul.u32 2, %s37
          %s2073 = ssub.s32 256, 256
          %2074 = vsyncadd %s2059, %s2073
          %s2075 = smul.addr %s36, 2
          %s2076 = sadd.s32 %s2071, %s2075
          %s2077 = smul.addr %s2076, 128
          %s2078 = scalar_lea.hbm %s13, %s2077
          %s2079 = sshll.u32 %s2062, 4
          %s2080 = int_to_ptr.vmem [resolvable:$true] %s2079
          %2085 = dma.vmem_to_hbm [thread:$0]  %s2080, 256, %s2078, %s2059, 128, 128, 8
        $region92: #{tpu_custom_call.1} parent=71 // pred_fallthru
          _
        // Predicated region
        $region93: #{tpu_custom_call.1} parent=71 // pred_check
          %p2086 = pneg %p375
        $region94: #{tpu_custom_call.1} parent=71 // pred_check_branch
          %2088 = sbr.rel (%p2086) target = $region96
        $region95: #{tpu_custom_call.1} parent=71 // pred_region
          %s2090 = ssub.s32 256, 256
          %2091 = vsyncadd %s2064, %s2090
          %s2092 = smul.addr %s36, 2
          %s2093 = smul.addr %s2092, 128
          %s2094 = scalar_lea.hbm %s14, %s2093
          %s2095 = sshll.u32 %s2067, 4
          %s2096 = int_to_ptr.vmem [resolvable:$true] %s2095
          %2101 = dma.vmem_to_hbm [thread:$0]  %s2096, 256, %s2094, %s2064, 128, 128, 8
        $region96: #{tpu_custom_call.1} parent=71 // pred_fallthru
          _
      $region72: #{tpu_custom_call.1} parent=5 // pred_fallthru
        _
      %p2102 = scmp.le.s32.totalorder 2, %s27
      // Predicated region
      $region97: #{tpu_custom_call.1} parent=5 // pred_check
        %p2103 = pneg %p2102
      $region98: #{tpu_custom_call.1} parent=5 // pred_check_branch
        %2105 = sbr.rel (%p2103) target = $region100
      $region99: #{tpu_custom_call.1} parent=5 // pred_region
        %s2106 = ssub.s32 %s27, 2
        // Predicated region
        $region101: #{tpu_custom_call.1} parent=99 // pred_check
          %p2107 = pneg %p355
        $region102: #{tpu_custom_call.1} parent=99 // pred_check_branch
          %2109 = sbr.rel (%p2107) target = $region104
        $region103: #{tpu_custom_call.1} parent=99 // pred_region
          %s2110 = sand.u32 %s340, 1
          %s2111 = scalar_lea.sflag [#allocation10], %s2110
          %s2112 = sand.u32 %s340, 1
          %s2113 = smul.addr %s2112, 16
          %s2114 = scalar_lea.vmem [#allocation9], %s2113
          %2115 = dma.done %s2111, 256
        $region104: #{tpu_custom_call.1} parent=99 // pred_fallthru
          _
        // Predicated region
        $region105: #{tpu_custom_call.1} parent=99 // pred_check
          %p2116 = pneg %p381
        $region106: #{tpu_custom_call.1} parent=99 // pred_check_branch
          %2118 = sbr.rel (%p2116) target = $region108
        $region107: #{tpu_custom_call.1} parent=99 // pred_region
          %s2119 = sand.u32 %s366, 1
          %s2120 = scalar_lea.sflag [#allocation12], %s2119
          %s2121 = sand.u32 %s366, 1
          %s2122 = smul.addr %s2121, 16
          %s2123 = scalar_lea.vmem [#allocation11], %s2122
          %2124 = dma.done %s2120, 256
        $region108: #{tpu_custom_call.1} parent=99 // pred_fallthru
          _
      $region100: #{tpu_custom_call.1} parent=5 // pred_fallthru
        _
    $region6: #{tpu_custom_call.1} parent=1 // loop_footer
      %s31 = sadd.s32 1, %s27
    $region7: #{tpu_custom_call.1} parent=1 // loop_footer_branch
      %26 = sbr.rel target = $region3
    $region8: #{tpu_custom_call.1} parent=1 // loop_exit
      _
    %2125 = vsyncpa [#allocation10], 1
    %s2126 = scalar_lea.sflag [#allocation10], 1
    %2127 = vsyncpa %s2126, 1
    %2128 = vsyncpa [#allocation12], 1
    %s2129 = scalar_lea.sflag [#allocation12], 1
    %2130 = vsyncpa %s2129, 1

</llo_original>
